<compile_context>
chip_gen: v6e
topology: v6e:2x2x1
jax: 0.10.0
libtpu: 0.0.40
codegen_flags: <defaults>
</compile_context>

<pallas_src>
import numpy as np
import jax
import jax.numpy as jnp
from jax.experimental import pallas as pl
from jax.experimental.pallas import tpu as pltpu

# ----------------------------- configuration --------------------------------
IN_DIM = 512                 # Mapper(in_dim); forward input feature dim = in_dim + 512
D_IN = IN_DIM + 512          # 1024  (8 x 128 lanes)
HIDDEN = 512                 # 4 x 128 lanes
BATCH = 2
MAX_BATCH_TILE = 512         # rows per grid step for large batches


def _round_up(v, m):
    return ((v + m - 1) // m) * m


# ----------------------------- Pallas kernel --------------------------------
def _mapper_kernel(x_ref, w1_ref, b1_ref, w2_ref, b2_ref, w3_ref, b3_ref,
                   alpha_ref, o_ref):
    """Fused Linear->PReLU->Linear->PReLU->Linear on one batch tile.

    x_ref : (TB, D_IN) f32   activations (VMEM)
    wk_ref: (in, out)  bf16  pre-transposed Linear weights (VMEM, single-buffered)
    bk_ref: (1, out)   f32   biases as lane-dense row vectors (VMEM)
    alpha_ref: (2,)    f32   PReLU slopes (SMEM scalars)
    o_ref : (TB, HIDDEN) f32
    """
    # Cast activations once to bf16 so every matmul takes the fast bf16 MXU path;
    # f32 accumulation comes from preferred_element_type.
    x = x_ref[...].astype(jnp.bfloat16)

    h = jnp.dot(x, w1_ref[...], preferred_element_type=jnp.float32) + b1_ref[...]
    h = jnp.where(h >= 0.0, h, alpha_ref[0] * h)             # PReLU (scalar slope)

    h = jnp.dot(h.astype(jnp.bfloat16), w2_ref[...],
                preferred_element_type=jnp.float32) + b2_ref[...]
    h = jnp.where(h >= 0.0, h, alpha_ref[1] * h)             # PReLU (scalar slope)

    o_ref[...] = (jnp.dot(h.astype(jnp.bfloat16), w3_ref[...],
                          preferred_element_type=jnp.float32)
                  + b3_ref[...]).astype(o_ref.dtype)


# ----------------------------- wrapper ---------------------------------------
def mapper_forward(params, x):
    """x: (B, in_dim + 512) float32 -> (B, 512) float32."""
    B, d_in = x.shape
    H = params["w1"].shape[1]
    assert params["w1"].shape[0] == d_in

    # Batch tiling: whole batch in one block when small; for larger batches pick a
    # multiple-of-8 tile that yields grid >= 2 (lets v7x's two TensorCores split
    # the "parallel" axis) without exceeding MAX_BATCH_TILE.  No padding — Pallas
    # clips the partial last block (rows are independent).
    if B <= 128:
        TB = B
    else:
        TB = min(MAX_BATCH_TILE, _round_up(pl.cdiv(B, 2), 8))
    grid = (pl.cdiv(B, TB),)

    _rep = lambda i: (0, 0)  # replicated (constant) blocks -> DMA'd once

    def _wspec(shape):
        # Constant index_map => single buffer is enough; frees VMEM for bigger TB.
        return pl.BlockSpec(shape, _rep, pipeline_mode=pl.Buffered(1))

    return pl.pallas_call(
        _mapper_kernel,
        out_shape=jax.ShapeDtypeStruct((B, H), jnp.float32),
        grid=grid,
        in_specs=[
            pl.BlockSpec((TB, d_in), lambda i: (i, 0)),         # x   (batch-tiled)
            _wspec((d_in, H)),                                  # w1  (bf16, single-buffered)
            _wspec((1, H)),                                     # b1
            _wspec((H, H)),                                     # w2
            _wspec((1, H)),                                     # b2
            _wspec((H, H)),                                     # w3
            _wspec((1, H)),                                     # b3
            pl.BlockSpec(memory_space=pltpu.MemorySpace.SMEM),  # PReLU slopes
        ],
        out_specs=pl.BlockSpec((TB, H), lambda i: (i, 0)),
        compiler_params=pltpu.CompilerParams(
            dimension_semantics=("parallel",),
            vmem_limit_bytes=32 * 1024 * 1024),
    )(x, params["w1"], params["b1"], params["w2"], params["b2"],
      params["w3"], params["b3"], params["alpha"])


def mapper_reference(params, x):
    """Pure-JAX reference of the same forward (weights upcast from the kernel's
    bf16 storage so the comparison isolates kernel correctness)."""
    w1 = params["w1"].astype(jnp.float32)
    w2 = params["w2"].astype(jnp.float32)
    w3 = params["w3"].astype(jnp.float32)
    h = x @ w1 + params["b1"]
    h = jnp.where(h >= 0.0, h, params["alpha"][0] * h)
    h = h @ w2 + params["b2"]
    h = jnp.where(h >= 0.0, h, params["alpha"][1] * h)
    return h @ w3 + params["b3"]


# ----------------------------- parameter init --------------------------------
def _xavier_normal(key, fan_in, fan_out):
    std = float(np.sqrt(2.0 / (fan_in + fan_out)))
    # stored pre-transposed as (in, out) == W.T, done once at init (not per forward)
    return std * jax.random.normal(key, (fan_in, fan_out), jnp.float32)


def init_params(key):
    """Master parameters in f32 (matches the PyTorch module's weights_init)."""
    k = jax.random.split(key, 6)
    return dict(
        w1=_xavier_normal(k[0], D_IN, HIDDEN),
        b1=jax.random.normal(k[1], (1, HIDDEN), jnp.float32),    # init.normal_ (std 1)
        w2=_xavier_normal(k[2], HIDDEN, HIDDEN),
        b2=jax.random.normal(k[3], (1, HIDDEN), jnp.float32),
        w3=_xavier_normal(k[4], HIDDEN, HIDDEN),
        b3=jax.random.normal(k[5], (1, HIDDEN), jnp.float32),
        alpha=jnp.full((2,), 0.25, jnp.float32),                 # PReLU default slope
    )


def prepare_kernel_params(params):
    """One-time conversion of weights to bf16 for the MXU (biases/slopes stay f32)."""
    kp = dict(params)
    for name in ("w1", "w2", "w3"):
        kp[name] = params[name].astype(jnp.bfloat16)
    return kp


# ----------------------------- main -------------------------------------------
if __name__ == "__main__":
    root = jax.random.PRNGKey(0)
    pkey, xkey = jax.random.split(root)

    params = init_params(pkey)
    kparams = prepare_kernel_params(params)

    # Small-shape test (module's typical use: batch=2, features=in_dim+512=1024).
    x = jax.random.normal(xkey, (BATCH, D_IN), jnp.float32)
    out = jax.block_until_ready(mapper_forward(kparams, x))
    assert out.shape == (BATCH, HIDDEN), out.shape
    assert bool(jnp.all(jnp.isfinite(out)))
    ref = jax.block_until_ready(mapper_reference(kparams, x))
    assert bool(jnp.allclose(out, ref, rtol=2e-2, atol=2e-2))

    # Larger, non-divisible batch: exercises grid>=2 and the clipped partial block.
    x2 = jax.random.normal(jax.random.PRNGKey(1), (300, D_IN), jnp.float32)
    out2 = jax.block_until_ready(mapper_forward(kparams, x2))
    ref2 = jax.block_until_ready(mapper_reference(kparams, x2))
    assert out2.shape == (300, HIDDEN)
    assert bool(jnp.all(jnp.isfinite(out2)))
    assert bool(jnp.allclose(out2, ref2, rtol=2e-2, atol=2e-2))

    print("KERNEL_OK")
</pallas_src>

<mosaic_0001>
module attributes {stable_mosaic.version = 11 : i64} {
  func.func @_mapper_kernel(%arg0: i32, %arg1: memref<2x1024xf32, #tpu.memory_space<vmem>>, %arg2: memref<1024x512xbf16, #tpu.memory_space<vmem>>, %arg3: memref<1x512xf32, #tpu.memory_space<vmem>>, %arg4: memref<512x512xbf16, #tpu.memory_space<vmem>>, %arg5: memref<1x512xf32, #tpu.memory_space<vmem>>, %arg6: memref<512x512xbf16, #tpu.memory_space<vmem>>, %arg7: memref<1x512xf32, #tpu.memory_space<vmem>>, %arg8: memref<2xf32, #tpu.memory_space<smem>>, %arg9: memref<2x512xf32, #tpu.memory_space<vmem>>) attributes {dimension_semantics = [#tpu.dimension_semantics<parallel>], iteration_bounds = array<i64: 1>, scalar_prefetch = 0 : i64, scratch_operands = 0 : i64, tpu.core_type = #tpu.core_type<tc>, window_params = [{transform_indices = @transform_0, window_bounds = array<i64: 2, 1024>}, {pipeline_mode = #tpu.pipeline_mode<synchronous>, transform_indices = @transform_1, window_bounds = array<i64: 1024, 512>}, {pipeline_mode = #tpu.pipeline_mode<synchronous>, transform_indices = @transform_2, window_bounds = array<i64: 1, 512>}, {pipeline_mode = #tpu.pipeline_mode<synchronous>, transform_indices = @transform_3, window_bounds = array<i64: 512, 512>}, {pipeline_mode = #tpu.pipeline_mode<synchronous>, transform_indices = @transform_4, window_bounds = array<i64: 1, 512>}, {pipeline_mode = #tpu.pipeline_mode<synchronous>, transform_indices = @transform_5, window_bounds = array<i64: 512, 512>}, {pipeline_mode = #tpu.pipeline_mode<synchronous>, transform_indices = @transform_6, window_bounds = array<i64: 1, 512>}, {transform_indices = @transform_7, window_bounds = array<i64: 2>}, {transform_indices = @transform_8, window_bounds = array<i64: 2, 512>}]} {
    %c0 = arith.constant 0 : index
    %c0_0 = arith.constant 0 : index
    %0 = vector.load %arg1[%c0, %c0_0] : memref<2x1024xf32, #tpu.memory_space<vmem>>, vector<2x1024xf32>
    %1 = arith.truncf %0 : vector<2x1024xf32> to vector<2x1024xbf16>
    %c0_1 = arith.constant 0 : index
    %c0_2 = arith.constant 0 : index
    %2 = vector.load %arg2[%c0_1, %c0_2] : memref<1024x512xbf16, #tpu.memory_space<vmem>>, vector<1024x512xbf16>
    %cst = arith.constant dense<0.000000e+00> : vector<2x512xf32>
    %3 = tpu.matmul %1, %2, %cst {dimension_numbers = #tpu.dot_dimension_numbers<[1], [0], [0], [1], [0, 0, 1, 1], [], []>} : vector<2x1024xbf16>, vector<1024x512xbf16>, vector<2x512xf32> -> vector<2x512xf32>
    %c0_3 = arith.constant 0 : index
    %c0_4 = arith.constant 0 : index
    %4 = vector.load %arg3[%c0_3, %c0_4] : memref<1x512xf32, #tpu.memory_space<vmem>>, vector<1x512xf32>
    %5 = vector.broadcast %4 : vector<1x512xf32> to vector<2x512xf32>
    %6 = arith.addf %3, %5 : vector<2x512xf32>
    %cst_5 = arith.constant 0.000000e+00 : f32
    %7 = vector.broadcast %cst_5 : f32 to vector<2x512xf32>
    %8 = arith.cmpf oge, %6, %7 : vector<2x512xf32>
    %c0_6 = arith.constant 0 : index
    %9 = memref.load %arg8[%c0_6] : memref<2xf32, #tpu.memory_space<smem>>
    %10 = vector.broadcast %9 : f32 to vector<2x512xf32>
    %11 = arith.mulf %10, %6 : vector<2x512xf32>
    %12 = arith.select %8, %6, %11 : vector<2x512xi1>, vector<2x512xf32>
    %13 = arith.truncf %12 : vector<2x512xf32> to vector<2x512xbf16>
    %c0_7 = arith.constant 0 : index
    %c0_8 = arith.constant 0 : index
    %14 = vector.load %arg4[%c0_7, %c0_8] : memref<512x512xbf16, #tpu.memory_space<vmem>>, vector<512x512xbf16>
    %cst_9 = arith.constant dense<0.000000e+00> : vector<2x512xf32>
    %15 = tpu.matmul %13, %14, %cst_9 {dimension_numbers = #tpu.dot_dimension_numbers<[1], [0], [0], [1], [0, 0, 1, 1], [], []>} : vector<2x512xbf16>, vector<512x512xbf16>, vector<2x512xf32> -> vector<2x512xf32>
    %c0_10 = arith.constant 0 : index
    %c0_11 = arith.constant 0 : index
    %16 = vector.load %arg5[%c0_10, %c0_11] : memref<1x512xf32, #tpu.memory_space<vmem>>, vector<1x512xf32>
    %17 = vector.broadcast %16 : vector<1x512xf32> to vector<2x512xf32>
    %18 = arith.addf %15, %17 : vector<2x512xf32>
    %cst_12 = arith.constant 0.000000e+00 : f32
    %19 = vector.broadcast %cst_12 : f32 to vector<2x512xf32>
    %20 = arith.cmpf oge, %18, %19 : vector<2x512xf32>
    %c1 = arith.constant 1 : index
    %21 = memref.load %arg8[%c1] : memref<2xf32, #tpu.memory_space<smem>>
    %22 = vector.broadcast %21 : f32 to vector<2x512xf32>
    %23 = arith.mulf %22, %18 : vector<2x512xf32>
    %24 = arith.select %20, %18, %23 : vector<2x512xi1>, vector<2x512xf32>
    %25 = arith.truncf %24 : vector<2x512xf32> to vector<2x512xbf16>
    %c0_13 = arith.constant 0 : index
    %c0_14 = arith.constant 0 : index
    %26 = vector.load %arg6[%c0_13, %c0_14] : memref<512x512xbf16, #tpu.memory_space<vmem>>, vector<512x512xbf16>
    %cst_15 = arith.constant dense<0.000000e+00> : vector<2x512xf32>
    %27 = tpu.matmul %25, %26, %cst_15 {dimension_numbers = #tpu.dot_dimension_numbers<[1], [0], [0], [1], [0, 0, 1, 1], [], []>} : vector<2x512xbf16>, vector<512x512xbf16>, vector<2x512xf32> -> vector<2x512xf32>
    %c0_16 = arith.constant 0 : index
    %c0_17 = arith.constant 0 : index
    %28 = vector.load %arg7[%c0_16, %c0_17] : memref<1x512xf32, #tpu.memory_space<vmem>>, vector<1x512xf32>
    %29 = vector.broadcast %28 : vector<1x512xf32> to vector<2x512xf32>
    %30 = arith.addf %27, %29 : vector<2x512xf32>
    %c0_18 = arith.constant 0 : index
    %c0_19 = arith.constant 0 : index
    %31 = vector.load %arg9[%c0_18, %c0_19] : memref<2x512xf32, #tpu.memory_space<vmem>>, vector<2x512xf32>
    tpu.vector_store %arg9[%c0_18, %c0_19], %30 {strides = array<i32>} : memref<2x512xf32, #tpu.memory_space<vmem>>, vector<2x512xf32>,
    return
  }
  func.func @transform_0(%arg0: i32) -> (i32, i32) {
    %c0_i32 = arith.constant 0 : i32
    %c0_i32_0 = arith.constant 0 : i32
    return %arg0, %c0_i32 : i32, i32
  }
  func.func @transform_1(%arg0: i32) -> (i32, i32) {
    %c0_i32 = arith.constant 0 : i32
    %c0_i32_0 = arith.constant 0 : i32
    %c0_i32_1 = arith.constant 0 : i32
    return %c0_i32, %c0_i32_0 : i32, i32
  }
  func.func @transform_2(%arg0: i32) -> (i32, i32) {
    %c0_i32 = arith.constant 0 : i32
    %c0_i32_0 = arith.constant 0 : i32
    %c0_i32_1 = arith.constant 0 : i32
    return %c0_i32, %c0_i32_0 : i32, i32
  }
  func.func @transform_3(%arg0: i32) -> (i32, i32) {
    %c0_i32 = arith.constant 0 : i32
    %c0_i32_0 = arith.constant 0 : i32
    %c0_i32_1 = arith.constant 0 : i32
    return %c0_i32, %c0_i32_0 : i32, i32
  }
  func.func @transform_4(%arg0: i32) -> (i32, i32) {
    %c0_i32 = arith.constant 0 : i32
    %c0_i32_0 = arith.constant 0 : i32
    %c0_i32_1 = arith.constant 0 : i32
    return %c0_i32, %c0_i32_0 : i32, i32
  }
  func.func @transform_5(%arg0: i32) -> (i32, i32) {
    %c0_i32 = arith.constant 0 : i32
    %c0_i32_0 = arith.constant 0 : i32
    %c0_i32_1 = arith.constant 0 : i32
    return %c0_i32, %c0_i32_0 : i32, i32
  }
  func.func @transform_6(%arg0: i32) -> (i32, i32) {
    %c0_i32 = arith.constant 0 : i32
    %c0_i32_0 = arith.constant 0 : i32
    %c0_i32_1 = arith.constant 0 : i32
    return %c0_i32, %c0_i32_0 : i32, i32
  }
  func.func @transform_7(%arg0: i32) -> i32 {
    %c0_i32 = arith.constant 0 : i32
    %c0_i32_0 = arith.constant 0 : i32
    return %c0_i32 : i32
  }
  func.func @transform_8(%arg0: i32) -> (i32, i32) {
    %c0_i32 = arith.constant 0 : i32
    %c0_i32_0 = arith.constant 0 : i32
    return %arg0, %c0_i32 : i32, i32
  }
}

</mosaic_0001>

<llo_original>
// kernel: tpu_custom_call.1
$region0: #{tpu_custom_call.1}
  #allocation0 [shape = 'u32[]', space=smem, size = 0x4, offset = 0x4, fixed_abs, tag = 'smem constant byte address 0x4 - core index']
  #allocation1 [shape = 'u32[144,128]{1,0:T(1,128)}', space=vmem, size = 0x12000, scoped, tag = 'internal scratch']
  %s0 = inlined_call_operand.hbm [shape: f32[2,1024], index: 0, kind: input, shape index: {}]
  %s1 = inlined_call_operand.hbm [shape: bf16[1024,512], index: 1, kind: input, shape index: {}]
  %s2 = inlined_call_operand.hbm [shape: f32[1,512], index: 2, kind: input, shape index: {}]
  %s3 = inlined_call_operand.hbm [shape: bf16[512,512], index: 3, kind: input, shape index: {}]
  %s4 = inlined_call_operand.vmem [shape: f32[1,512], index: 4, kind: input, shape index: {}]
  %s5 = inlined_call_operand.hbm [shape: bf16[512,512], index: 5, kind: input, shape index: {}]
  %s6 = inlined_call_operand.vmem [shape: f32[1,512], index: 6, kind: input, shape index: {}]
  %s7 = inlined_call_operand.vmem [shape: f32[2], index: 7, kind: input, shape index: {}]
  %s8 = inlined_call_operand.hbm [shape: f32[2,512], index: 8, kind: output, shape index: {}]
  %s9 = sld [smem:[#allocation0]]
  $region66: #{tpu_custom_call.1} parent=0
    _
  %s11 = ssub.s32 1, %s9
  %s12 = scalar_select 0, %s11, %s9
  $region1: #{tpu_custom_call.1} parent=0
    #allocation2 [shape = 'u8[8192]{0}', space=vmem, size = 0x2000, scoped, tag = 'input window, operand 0, single buffered']
    #allocation3 [shape = 's32[1]{0}', space=sflag, size = 0x4, scoped, tag = 'scoped memory for tpu_custom_call.1']
    #allocation4 [shape = 's32[1]{0}', space=sflag, size = 0x4, scoped, tag = 'scoped memory for tpu_custom_call.1']
    #allocation5 [shape = 's32[1]{0}', space=sflag, size = 0x4, scoped, tag = 'scoped memory for tpu_custom_call.1']
    #allocation6 [shape = 'u8[1048576]{0}', space=vmem, size = 0x100000, scoped, tag = 'input window, operand 1, single buffered']
    #allocation7 [shape = 's32[1]{0}', space=sflag, size = 0x4, scoped, tag = 'scoped memory for tpu_custom_call.1']
    #allocation8 [shape = 'u8[2048]{0}', space=vmem, size = 0x800, scoped, tag = 'input window, operand 2, single buffered']
    #allocation9 [shape = 'u8[524288]{0}', space=vmem, size = 0x80000, scoped, tag = 'input window, operand 3, single buffered']
    #allocation10 [shape = 's32[1]{0}', space=sflag, size = 0x4, scoped, tag = 'scoped memory for tpu_custom_call.1']
    #allocation11 [shape = 'u8[524288]{0}', space=vmem, size = 0x80000, scoped, tag = 'input window, operand 5, single buffered']
    #allocation12 [shape = 'u8[512]{0}', space=smem, size = 0x200, scoped, tag = 'input window, operand 7, single buffered']
    #allocation13 [shape = 'u8[4096]{0}', space=vmem, size = 0x1000, scoped, tag = 'output window, operand 0, single buffered']
    %13 = vsyncpa [#allocation3], 0
    %14 = vsyncpa [#allocation7], 0
    %15 = vsyncpa [#allocation10], 0
    %16 = vsyncpa [#allocation5], 0
    %17 = vsyncpa [#allocation4], 0
    // Predicated region
    $region2: #{tpu_custom_call.1} parent=1 // pred_check
      _
    $region3: #{tpu_custom_call.1} parent=1 // pred_check_branch
      %19 = sbr.rel (0) target = $region5
    $region4: #{tpu_custom_call.1} parent=1 // pred_region
      %s21 = ssub.s32 256, 256
      %22 = vsyncadd [#allocation3], %s21
      %s24 = sshll.u32 [#allocation2], 4
      %s25 = int_to_ptr.vmem [resolvable:$true] %s24
      %27 = dma.hbm_to_vmem [thread:$0]  %s0, 256, %s25, [#allocation3]
    $region5: #{tpu_custom_call.1} parent=1 // pred_fallthru
      _
    // Predicated region
    $region6: #{tpu_custom_call.1} parent=1 // pred_check
      _
    $region7: #{tpu_custom_call.1} parent=1 // pred_check_branch
      %29 = sbr.rel (0) target = $region9
    $region8: #{tpu_custom_call.1} parent=1 // pred_region
      %s31 = ssub.s32 32768, 32768
      %32 = vsyncadd [#allocation7], %s31
      %s33 = sshll.u32 [#allocation6], 4
      %s34 = int_to_ptr.vmem [resolvable:$true] %s33
      %39 = dma.hbm_to_vmem [thread:$0]  %s1, 32768, %s34, [#allocation7], 256, 256, 16
    $region9: #{tpu_custom_call.1} parent=1 // pred_fallthru
      _
    // Predicated region
    $region10: #{tpu_custom_call.1} parent=1 // pred_check
      _
    $region11: #{tpu_custom_call.1} parent=1 // pred_check_branch
      %41 = sbr.rel (0) target = $region13
    $region12: #{tpu_custom_call.1} parent=1 // pred_region
      %s43 = ssub.s32 64, 64
      %44 = vsyncadd [#allocation7], %s43
      %s46 = sshll.u32 [#allocation8], 4
      %s47 = int_to_ptr.vmem [resolvable:$true] %s46
      %49 = dma.hbm_to_vmem [thread:$0]  %s2, 64, %s47, [#allocation7]
    $region13: #{tpu_custom_call.1} parent=1 // pred_fallthru
      _
    // Predicated region
    $region14: #{tpu_custom_call.1} parent=1 // pred_check
      _
    $region15: #{tpu_custom_call.1} parent=1 // pred_check_branch
      %51 = sbr.rel (0) target = $region17
    $region16: #{tpu_custom_call.1} parent=1 // pred_region
      %s53 = ssub.s32 16384, 16384
      %54 = vsyncadd [#allocation10], %s53
      %s55 = sshll.u32 [#allocation9], 4
      %s56 = int_to_ptr.vmem [resolvable:$true] %s55
      %61 = dma.hbm_to_vmem [thread:$0]  %s3, 16384, %s56, [#allocation10], 256, 256, 16
    $region17: #{tpu_custom_call.1} parent=1 // pred_fallthru
      _
    // Predicated region
    $region18: #{tpu_custom_call.1} parent=1 // pred_check
      _
    $region19: #{tpu_custom_call.1} parent=1 // pred_check_branch
      %63 = sbr.rel (0) target = $region21
    $region20: #{tpu_custom_call.1} parent=1 // pred_region
      _
    $region21: #{tpu_custom_call.1} parent=1 // pred_fallthru
      _
    // Predicated region
    $region22: #{tpu_custom_call.1} parent=1 // pred_check
      _
    $region23: #{tpu_custom_call.1} parent=1 // pred_check_branch
      %65 = sbr.rel (0) target = $region25
    $region24: #{tpu_custom_call.1} parent=1 // pred_region
      %s67 = ssub.s32 16384, 16384
      %68 = vsyncadd [#allocation10], %s67
      %s69 = sshll.u32 [#allocation11], 4
      %s70 = int_to_ptr.vmem [resolvable:$true] %s69
      %75 = dma.hbm_to_vmem [thread:$0]  %s5, 16384, %s70, [#allocation10], 256, 256, 16
    $region25: #{tpu_custom_call.1} parent=1 // pred_fallthru
      _
    // Predicated region
    $region26: #{tpu_custom_call.1} parent=1 // pred_check
      _
    $region27: #{tpu_custom_call.1} parent=1 // pred_check_branch
      %77 = sbr.rel (0) target = $region29
    $region28: #{tpu_custom_call.1} parent=1 // pred_region
      _
    $region29: #{tpu_custom_call.1} parent=1 // pred_fallthru
      _
    // Predicated region
    $region30: #{tpu_custom_call.1} parent=1 // pred_check
      _
    $region31: #{tpu_custom_call.1} parent=1 // pred_check_branch
      %79 = sbr.rel (0) target = $region33
    $region32: #{tpu_custom_call.1} parent=1 // pred_region
      %s81 = ssub.s32 16, 16
      %82 = vsyncadd [#allocation5], %s81
      %s84 = sshll.u32 %s7, 4
      %s85 = int_to_ptr.vmem [resolvable:$true] %s84
      %87 = dma.vmem_to_smem %s85, 16, [#allocation12], [#allocation5]
    $region33: #{tpu_custom_call.1} parent=1 // pred_fallthru
      _
    // Predicated region
    $region34: #{tpu_custom_call.1} parent=1 // pred_check
      _
    $region35: #{tpu_custom_call.1} parent=1 // pred_check_branch
      %89 = sbr.rel (0) target = $region37
    $region36: #{tpu_custom_call.1} parent=1 // pred_region
      %90 = dma.done [#allocation3], 256
    $region37: #{tpu_custom_call.1} parent=1 // pred_fallthru
      _
    // Predicated region
    $region38: #{tpu_custom_call.1} parent=1 // pred_check
      _
    $region39: #{tpu_custom_call.1} parent=1 // pred_check_branch
      %92 = sbr.rel (0) target = $region41
    $region40: #{tpu_custom_call.1} parent=1 // pred_region
      %93 = dma.done [#allocation7], 32768
    $region41: #{tpu_custom_call.1} parent=1 // pred_fallthru
      _
    // Predicated region
    $region42: #{tpu_custom_call.1} parent=1 // pred_check
      _
    $region43: #{tpu_custom_call.1} parent=1 // pred_check_branch
      %95 = sbr.rel (0) target = $region45
    $region44: #{tpu_custom_call.1} parent=1 // pred_region
      %96 = dma.done [#allocation7], 64
    $region45: #{tpu_custom_call.1} parent=1 // pred_fallthru
      _
    // Predicated region
    $region46: #{tpu_custom_call.1} parent=1 // pred_check
      _
    $region47: #{tpu_custom_call.1} parent=1 // pred_check_branch
      %98 = sbr.rel (0) target = $region49
    $region48: #{tpu_custom_call.1} parent=1 // pred_region
      %99 = dma.done [#allocation10], 16384
    $region49: #{tpu_custom_call.1} parent=1 // pred_fallthru
      _
    // Predicated region
    $region50: #{tpu_custom_call.1} parent=1 // pred_check
      _
    $region51: #{tpu_custom_call.1} parent=1 // pred_check_branch
      %101 = sbr.rel (0) target = $region53
    $region52: #{tpu_custom_call.1} parent=1 // pred_region
      %102 = dma.done [#allocation10], 16384
    $region53: #{tpu_custom_call.1} parent=1 // pred_fallthru
      _
    // Predicated region
    $region54: #{tpu_custom_call.1} parent=1 // pred_check
      _
    $region55: #{tpu_custom_call.1} parent=1 // pred_check_branch
      %104 = sbr.rel (0) target = $region57
    $region56: #{tpu_custom_call.1} parent=1 // pred_region
      %105 = dma.done [#allocation5], 16
    $region57: #{tpu_custom_call.1} parent=1 // pred_fallthru
      _
    %106 = sfence
    %v107 = vld [vmem:[#allocation2] sm:$0xff]
    %v108 = vld [vmem:[#allocation2 + $0x8] sm:$0xff]
    %v111 = vcombine.high %v107, %v107
    %v113 = vunpack.c.l.s4 1983009808
    %v114 = vunpack.c.0.s8 %v113
    %v115 = vlaneseq
    %v116 = vshrl.u32 %v115, 7
    %v117 = vsub.s32 %v114, %v116
    %v118 = vrot.slane %v107, %v117
    %v120 = vunpack.c.l.s4 1983009808
    %v121 = vunpack.c.0.s8 %v120
    %v122 = vlaneseq
    %v123 = vshrl.u32 %v122, 7
    %v124 = vsub.s32 %v121, %v123
    %v125 = vrot.slane %v111, %v124
    %v126 = vcombine.high %v118, %v118
    %v127 = vcombine.high %v125, %v125
    %v128 = vcombine.high %v108, %v108
    %v130 = vunpack.c.l.s4 1983009808
    %v131 = vunpack.c.0.s8 %v130
    %v132 = vlaneseq
    %v133 = vshrl.u32 %v132, 7
    %v134 = vsub.s32 %v131, %v133
    %v135 = vrot.slane %v108, %v134
    %v137 = vunpack.c.l.s4 1983009808
    %v138 = vunpack.c.0.s8 %v137
    %v139 = vlaneseq
    %v140 = vshrl.u32 %v139, 7
    %v141 = vsub.s32 %v138, %v140
    %v142 = vrot.slane %v128, %v141
    %v143 = vcombine.high %v135, %v135
    %v144 = vcombine.high %v142, %v142
    %v153 = vpack.c.bf16 %v118, %v118
    %v154 = vpack.c.bf16 %v126, %v126
    %v155 = vpack.c.bf16 %v125, %v125
    %v156 = vpack.c.bf16 %v127, %v127
    %v157 = vpack.c.bf16 %v135, %v135
    %v158 = vpack.c.bf16 %v143, %v143
    %v159 = vpack.c.bf16 %v142, %v142
    %v160 = vpack.c.bf16 %v144, %v144
    %v161 = vld [vmem:[#allocation6] sm:$0xff]
    %v162 = vld [vmem:[#allocation6 + $0x8] sm:$0xff]
    %v163 = vld [vmem:[#allocation6 + $0x10] sm:$0xff]
    %v164 = vld [vmem:[#allocation6 + $0x18] sm:$0xff]
    %v165 = vld [vmem:[#allocation6 + $0x20] sm:$0xff]
    %v166 = vld [vmem:[#allocation6 + $0x28] sm:$0xff]
    %v167 = vld [vmem:[#allocation6 + $0x30] sm:$0xff]
    %v168 = vld [vmem:[#allocation6 + $0x38] sm:$0xff]
    %v169 = vld [vmem:[#allocation6 + $0x40] sm:$0xff]
    %v170 = vld [vmem:[#allocation6 + $0x48] sm:$0xff]
    %v171 = vld [vmem:[#allocation6 + $0x50] sm:$0xff]
    %v172 = vld [vmem:[#allocation6 + $0x58] sm:$0xff]
    %v173 = vld [vmem:[#allocation6 + $0x60] sm:$0xff]
    %v174 = vld [vmem:[#allocation6 + $0x68] sm:$0xff]
    %v175 = vld [vmem:[#allocation6 + $0x70] sm:$0xff]
    %v176 = vld [vmem:[#allocation6 + $0x78] sm:$0xff]
    %v177 = vld [vmem:[#allocation6 + $0x80] sm:$0xff]
    %v178 = vld [vmem:[#allocation6 + $0x88] sm:$0xff]
    %v179 = vld [vmem:[#allocation6 + $0x90] sm:$0xff]
    %v180 = vld [vmem:[#allocation6 + $0x98] sm:$0xff]
    %v181 = vld [vmem:[#allocation6 + $0xa0] sm:$0xff]
    %v182 = vld [vmem:[#allocation6 + $0xa8] sm:$0xff]
    %v183 = vld [vmem:[#allocation6 + $0xb0] sm:$0xff]
    %v184 = vld [vmem:[#allocation6 + $0xb8] sm:$0xff]
    %v185 = vld [vmem:[#allocation6 + $0xc0] sm:$0xff]
    %v186 = vld [vmem:[#allocation6 + $0xc8] sm:$0xff]
    %v187 = vld [vmem:[#allocation6 + $0xd0] sm:$0xff]
    %v188 = vld [vmem:[#allocation6 + $0xd8] sm:$0xff]
    %v189 = vld [vmem:[#allocation6 + $0xe0] sm:$0xff]
    %v190 = vld [vmem:[#allocation6 + $0xe8] sm:$0xff]
    %v191 = vld [vmem:[#allocation6 + $0xf0] sm:$0xff]
    %v192 = vld [vmem:[#allocation6 + $0xf8] sm:$0xff]
    %v193 = vld [vmem:[#allocation6 + $0x100] sm:$0xff]
    %v194 = vld [vmem:[#allocation6 + $0x108] sm:$0xff]
    %v195 = vld [vmem:[#allocation6 + $0x110] sm:$0xff]
    %v196 = vld [vmem:[#allocation6 + $0x118] sm:$0xff]
    %v197 = vld [vmem:[#allocation6 + $0x120] sm:$0xff]
    %v198 = vld [vmem:[#allocation6 + $0x128] sm:$0xff]
    %v199 = vld [vmem:[#allocation6 + $0x130] sm:$0xff]
    %v200 = vld [vmem:[#allocation6 + $0x138] sm:$0xff]
    %v201 = vld [vmem:[#allocation6 + $0x140] sm:$0xff]
    %v202 = vld [vmem:[#allocation6 + $0x148] sm:$0xff]
    %v203 = vld [vmem:[#allocation6 + $0x150] sm:$0xff]
    %v204 = vld [vmem:[#allocation6 + $0x158] sm:$0xff]
    %v205 = vld [vmem:[#allocation6 + $0x160] sm:$0xff]
    %v206 = vld [vmem:[#allocation6 + $0x168] sm:$0xff]
    %v207 = vld [vmem:[#allocation6 + $0x170] sm:$0xff]
    %v208 = vld [vmem:[#allocation6 + $0x178] sm:$0xff]
    %v209 = vld [vmem:[#allocation6 + $0x180] sm:$0xff]
    %v210 = vld [vmem:[#allocation6 + $0x188] sm:$0xff]
    %v211 = vld [vmem:[#allocation6 + $0x190] sm:$0xff]
    %v212 = vld [vmem:[#allocation6 + $0x198] sm:$0xff]
    %v213 = vld [vmem:[#allocation6 + $0x1a0] sm:$0xff]
    %v214 = vld [vmem:[#allocation6 + $0x1a8] sm:$0xff]
    %v215 = vld [vmem:[#allocation6 + $0x1b0] sm:$0xff]
    %v216 = vld [vmem:[#allocation6 + $0x1b8] sm:$0xff]
    %v217 = vld [vmem:[#allocation6 + $0x1c0] sm:$0xff]
    %v218 = vld [vmem:[#allocation6 + $0x1c8] sm:$0xff]
    %v219 = vld [vmem:[#allocation6 + $0x1d0] sm:$0xff]
    %v220 = vld [vmem:[#allocation6 + $0x1d8] sm:$0xff]
    %v221 = vld [vmem:[#allocation6 + $0x1e0] sm:$0xff]
    %v222 = vld [vmem:[#allocation6 + $0x1e8] sm:$0xff]
    %v223 = vld [vmem:[#allocation6 + $0x1f0] sm:$0xff]
    %v224 = vld [vmem:[#allocation6 + $0x1f8] sm:$0xff]
    %v225 = vld [vmem:[#allocation6 + $0x200] sm:$0xff]
    %v226 = vld [vmem:[#allocation6 + $0x208] sm:$0xff]
    %v227 = vld [vmem:[#allocation6 + $0x210] sm:$0xff]
    %v228 = vld [vmem:[#allocation6 + $0x218] sm:$0xff]
    %v229 = vld [vmem:[#allocation6 + $0x220] sm:$0xff]
    %v230 = vld [vmem:[#allocation6 + $0x228] sm:$0xff]
    %v231 = vld [vmem:[#allocation6 + $0x230] sm:$0xff]
    %v232 = vld [vmem:[#allocation6 + $0x238] sm:$0xff]
    %v233 = vld [vmem:[#allocation6 + $0x240] sm:$0xff]
    %v234 = vld [vmem:[#allocation6 + $0x248] sm:$0xff]
    %v235 = vld [vmem:[#allocation6 + $0x250] sm:$0xff]
    %v236 = vld [vmem:[#allocation6 + $0x258] sm:$0xff]
    %v237 = vld [vmem:[#allocation6 + $0x260] sm:$0xff]
    %v238 = vld [vmem:[#allocation6 + $0x268] sm:$0xff]
    %v239 = vld [vmem:[#allocation6 + $0x270] sm:$0xff]
    %v240 = vld [vmem:[#allocation6 + $0x278] sm:$0xff]
    %v241 = vld [vmem:[#allocation6 + $0x280] sm:$0xff]
    %v242 = vld [vmem:[#allocation6 + $0x288] sm:$0xff]
    %v243 = vld [vmem:[#allocation6 + $0x290] sm:$0xff]
    %v244 = vld [vmem:[#allocation6 + $0x298] sm:$0xff]
    %v245 = vld [vmem:[#allocation6 + $0x2a0] sm:$0xff]
    %v246 = vld [vmem:[#allocation6 + $0x2a8] sm:$0xff]
    %v247 = vld [vmem:[#allocation6 + $0x2b0] sm:$0xff]
    %v248 = vld [vmem:[#allocation6 + $0x2b8] sm:$0xff]
    %v249 = vld [vmem:[#allocation6 + $0x2c0] sm:$0xff]
    %v250 = vld [vmem:[#allocation6 + $0x2c8] sm:$0xff]
    %v251 = vld [vmem:[#allocation6 + $0x2d0] sm:$0xff]
    %v252 = vld [vmem:[#allocation6 + $0x2d8] sm:$0xff]
    %v253 = vld [vmem:[#allocation6 + $0x2e0] sm:$0xff]
    %v254 = vld [vmem:[#allocation6 + $0x2e8] sm:$0xff]
    %v255 = vld [vmem:[#allocation6 + $0x2f0] sm:$0xff]
    %v256 = vld [vmem:[#allocation6 + $0x2f8] sm:$0xff]
    %v257 = vld [vmem:[#allocation6 + $0x300] sm:$0xff]
    %v258 = vld [vmem:[#allocation6 + $0x308] sm:$0xff]
    %v259 = vld [vmem:[#allocation6 + $0x310] sm:$0xff]
    %v260 = vld [vmem:[#allocation6 + $0x318] sm:$0xff]
    %v261 = vld [vmem:[#allocation6 + $0x320] sm:$0xff]
    %v262 = vld [vmem:[#allocation6 + $0x328] sm:$0xff]
    %v263 = vld [vmem:[#allocation6 + $0x330] sm:$0xff]
    %v264 = vld [vmem:[#allocation6 + $0x338] sm:$0xff]
    %v265 = vld [vmem:[#allocation6 + $0x340] sm:$0xff]
    %v266 = vld [vmem:[#allocation6 + $0x348] sm:$0xff]
    %v267 = vld [vmem:[#allocation6 + $0x350] sm:$0xff]
    %v268 = vld [vmem:[#allocation6 + $0x358] sm:$0xff]
    %v269 = vld [vmem:[#allocation6 + $0x360] sm:$0xff]
    %v270 = vld [vmem:[#allocation6 + $0x368] sm:$0xff]
    %v271 = vld [vmem:[#allocation6 + $0x370] sm:$0xff]
    %v272 = vld [vmem:[#allocation6 + $0x378] sm:$0xff]
    %v273 = vld [vmem:[#allocation6 + $0x380] sm:$0xff]
    %v274 = vld [vmem:[#allocation6 + $0x388] sm:$0xff]
    %v275 = vld [vmem:[#allocation6 + $0x390] sm:$0xff]
    %v276 = vld [vmem:[#allocation6 + $0x398] sm:$0xff]
    %v277 = vld [vmem:[#allocation6 + $0x3a0] sm:$0xff]
    %v278 = vld [vmem:[#allocation6 + $0x3a8] sm:$0xff]
    %v279 = vld [vmem:[#allocation6 + $0x3b0] sm:$0xff]
    %v280 = vld [vmem:[#allocation6 + $0x3b8] sm:$0xff]
    %v281 = vld [vmem:[#allocation6 + $0x3c0] sm:$0xff]
    %v282 = vld [vmem:[#allocation6 + $0x3c8] sm:$0xff]
    %v283 = vld [vmem:[#allocation6 + $0x3d0] sm:$0xff]
    %v284 = vld [vmem:[#allocation6 + $0x3d8] sm:$0xff]
    %v285 = vld [vmem:[#allocation6 + $0x3e0] sm:$0xff]
    %v286 = vld [vmem:[#allocation6 + $0x3e8] sm:$0xff]
    %v287 = vld [vmem:[#allocation6 + $0x3f0] sm:$0xff]
    %v288 = vld [vmem:[#allocation6 + $0x3f8] sm:$0xff]
    %v289 = vld [vmem:[#allocation6 + $0x400] sm:$0xff]
    %v290 = vld [vmem:[#allocation6 + $0x408] sm:$0xff]
    %v291 = vld [vmem:[#allocation6 + $0x410] sm:$0xff]
    %v292 = vld [vmem:[#allocation6 + $0x418] sm:$0xff]
    %v293 = vld [vmem:[#allocation6 + $0x420] sm:$0xff]
    %v294 = vld [vmem:[#allocation6 + $0x428] sm:$0xff]
    %v295 = vld [vmem:[#allocation6 + $0x430] sm:$0xff]
    %v296 = vld [vmem:[#allocation6 + $0x438] sm:$0xff]
    %v297 = vld [vmem:[#allocation6 + $0x440] sm:$0xff]
    %v298 = vld [vmem:[#allocation6 + $0x448] sm:$0xff]
    %v299 = vld [vmem:[#allocation6 + $0x450] sm:$0xff]
    %v300 = vld [vmem:[#allocation6 + $0x458] sm:$0xff]
    %v301 = vld [vmem:[#allocation6 + $0x460] sm:$0xff]
    %v302 = vld [vmem:[#allocation6 + $0x468] sm:$0xff]
    %v303 = vld [vmem:[#allocation6 + $0x470] sm:$0xff]
    %v304 = vld [vmem:[#allocation6 + $0x478] sm:$0xff]
    %v305 = vld [vmem:[#allocation6 + $0x480] sm:$0xff]
    %v306 = vld [vmem:[#allocation6 + $0x488] sm:$0xff]
    %v307 = vld [vmem:[#allocation6 + $0x490] sm:$0xff]
    %v308 = vld [vmem:[#allocation6 + $0x498] sm:$0xff]
    %v309 = vld [vmem:[#allocation6 + $0x4a0] sm:$0xff]
    %v310 = vld [vmem:[#allocation6 + $0x4a8] sm:$0xff]
    %v311 = vld [vmem:[#allocation6 + $0x4b0] sm:$0xff]
    %v312 = vld [vmem:[#allocation6 + $0x4b8] sm:$0xff]
    %v313 = vld [vmem:[#allocation6 + $0x4c0] sm:$0xff]
    %v314 = vld [vmem:[#allocation6 + $0x4c8] sm:$0xff]
    %v315 = vld [vmem:[#allocation6 + $0x4d0] sm:$0xff]
    %v316 = vld [vmem:[#allocation6 + $0x4d8] sm:$0xff]
    %v317 = vld [vmem:[#allocation6 + $0x4e0] sm:$0xff]
    %v318 = vld [vmem:[#allocation6 + $0x4e8] sm:$0xff]
    %v319 = vld [vmem:[#allocation6 + $0x4f0] sm:$0xff]
    %v320 = vld [vmem:[#allocation6 + $0x4f8] sm:$0xff]
    %v321 = vld [vmem:[#allocation6 + $0x500] sm:$0xff]
    %v322 = vld [vmem:[#allocation6 + $0x508] sm:$0xff]
    %v323 = vld [vmem:[#allocation6 + $0x510] sm:$0xff]
    %v324 = vld [vmem:[#allocation6 + $0x518] sm:$0xff]
    %v325 = vld [vmem:[#allocation6 + $0x520] sm:$0xff]
    %v326 = vld [vmem:[#allocation6 + $0x528] sm:$0xff]
    %v327 = vld [vmem:[#allocation6 + $0x530] sm:$0xff]
    %v328 = vld [vmem:[#allocation6 + $0x538] sm:$0xff]
    %v329 = vld [vmem:[#allocation6 + $0x540] sm:$0xff]
    %v330 = vld [vmem:[#allocation6 + $0x548] sm:$0xff]
    %v331 = vld [vmem:[#allocation6 + $0x550] sm:$0xff]
    %v332 = vld [vmem:[#allocation6 + $0x558] sm:$0xff]
    %v333 = vld [vmem:[#allocation6 + $0x560] sm:$0xff]
    %v334 = vld [vmem:[#allocation6 + $0x568] sm:$0xff]
    %v335 = vld [vmem:[#allocation6 + $0x570] sm:$0xff]
    %v336 = vld [vmem:[#allocation6 + $0x578] sm:$0xff]
    %v337 = vld [vmem:[#allocation6 + $0x580] sm:$0xff]
    %v338 = vld [vmem:[#allocation6 + $0x588] sm:$0xff]
    %v339 = vld [vmem:[#allocation6 + $0x590] sm:$0xff]
    %v340 = vld [vmem:[#allocation6 + $0x598] sm:$0xff]
    %v341 = vld [vmem:[#allocation6 + $0x5a0] sm:$0xff]
    %v342 = vld [vmem:[#allocation6 + $0x5a8] sm:$0xff]
    %v343 = vld [vmem:[#allocation6 + $0x5b0] sm:$0xff]
    %v344 = vld [vmem:[#allocation6 + $0x5b8] sm:$0xff]
    %v345 = vld [vmem:[#allocation6 + $0x5c0] sm:$0xff]
    %v346 = vld [vmem:[#allocation6 + $0x5c8] sm:$0xff]
    %v347 = vld [vmem:[#allocation6 + $0x5d0] sm:$0xff]
    %v348 = vld [vmem:[#allocation6 + $0x5d8] sm:$0xff]
    %v349 = vld [vmem:[#allocation6 + $0x5e0] sm:$0xff]
    %v350 = vld [vmem:[#allocation6 + $0x5e8] sm:$0xff]
    %v351 = vld [vmem:[#allocation6 + $0x5f0] sm:$0xff]
    %v352 = vld [vmem:[#allocation6 + $0x5f8] sm:$0xff]
    %v353 = vld [vmem:[#allocation6 + $0x600] sm:$0xff]
    %v354 = vld [vmem:[#allocation6 + $0x608] sm:$0xff]
    %v355 = vld [vmem:[#allocation6 + $0x610] sm:$0xff]
    %v356 = vld [vmem:[#allocation6 + $0x618] sm:$0xff]
    %v357 = vld [vmem:[#allocation6 + $0x620] sm:$0xff]
    %v358 = vld [vmem:[#allocation6 + $0x628] sm:$0xff]
    %v359 = vld [vmem:[#allocation6 + $0x630] sm:$0xff]
    %v360 = vld [vmem:[#allocation6 + $0x638] sm:$0xff]
    %v361 = vld [vmem:[#allocation6 + $0x640] sm:$0xff]
    %v362 = vld [vmem:[#allocation6 + $0x648] sm:$0xff]
    %v363 = vld [vmem:[#allocation6 + $0x650] sm:$0xff]
    %v364 = vld [vmem:[#allocation6 + $0x658] sm:$0xff]
    %v365 = vld [vmem:[#allocation6 + $0x660] sm:$0xff]
    %v366 = vld [vmem:[#allocation6 + $0x668] sm:$0xff]
    %v367 = vld [vmem:[#allocation6 + $0x670] sm:$0xff]
    %v368 = vld [vmem:[#allocation6 + $0x678] sm:$0xff]
    %v369 = vld [vmem:[#allocation6 + $0x680] sm:$0xff]
    %v370 = vld [vmem:[#allocation6 + $0x688] sm:$0xff]
    %v371 = vld [vmem:[#allocation6 + $0x690] sm:$0xff]
    %v372 = vld [vmem:[#allocation6 + $0x698] sm:$0xff]
    %v373 = vld [vmem:[#allocation6 + $0x6a0] sm:$0xff]
    %v374 = vld [vmem:[#allocation6 + $0x6a8] sm:$0xff]
    %v375 = vld [vmem:[#allocation6 + $0x6b0] sm:$0xff]
    %v376 = vld [vmem:[#allocation6 + $0x6b8] sm:$0xff]
    %v377 = vld [vmem:[#allocation6 + $0x6c0] sm:$0xff]
    %v378 = vld [vmem:[#allocation6 + $0x6c8] sm:$0xff]
    %v379 = vld [vmem:[#allocation6 + $0x6d0] sm:$0xff]
    %v380 = vld [vmem:[#allocation6 + $0x6d8] sm:$0xff]
    %v381 = vld [vmem:[#allocation6 + $0x6e0] sm:$0xff]
    %v382 = vld [vmem:[#allocation6 + $0x6e8] sm:$0xff]
    %v383 = vld [vmem:[#allocation6 + $0x6f0] sm:$0xff]
    %v384 = vld [vmem:[#allocation6 + $0x6f8] sm:$0xff]
    %v385 = vld [vmem:[#allocation6 + $0x700] sm:$0xff]
    %v386 = vld [vmem:[#allocation6 + $0x708] sm:$0xff]
    %v387 = vld [vmem:[#allocation6 + $0x710] sm:$0xff]
    %v388 = vld [vmem:[#allocation6 + $0x718] sm:$0xff]
    %v389 = vld [vmem:[#allocation6 + $0x720] sm:$0xff]
    %v390 = vld [vmem:[#allocation6 + $0x728] sm:$0xff]
    %v391 = vld [vmem:[#allocation6 + $0x730] sm:$0xff]
    %v392 = vld [vmem:[#allocation6 + $0x738] sm:$0xff]
    %v393 = vld [vmem:[#allocation6 + $0x740] sm:$0xff]
    %v394 = vld [vmem:[#allocation6 + $0x748] sm:$0xff]
    %v395 = vld [vmem:[#allocation6 + $0x750] sm:$0xff]
    %v396 = vld [vmem:[#allocation6 + $0x758] sm:$0xff]
    %v397 = vld [vmem:[#allocation6 + $0x760] sm:$0xff]
    %v398 = vld [vmem:[#allocation6 + $0x768] sm:$0xff]
    %v399 = vld [vmem:[#allocation6 + $0x770] sm:$0xff]
    %v400 = vld [vmem:[#allocation6 + $0x778] sm:$0xff]
    %v401 = vld [vmem:[#allocation6 + $0x780] sm:$0xff]
    %v402 = vld [vmem:[#allocation6 + $0x788] sm:$0xff]
    %v403 = vld [vmem:[#allocation6 + $0x790] sm:$0xff]
    %v404 = vld [vmem:[#allocation6 + $0x798] sm:$0xff]
    %v405 = vld [vmem:[#allocation6 + $0x7a0] sm:$0xff]
    %v406 = vld [vmem:[#allocation6 + $0x7a8] sm:$0xff]
    %v407 = vld [vmem:[#allocation6 + $0x7b0] sm:$0xff]
    %v408 = vld [vmem:[#allocation6 + $0x7b8] sm:$0xff]
    %v409 = vld [vmem:[#allocation6 + $0x7c0] sm:$0xff]
    %v410 = vld [vmem:[#allocation6 + $0x7c8] sm:$0xff]
    %v411 = vld [vmem:[#allocation6 + $0x7d0] sm:$0xff]
    %v412 = vld [vmem:[#allocation6 + $0x7d8] sm:$0xff]
    %v413 = vld [vmem:[#allocation6 + $0x7e0] sm:$0xff]
    %v414 = vld [vmem:[#allocation6 + $0x7e8] sm:$0xff]
    %v415 = vld [vmem:[#allocation6 + $0x7f0] sm:$0xff]
    %v416 = vld [vmem:[#allocation6 + $0x7f8] sm:$0xff]
    %v417 = vld [vmem:[#allocation8] sm:$0xf]
    %v419 = vlaneseq
    %v420 = vshrl.u32 %v419, 7
    %v421 = vsub.s32 0, %v420
    %v422 = vrot.slane %v417, %v421
    %v423 = vlaneseq
    %v424 = vshrl.u32 %v423, 7
    %v425 = vsub.s32 1, %v424
    %v426 = vrot.slane %v417, %v425
    %v427 = vlaneseq
    %v428 = vshrl.u32 %v427, 7
    %v429 = vsub.s32 2, %v428
    %v430 = vrot.slane %v417, %v429
    %v431 = vlaneseq
    %v432 = vshrl.u32 %v431, 7
    %v433 = vsub.s32 3, %v432
    %v434 = vrot.slane %v417, %v433
    %v695 = vunpack.c.l.b16 %v161
    %v696 = vunpack.c.h.b16 %v161
    %v697 = vunpack.c.l.b16 %v162
    %v698 = vunpack.c.h.b16 %v162
    %v699 = vunpack.c.l.b16 %v163
    %v700 = vunpack.c.h.b16 %v163
    %v701 = vunpack.c.l.b16 %v164
    %v702 = vunpack.c.h.b16 %v164
    %v703 = vunpack.c.l.b16 %v165
    %v704 = vunpack.c.h.b16 %v165
    %v705 = vunpack.c.l.b16 %v166
    %v706 = vunpack.c.h.b16 %v166
    %v707 = vunpack.c.l.b16 %v167
    %v708 = vunpack.c.h.b16 %v167
    %v709 = vunpack.c.l.b16 %v168
    %v710 = vunpack.c.h.b16 %v168
    %v711 = vunpack.c.l.b16 %v169
    %v712 = vunpack.c.h.b16 %v169
    %v713 = vunpack.c.l.b16 %v170
    %v714 = vunpack.c.h.b16 %v170
    %v715 = vunpack.c.l.b16 %v171
    %v716 = vunpack.c.h.b16 %v171
    %v717 = vunpack.c.l.b16 %v172
    %v718 = vunpack.c.h.b16 %v172
    %v719 = vunpack.c.l.b16 %v173
    %v720 = vunpack.c.h.b16 %v173
    %v721 = vunpack.c.l.b16 %v174
    %v722 = vunpack.c.h.b16 %v174
    %v723 = vunpack.c.l.b16 %v175
    %v724 = vunpack.c.h.b16 %v175
    %v725 = vunpack.c.l.b16 %v176
    %v726 = vunpack.c.h.b16 %v176
    %v727 = vunpack.c.l.b16 %v177
    %v728 = vunpack.c.h.b16 %v177
    %v729 = vunpack.c.l.b16 %v178
    %v730 = vunpack.c.h.b16 %v178
    %v731 = vunpack.c.l.b16 %v179
    %v732 = vunpack.c.h.b16 %v179
    %v733 = vunpack.c.l.b16 %v180
    %v734 = vunpack.c.h.b16 %v180
    %v735 = vunpack.c.l.b16 %v181
    %v736 = vunpack.c.h.b16 %v181
    %v737 = vunpack.c.l.b16 %v182
    %v738 = vunpack.c.h.b16 %v182
    %v739 = vunpack.c.l.b16 %v183
    %v740 = vunpack.c.h.b16 %v183
    %v741 = vunpack.c.l.b16 %v184
    %v742 = vunpack.c.h.b16 %v184
    %v743 = vunpack.c.l.b16 %v185
    %v744 = vunpack.c.h.b16 %v185
    %v745 = vunpack.c.l.b16 %v186
    %v746 = vunpack.c.h.b16 %v186
    %v747 = vunpack.c.l.b16 %v187
    %v748 = vunpack.c.h.b16 %v187
    %v749 = vunpack.c.l.b16 %v188
    %v750 = vunpack.c.h.b16 %v188
    %v751 = vunpack.c.l.b16 %v189
    %v752 = vunpack.c.h.b16 %v189
    %v753 = vunpack.c.l.b16 %v190
    %v754 = vunpack.c.h.b16 %v190
    %v755 = vunpack.c.l.b16 %v191
    %v756 = vunpack.c.h.b16 %v191
    %v757 = vunpack.c.l.b16 %v192
    %v758 = vunpack.c.h.b16 %v192
    %v759 = vunpack.c.l.b16 %v193
    %v760 = vunpack.c.h.b16 %v193
    %v761 = vunpack.c.l.b16 %v194
    %v762 = vunpack.c.h.b16 %v194
    %v763 = vunpack.c.l.b16 %v195
    %v764 = vunpack.c.h.b16 %v195
    %v765 = vunpack.c.l.b16 %v196
    %v766 = vunpack.c.h.b16 %v196
    %v767 = vunpack.c.l.b16 %v197
    %v768 = vunpack.c.h.b16 %v197
    %v769 = vunpack.c.l.b16 %v198
    %v770 = vunpack.c.h.b16 %v198
    %v771 = vunpack.c.l.b16 %v199
    %v772 = vunpack.c.h.b16 %v199
    %v773 = vunpack.c.l.b16 %v200
    %v774 = vunpack.c.h.b16 %v200
    %v775 = vunpack.c.l.b16 %v201
    %v776 = vunpack.c.h.b16 %v201
    %v777 = vunpack.c.l.b16 %v202
    %v778 = vunpack.c.h.b16 %v202
    %v779 = vunpack.c.l.b16 %v203
    %v780 = vunpack.c.h.b16 %v203
    %v781 = vunpack.c.l.b16 %v204
    %v782 = vunpack.c.h.b16 %v204
    %v783 = vunpack.c.l.b16 %v205
    %v784 = vunpack.c.h.b16 %v205
    %v785 = vunpack.c.l.b16 %v206
    %v786 = vunpack.c.h.b16 %v206
    %v787 = vunpack.c.l.b16 %v207
    %v788 = vunpack.c.h.b16 %v207
    %v789 = vunpack.c.l.b16 %v208
    %v790 = vunpack.c.h.b16 %v208
    %v791 = vunpack.c.l.b16 %v209
    %v792 = vunpack.c.h.b16 %v209
    %v793 = vunpack.c.l.b16 %v210
    %v794 = vunpack.c.h.b16 %v210
    %v795 = vunpack.c.l.b16 %v211
    %v796 = vunpack.c.h.b16 %v211
    %v797 = vunpack.c.l.b16 %v212
    %v798 = vunpack.c.h.b16 %v212
    %v799 = vunpack.c.l.b16 %v213
    %v800 = vunpack.c.h.b16 %v213
    %v801 = vunpack.c.l.b16 %v214
    %v802 = vunpack.c.h.b16 %v214
    %v803 = vunpack.c.l.b16 %v215
    %v804 = vunpack.c.h.b16 %v215
    %v805 = vunpack.c.l.b16 %v216
    %v806 = vunpack.c.h.b16 %v216
    %v807 = vunpack.c.l.b16 %v217
    %v808 = vunpack.c.h.b16 %v217
    %v809 = vunpack.c.l.b16 %v218
    %v810 = vunpack.c.h.b16 %v218
    %v811 = vunpack.c.l.b16 %v219
    %v812 = vunpack.c.h.b16 %v219
    %v813 = vunpack.c.l.b16 %v220
    %v814 = vunpack.c.h.b16 %v220
    %v815 = vunpack.c.l.b16 %v221
    %v816 = vunpack.c.h.b16 %v221
    %v817 = vunpack.c.l.b16 %v222
    %v818 = vunpack.c.h.b16 %v222
    %v819 = vunpack.c.l.b16 %v223
    %v820 = vunpack.c.h.b16 %v223
    %v821 = vunpack.c.l.b16 %v224
    %v822 = vunpack.c.h.b16 %v224
    %v823 = vunpack.c.l.b16 %v225
    %v824 = vunpack.c.h.b16 %v225
    %v825 = vunpack.c.l.b16 %v226
    %v826 = vunpack.c.h.b16 %v226
    %v827 = vunpack.c.l.b16 %v227
    %v828 = vunpack.c.h.b16 %v227
    %v829 = vunpack.c.l.b16 %v228
    %v830 = vunpack.c.h.b16 %v228
    %v831 = vunpack.c.l.b16 %v229
    %v832 = vunpack.c.h.b16 %v229
    %v833 = vunpack.c.l.b16 %v230
    %v834 = vunpack.c.h.b16 %v230
    %v835 = vunpack.c.l.b16 %v231
    %v836 = vunpack.c.h.b16 %v231
    %v837 = vunpack.c.l.b16 %v232
    %v838 = vunpack.c.h.b16 %v232
    %v839 = vunpack.c.l.b16 %v233
    %v840 = vunpack.c.h.b16 %v233
    %v841 = vunpack.c.l.b16 %v234
    %v842 = vunpack.c.h.b16 %v234
    %v843 = vunpack.c.l.b16 %v235
    %v844 = vunpack.c.h.b16 %v235
    %v845 = vunpack.c.l.b16 %v236
    %v846 = vunpack.c.h.b16 %v236
    %v847 = vunpack.c.l.b16 %v237
    %v848 = vunpack.c.h.b16 %v237
    %v849 = vunpack.c.l.b16 %v238
    %v850 = vunpack.c.h.b16 %v238
    %v851 = vunpack.c.l.b16 %v239
    %v852 = vunpack.c.h.b16 %v239
    %v853 = vunpack.c.l.b16 %v240
    %v854 = vunpack.c.h.b16 %v240
    %v855 = vunpack.c.l.b16 %v241
    %v856 = vunpack.c.h.b16 %v241
    %v857 = vunpack.c.l.b16 %v242
    %v858 = vunpack.c.h.b16 %v242
    %v859 = vunpack.c.l.b16 %v243
    %v860 = vunpack.c.h.b16 %v243
    %v861 = vunpack.c.l.b16 %v244
    %v862 = vunpack.c.h.b16 %v244
    %v863 = vunpack.c.l.b16 %v245
    %v864 = vunpack.c.h.b16 %v245
    %v865 = vunpack.c.l.b16 %v246
    %v866 = vunpack.c.h.b16 %v246
    %v867 = vunpack.c.l.b16 %v247
    %v868 = vunpack.c.h.b16 %v247
    %v869 = vunpack.c.l.b16 %v248
    %v870 = vunpack.c.h.b16 %v248
    %v871 = vunpack.c.l.b16 %v249
    %v872 = vunpack.c.h.b16 %v249
    %v873 = vunpack.c.l.b16 %v250
    %v874 = vunpack.c.h.b16 %v250
    %v875 = vunpack.c.l.b16 %v251
    %v876 = vunpack.c.h.b16 %v251
    %v877 = vunpack.c.l.b16 %v252
    %v878 = vunpack.c.h.b16 %v252
    %v879 = vunpack.c.l.b16 %v253
    %v880 = vunpack.c.h.b16 %v253
    %v881 = vunpack.c.l.b16 %v254
    %v882 = vunpack.c.h.b16 %v254
    %v883 = vunpack.c.l.b16 %v255
    %v884 = vunpack.c.h.b16 %v255
    %v885 = vunpack.c.l.b16 %v256
    %v886 = vunpack.c.h.b16 %v256
    %v887 = vunpack.c.l.b16 %v257
    %v888 = vunpack.c.h.b16 %v257
    %v889 = vunpack.c.l.b16 %v258
    %v890 = vunpack.c.h.b16 %v258
    %v891 = vunpack.c.l.b16 %v259
    %v892 = vunpack.c.h.b16 %v259
    %v893 = vunpack.c.l.b16 %v260
    %v894 = vunpack.c.h.b16 %v260
    %v895 = vunpack.c.l.b16 %v261
    %v896 = vunpack.c.h.b16 %v261
    %v897 = vunpack.c.l.b16 %v262
    %v898 = vunpack.c.h.b16 %v262
    %v899 = vunpack.c.l.b16 %v263
    %v900 = vunpack.c.h.b16 %v263
    %v901 = vunpack.c.l.b16 %v264
    %v902 = vunpack.c.h.b16 %v264
    %v903 = vunpack.c.l.b16 %v265
    %v904 = vunpack.c.h.b16 %v265
    %v905 = vunpack.c.l.b16 %v266
    %v906 = vunpack.c.h.b16 %v266
    %v907 = vunpack.c.l.b16 %v267
    %v908 = vunpack.c.h.b16 %v267
    %v909 = vunpack.c.l.b16 %v268
    %v910 = vunpack.c.h.b16 %v268
    %v911 = vunpack.c.l.b16 %v269
    %v912 = vunpack.c.h.b16 %v269
    %v913 = vunpack.c.l.b16 %v270
    %v914 = vunpack.c.h.b16 %v270
    %v915 = vunpack.c.l.b16 %v271
    %v916 = vunpack.c.h.b16 %v271
    %v917 = vunpack.c.l.b16 %v272
    %v918 = vunpack.c.h.b16 %v272
    %v919 = vunpack.c.l.b16 %v273
    %v920 = vunpack.c.h.b16 %v273
    %v921 = vunpack.c.l.b16 %v274
    %v922 = vunpack.c.h.b16 %v274
    %v923 = vunpack.c.l.b16 %v275
    %v924 = vunpack.c.h.b16 %v275
    %v925 = vunpack.c.l.b16 %v276
    %v926 = vunpack.c.h.b16 %v276
    %v927 = vunpack.c.l.b16 %v277
    %v928 = vunpack.c.h.b16 %v277
    %v929 = vunpack.c.l.b16 %v278
    %v930 = vunpack.c.h.b16 %v278
    %v931 = vunpack.c.l.b16 %v279
    %v932 = vunpack.c.h.b16 %v279
    %v933 = vunpack.c.l.b16 %v280
    %v934 = vunpack.c.h.b16 %v280
    %v935 = vunpack.c.l.b16 %v281
    %v936 = vunpack.c.h.b16 %v281
    %v937 = vunpack.c.l.b16 %v282
    %v938 = vunpack.c.h.b16 %v282
    %v939 = vunpack.c.l.b16 %v283
    %v940 = vunpack.c.h.b16 %v283
    %v941 = vunpack.c.l.b16 %v284
    %v942 = vunpack.c.h.b16 %v284
    %v943 = vunpack.c.l.b16 %v285
    %v944 = vunpack.c.h.b16 %v285
    %v945 = vunpack.c.l.b16 %v286
    %v946 = vunpack.c.h.b16 %v286
    %v947 = vunpack.c.l.b16 %v287
    %v948 = vunpack.c.h.b16 %v287
    %v949 = vunpack.c.l.b16 %v288
    %v950 = vunpack.c.h.b16 %v288
    %v951 = vunpack.c.l.b16 %v289
    %v952 = vunpack.c.h.b16 %v289
    %v953 = vunpack.c.l.b16 %v290
    %v954 = vunpack.c.h.b16 %v290
    %v955 = vunpack.c.l.b16 %v291
    %v956 = vunpack.c.h.b16 %v291
    %v957 = vunpack.c.l.b16 %v292
    %v958 = vunpack.c.h.b16 %v292
    %v959 = vunpack.c.l.b16 %v293
    %v960 = vunpack.c.h.b16 %v293
    %v961 = vunpack.c.l.b16 %v294
    %v962 = vunpack.c.h.b16 %v294
    %v963 = vunpack.c.l.b16 %v295
    %v964 = vunpack.c.h.b16 %v295
    %v965 = vunpack.c.l.b16 %v296
    %v966 = vunpack.c.h.b16 %v296
    %v967 = vunpack.c.l.b16 %v297
    %v968 = vunpack.c.h.b16 %v297
    %v969 = vunpack.c.l.b16 %v298
    %v970 = vunpack.c.h.b16 %v298
    %v971 = vunpack.c.l.b16 %v299
    %v972 = vunpack.c.h.b16 %v299
    %v973 = vunpack.c.l.b16 %v300
    %v974 = vunpack.c.h.b16 %v300
    %v975 = vunpack.c.l.b16 %v301
    %v976 = vunpack.c.h.b16 %v301
    %v977 = vunpack.c.l.b16 %v302
    %v978 = vunpack.c.h.b16 %v302
    %v979 = vunpack.c.l.b16 %v303
    %v980 = vunpack.c.h.b16 %v303
    %v981 = vunpack.c.l.b16 %v304
    %v982 = vunpack.c.h.b16 %v304
    %v983 = vunpack.c.l.b16 %v305
    %v984 = vunpack.c.h.b16 %v305
    %v985 = vunpack.c.l.b16 %v306
    %v986 = vunpack.c.h.b16 %v306
    %v987 = vunpack.c.l.b16 %v307
    %v988 = vunpack.c.h.b16 %v307
    %v989 = vunpack.c.l.b16 %v308
    %v990 = vunpack.c.h.b16 %v308
    %v991 = vunpack.c.l.b16 %v309
    %v992 = vunpack.c.h.b16 %v309
    %v993 = vunpack.c.l.b16 %v310
    %v994 = vunpack.c.h.b16 %v310
    %v995 = vunpack.c.l.b16 %v311
    %v996 = vunpack.c.h.b16 %v311
    %v997 = vunpack.c.l.b16 %v312
    %v998 = vunpack.c.h.b16 %v312
    %v999 = vunpack.c.l.b16 %v313
    %v1000 = vunpack.c.h.b16 %v313
    %v1001 = vunpack.c.l.b16 %v314
    %v1002 = vunpack.c.h.b16 %v314
    %v1003 = vunpack.c.l.b16 %v315
    %v1004 = vunpack.c.h.b16 %v315
    %v1005 = vunpack.c.l.b16 %v316
    %v1006 = vunpack.c.h.b16 %v316
    %v1007 = vunpack.c.l.b16 %v317
    %v1008 = vunpack.c.h.b16 %v317
    %v1009 = vunpack.c.l.b16 %v318
    %v1010 = vunpack.c.h.b16 %v318
    %v1011 = vunpack.c.l.b16 %v319
    %v1012 = vunpack.c.h.b16 %v319
    %v1013 = vunpack.c.l.b16 %v320
    %v1014 = vunpack.c.h.b16 %v320
    %v1015 = vunpack.c.l.b16 %v321
    %v1016 = vunpack.c.h.b16 %v321
    %v1017 = vunpack.c.l.b16 %v322
    %v1018 = vunpack.c.h.b16 %v322
    %v1019 = vunpack.c.l.b16 %v323
    %v1020 = vunpack.c.h.b16 %v323
    %v1021 = vunpack.c.l.b16 %v324
    %v1022 = vunpack.c.h.b16 %v324
    %v1023 = vunpack.c.l.b16 %v325
    %v1024 = vunpack.c.h.b16 %v325
    %v1025 = vunpack.c.l.b16 %v326
    %v1026 = vunpack.c.h.b16 %v326
    %v1027 = vunpack.c.l.b16 %v327
    %v1028 = vunpack.c.h.b16 %v327
    %v1029 = vunpack.c.l.b16 %v328
    %v1030 = vunpack.c.h.b16 %v328
    %v1031 = vunpack.c.l.b16 %v329
    %v1032 = vunpack.c.h.b16 %v329
    %v1033 = vunpack.c.l.b16 %v330
    %v1034 = vunpack.c.h.b16 %v330
    %v1035 = vunpack.c.l.b16 %v331
    %v1036 = vunpack.c.h.b16 %v331
    %v1037 = vunpack.c.l.b16 %v332
    %v1038 = vunpack.c.h.b16 %v332
    %v1039 = vunpack.c.l.b16 %v333
    %v1040 = vunpack.c.h.b16 %v333
    %v1041 = vunpack.c.l.b16 %v334
    %v1042 = vunpack.c.h.b16 %v334
    %v1043 = vunpack.c.l.b16 %v335
    %v1044 = vunpack.c.h.b16 %v335
    %v1045 = vunpack.c.l.b16 %v336
    %v1046 = vunpack.c.h.b16 %v336
    %v1047 = vunpack.c.l.b16 %v337
    %v1048 = vunpack.c.h.b16 %v337
    %v1049 = vunpack.c.l.b16 %v338
    %v1050 = vunpack.c.h.b16 %v338
    %v1051 = vunpack.c.l.b16 %v339
    %v1052 = vunpack.c.h.b16 %v339
    %v1053 = vunpack.c.l.b16 %v340
    %v1054 = vunpack.c.h.b16 %v340
    %v1055 = vunpack.c.l.b16 %v341
    %v1056 = vunpack.c.h.b16 %v341
    %v1057 = vunpack.c.l.b16 %v342
    %v1058 = vunpack.c.h.b16 %v342
    %v1059 = vunpack.c.l.b16 %v343
    %v1060 = vunpack.c.h.b16 %v343
    %v1061 = vunpack.c.l.b16 %v344
    %v1062 = vunpack.c.h.b16 %v344
    %v1063 = vunpack.c.l.b16 %v345
    %v1064 = vunpack.c.h.b16 %v345
    %v1065 = vunpack.c.l.b16 %v346
    %v1066 = vunpack.c.h.b16 %v346
    %v1067 = vunpack.c.l.b16 %v347
    %v1068 = vunpack.c.h.b16 %v347
    %v1069 = vunpack.c.l.b16 %v348
    %v1070 = vunpack.c.h.b16 %v348
    %v1071 = vunpack.c.l.b16 %v349
    %v1072 = vunpack.c.h.b16 %v349
    %v1073 = vunpack.c.l.b16 %v350
    %v1074 = vunpack.c.h.b16 %v350
    %v1075 = vunpack.c.l.b16 %v351
    %v1076 = vunpack.c.h.b16 %v351
    %v1077 = vunpack.c.l.b16 %v352
    %v1078 = vunpack.c.h.b16 %v352
    %v1079 = vunpack.c.l.b16 %v353
    %v1080 = vunpack.c.h.b16 %v353
    %v1081 = vunpack.c.l.b16 %v354
    %v1082 = vunpack.c.h.b16 %v354
    %v1083 = vunpack.c.l.b16 %v355
    %v1084 = vunpack.c.h.b16 %v355
    %v1085 = vunpack.c.l.b16 %v356
    %v1086 = vunpack.c.h.b16 %v356
    %v1087 = vunpack.c.l.b16 %v357
    %v1088 = vunpack.c.h.b16 %v357
    %v1089 = vunpack.c.l.b16 %v358
    %v1090 = vunpack.c.h.b16 %v358
    %v1091 = vunpack.c.l.b16 %v359
    %v1092 = vunpack.c.h.b16 %v359
    %v1093 = vunpack.c.l.b16 %v360
    %v1094 = vunpack.c.h.b16 %v360
    %v1095 = vunpack.c.l.b16 %v361
    %v1096 = vunpack.c.h.b16 %v361
    %v1097 = vunpack.c.l.b16 %v362
    %v1098 = vunpack.c.h.b16 %v362
    %v1099 = vunpack.c.l.b16 %v363
    %v1100 = vunpack.c.h.b16 %v363
    %v1101 = vunpack.c.l.b16 %v364
    %v1102 = vunpack.c.h.b16 %v364
    %v1103 = vunpack.c.l.b16 %v365
    %v1104 = vunpack.c.h.b16 %v365
    %v1105 = vunpack.c.l.b16 %v366
    %v1106 = vunpack.c.h.b16 %v366
    %v1107 = vunpack.c.l.b16 %v367
    %v1108 = vunpack.c.h.b16 %v367
    %v1109 = vunpack.c.l.b16 %v368
    %v1110 = vunpack.c.h.b16 %v368
    %v1111 = vunpack.c.l.b16 %v369
    %v1112 = vunpack.c.h.b16 %v369
    %v1113 = vunpack.c.l.b16 %v370
    %v1114 = vunpack.c.h.b16 %v370
    %v1115 = vunpack.c.l.b16 %v371
    %v1116 = vunpack.c.h.b16 %v371
    %v1117 = vunpack.c.l.b16 %v372
    %v1118 = vunpack.c.h.b16 %v372
    %v1119 = vunpack.c.l.b16 %v373
    %v1120 = vunpack.c.h.b16 %v373
    %v1121 = vunpack.c.l.b16 %v374
    %v1122 = vunpack.c.h.b16 %v374
    %v1123 = vunpack.c.l.b16 %v375
    %v1124 = vunpack.c.h.b16 %v375
    %v1125 = vunpack.c.l.b16 %v376
    %v1126 = vunpack.c.h.b16 %v376
    %v1127 = vunpack.c.l.b16 %v377
    %v1128 = vunpack.c.h.b16 %v377
    %v1129 = vunpack.c.l.b16 %v378
    %v1130 = vunpack.c.h.b16 %v378
    %v1131 = vunpack.c.l.b16 %v379
    %v1132 = vunpack.c.h.b16 %v379
    %v1133 = vunpack.c.l.b16 %v380
    %v1134 = vunpack.c.h.b16 %v380
    %v1135 = vunpack.c.l.b16 %v381
    %v1136 = vunpack.c.h.b16 %v381
    %v1137 = vunpack.c.l.b16 %v382
    %v1138 = vunpack.c.h.b16 %v382
    %v1139 = vunpack.c.l.b16 %v383
    %v1140 = vunpack.c.h.b16 %v383
    %v1141 = vunpack.c.l.b16 %v384
    %v1142 = vunpack.c.h.b16 %v384
    %v1143 = vunpack.c.l.b16 %v385
    %v1144 = vunpack.c.h.b16 %v385
    %v1145 = vunpack.c.l.b16 %v386
    %v1146 = vunpack.c.h.b16 %v386
    %v1147 = vunpack.c.l.b16 %v387
    %v1148 = vunpack.c.h.b16 %v387
    %v1149 = vunpack.c.l.b16 %v388
    %v1150 = vunpack.c.h.b16 %v388
    %v1151 = vunpack.c.l.b16 %v389
    %v1152 = vunpack.c.h.b16 %v389
    %v1153 = vunpack.c.l.b16 %v390
    %v1154 = vunpack.c.h.b16 %v390
    %v1155 = vunpack.c.l.b16 %v391
    %v1156 = vunpack.c.h.b16 %v391
    %v1157 = vunpack.c.l.b16 %v392
    %v1158 = vunpack.c.h.b16 %v392
    %v1159 = vunpack.c.l.b16 %v393
    %v1160 = vunpack.c.h.b16 %v393
    %v1161 = vunpack.c.l.b16 %v394
    %v1162 = vunpack.c.h.b16 %v394
    %v1163 = vunpack.c.l.b16 %v395
    %v1164 = vunpack.c.h.b16 %v395
    %v1165 = vunpack.c.l.b16 %v396
    %v1166 = vunpack.c.h.b16 %v396
    %v1167 = vunpack.c.l.b16 %v397
    %v1168 = vunpack.c.h.b16 %v397
    %v1169 = vunpack.c.l.b16 %v398
    %v1170 = vunpack.c.h.b16 %v398
    %v1171 = vunpack.c.l.b16 %v399
    %v1172 = vunpack.c.h.b16 %v399
    %v1173 = vunpack.c.l.b16 %v400
    %v1174 = vunpack.c.h.b16 %v400
    %v1175 = vunpack.c.l.b16 %v401
    %v1176 = vunpack.c.h.b16 %v401
    %v1177 = vunpack.c.l.b16 %v402
    %v1178 = vunpack.c.h.b16 %v402
    %v1179 = vunpack.c.l.b16 %v403
    %v1180 = vunpack.c.h.b16 %v403
    %v1181 = vunpack.c.l.b16 %v404
    %v1182 = vunpack.c.h.b16 %v404
    %v1183 = vunpack.c.l.b16 %v405
    %v1184 = vunpack.c.h.b16 %v405
    %v1185 = vunpack.c.l.b16 %v406
    %v1186 = vunpack.c.h.b16 %v406
    %v1187 = vunpack.c.l.b16 %v407
    %v1188 = vunpack.c.h.b16 %v407
    %v1189 = vunpack.c.l.b16 %v408
    %v1190 = vunpack.c.h.b16 %v408
    %v1191 = vunpack.c.l.b16 %v409
    %v1192 = vunpack.c.h.b16 %v409
    %v1193 = vunpack.c.l.b16 %v410
    %v1194 = vunpack.c.h.b16 %v410
    %v1195 = vunpack.c.l.b16 %v411
    %v1196 = vunpack.c.h.b16 %v411
    %v1197 = vunpack.c.l.b16 %v412
    %v1198 = vunpack.c.h.b16 %v412
    %v1199 = vunpack.c.l.b16 %v413
    %v1200 = vunpack.c.h.b16 %v413
    %v1201 = vunpack.c.l.b16 %v414
    %v1202 = vunpack.c.h.b16 %v414
    %v1203 = vunpack.c.l.b16 %v415
    %v1204 = vunpack.c.h.b16 %v415
    %v1205 = vunpack.c.l.b16 %v416
    %v1206 = vunpack.c.h.b16 %v416
    %v1207 = vpack.c.b16 %v699, %v695
    %v1208 = vpack.c.b16 %v700, %v696
    %v1209 = vpack.c.b16 %v701, %v697
    %v1210 = vpack.c.b16 %v702, %v698
    %v1211 = vpack.c.b16 %v707, %v703
    %v1212 = vpack.c.b16 %v708, %v704
    %v1213 = vpack.c.b16 %v709, %v705
    %v1214 = vpack.c.b16 %v710, %v706
    %v1215 = vpack.c.b16 %v715, %v711
    %v1216 = vpack.c.b16 %v716, %v712
    %v1217 = vpack.c.b16 %v717, %v713
    %v1218 = vpack.c.b16 %v718, %v714
    %v1219 = vpack.c.b16 %v723, %v719
    %v1220 = vpack.c.b16 %v724, %v720
    %v1221 = vpack.c.b16 %v725, %v721
    %v1222 = vpack.c.b16 %v726, %v722
    %v1223 = vpack.c.b16 %v731, %v727
    %v1224 = vpack.c.b16 %v732, %v728
    %v1225 = vpack.c.b16 %v733, %v729
    %v1226 = vpack.c.b16 %v734, %v730
    %v1227 = vpack.c.b16 %v739, %v735
    %v1228 = vpack.c.b16 %v740, %v736
    %v1229 = vpack.c.b16 %v741, %v737
    %v1230 = vpack.c.b16 %v742, %v738
    %v1231 = vpack.c.b16 %v747, %v743
    %v1232 = vpack.c.b16 %v748, %v744
    %v1233 = vpack.c.b16 %v749, %v745
    %v1234 = vpack.c.b16 %v750, %v746
    %v1235 = vpack.c.b16 %v755, %v751
    %v1236 = vpack.c.b16 %v756, %v752
    %v1237 = vpack.c.b16 %v757, %v753
    %v1238 = vpack.c.b16 %v758, %v754
    %v1239 = vpack.c.b16 %v763, %v759
    %v1240 = vpack.c.b16 %v764, %v760
    %v1241 = vpack.c.b16 %v765, %v761
    %v1242 = vpack.c.b16 %v766, %v762
    %v1243 = vpack.c.b16 %v771, %v767
    %v1244 = vpack.c.b16 %v772, %v768
    %v1245 = vpack.c.b16 %v773, %v769
    %v1246 = vpack.c.b16 %v774, %v770
    %v1247 = vpack.c.b16 %v779, %v775
    %v1248 = vpack.c.b16 %v780, %v776
    %v1249 = vpack.c.b16 %v781, %v777
    %v1250 = vpack.c.b16 %v782, %v778
    %v1251 = vpack.c.b16 %v787, %v783
    %v1252 = vpack.c.b16 %v788, %v784
    %v1253 = vpack.c.b16 %v789, %v785
    %v1254 = vpack.c.b16 %v790, %v786
    %v1255 = vpack.c.b16 %v795, %v791
    %v1256 = vpack.c.b16 %v796, %v792
    %v1257 = vpack.c.b16 %v797, %v793
    %v1258 = vpack.c.b16 %v798, %v794
    %v1259 = vpack.c.b16 %v803, %v799
    %v1260 = vpack.c.b16 %v804, %v800
    %v1261 = vpack.c.b16 %v805, %v801
    %v1262 = vpack.c.b16 %v806, %v802
    %v1263 = vpack.c.b16 %v811, %v807
    %v1264 = vpack.c.b16 %v812, %v808
    %v1265 = vpack.c.b16 %v813, %v809
    %v1266 = vpack.c.b16 %v814, %v810
    %v1267 = vpack.c.b16 %v819, %v815
    %v1268 = vpack.c.b16 %v820, %v816
    %v1269 = vpack.c.b16 %v821, %v817
    %v1270 = vpack.c.b16 %v822, %v818
    %v1271 = vpack.c.b16 %v827, %v823
    %v1272 = vpack.c.b16 %v828, %v824
    %v1273 = vpack.c.b16 %v829, %v825
    %v1274 = vpack.c.b16 %v830, %v826
    %v1275 = vpack.c.b16 %v835, %v831
    %v1276 = vpack.c.b16 %v836, %v832
    %v1277 = vpack.c.b16 %v837, %v833
    %v1278 = vpack.c.b16 %v838, %v834
    %v1279 = vpack.c.b16 %v843, %v839
    %v1280 = vpack.c.b16 %v844, %v840
    %v1281 = vpack.c.b16 %v845, %v841
    %v1282 = vpack.c.b16 %v846, %v842
    %v1283 = vpack.c.b16 %v851, %v847
    %v1284 = vpack.c.b16 %v852, %v848
    %v1285 = vpack.c.b16 %v853, %v849
    %v1286 = vpack.c.b16 %v854, %v850
    %v1287 = vpack.c.b16 %v859, %v855
    %v1288 = vpack.c.b16 %v860, %v856
    %v1289 = vpack.c.b16 %v861, %v857
    %v1290 = vpack.c.b16 %v862, %v858
    %v1291 = vpack.c.b16 %v867, %v863
    %v1292 = vpack.c.b16 %v868, %v864
    %v1293 = vpack.c.b16 %v869, %v865
    %v1294 = vpack.c.b16 %v870, %v866
    %v1295 = vpack.c.b16 %v875, %v871
    %v1296 = vpack.c.b16 %v876, %v872
    %v1297 = vpack.c.b16 %v877, %v873
    %v1298 = vpack.c.b16 %v878, %v874
    %v1299 = vpack.c.b16 %v883, %v879
    %v1300 = vpack.c.b16 %v884, %v880
    %v1301 = vpack.c.b16 %v885, %v881
    %v1302 = vpack.c.b16 %v886, %v882
    %v1303 = vpack.c.b16 %v891, %v887
    %v1304 = vpack.c.b16 %v892, %v888
    %v1305 = vpack.c.b16 %v893, %v889
    %v1306 = vpack.c.b16 %v894, %v890
    %v1307 = vpack.c.b16 %v899, %v895
    %v1308 = vpack.c.b16 %v900, %v896
    %v1309 = vpack.c.b16 %v901, %v897
    %v1310 = vpack.c.b16 %v902, %v898
    %v1311 = vpack.c.b16 %v907, %v903
    %v1312 = vpack.c.b16 %v908, %v904
    %v1313 = vpack.c.b16 %v909, %v905
    %v1314 = vpack.c.b16 %v910, %v906
    %v1315 = vpack.c.b16 %v915, %v911
    %v1316 = vpack.c.b16 %v916, %v912
    %v1317 = vpack.c.b16 %v917, %v913
    %v1318 = vpack.c.b16 %v918, %v914
    %v1319 = vpack.c.b16 %v923, %v919
    %v1320 = vpack.c.b16 %v924, %v920
    %v1321 = vpack.c.b16 %v925, %v921
    %v1322 = vpack.c.b16 %v926, %v922
    %v1323 = vpack.c.b16 %v931, %v927
    %v1324 = vpack.c.b16 %v932, %v928
    %v1325 = vpack.c.b16 %v933, %v929
    %v1326 = vpack.c.b16 %v934, %v930
    %v1327 = vpack.c.b16 %v939, %v935
    %v1328 = vpack.c.b16 %v940, %v936
    %v1329 = vpack.c.b16 %v941, %v937
    %v1330 = vpack.c.b16 %v942, %v938
    %v1331 = vpack.c.b16 %v947, %v943
    %v1332 = vpack.c.b16 %v948, %v944
    %v1333 = vpack.c.b16 %v949, %v945
    %v1334 = vpack.c.b16 %v950, %v946
    %v1335 = vpack.c.b16 %v955, %v951
    %v1336 = vpack.c.b16 %v956, %v952
    %v1337 = vpack.c.b16 %v957, %v953
    %v1338 = vpack.c.b16 %v958, %v954
    %v1339 = vpack.c.b16 %v963, %v959
    %v1340 = vpack.c.b16 %v964, %v960
    %v1341 = vpack.c.b16 %v965, %v961
    %v1342 = vpack.c.b16 %v966, %v962
    %v1343 = vpack.c.b16 %v971, %v967
    %v1344 = vpack.c.b16 %v972, %v968
    %v1345 = vpack.c.b16 %v973, %v969
    %v1346 = vpack.c.b16 %v974, %v970
    %v1347 = vpack.c.b16 %v979, %v975
    %v1348 = vpack.c.b16 %v980, %v976
    %v1349 = vpack.c.b16 %v981, %v977
    %v1350 = vpack.c.b16 %v982, %v978
    %v1351 = vpack.c.b16 %v987, %v983
    %v1352 = vpack.c.b16 %v988, %v984
    %v1353 = vpack.c.b16 %v989, %v985
    %v1354 = vpack.c.b16 %v990, %v986
    %v1355 = vpack.c.b16 %v995, %v991
    %v1356 = vpack.c.b16 %v996, %v992
    %v1357 = vpack.c.b16 %v997, %v993
    %v1358 = vpack.c.b16 %v998, %v994
    %v1359 = vpack.c.b16 %v1003, %v999
    %v1360 = vpack.c.b16 %v1004, %v1000
    %v1361 = vpack.c.b16 %v1005, %v1001
    %v1362 = vpack.c.b16 %v1006, %v1002
    %v1363 = vpack.c.b16 %v1011, %v1007
    %v1364 = vpack.c.b16 %v1012, %v1008
    %v1365 = vpack.c.b16 %v1013, %v1009
    %v1366 = vpack.c.b16 %v1014, %v1010
    %v1367 = vpack.c.b16 %v1019, %v1015
    %v1368 = vpack.c.b16 %v1020, %v1016
    %v1369 = vpack.c.b16 %v1021, %v1017
    %v1370 = vpack.c.b16 %v1022, %v1018
    %v1371 = vpack.c.b16 %v1027, %v1023
    %v1372 = vpack.c.b16 %v1028, %v1024
    %v1373 = vpack.c.b16 %v1029, %v1025
    %v1374 = vpack.c.b16 %v1030, %v1026
    %v1375 = vpack.c.b16 %v1035, %v1031
    %v1376 = vpack.c.b16 %v1036, %v1032
    %v1377 = vpack.c.b16 %v1037, %v1033
    %v1378 = vpack.c.b16 %v1038, %v1034
    %v1379 = vpack.c.b16 %v1043, %v1039
    %v1380 = vpack.c.b16 %v1044, %v1040
    %v1381 = vpack.c.b16 %v1045, %v1041
    %v1382 = vpack.c.b16 %v1046, %v1042
    %v1383 = vpack.c.b16 %v1051, %v1047
    %v1384 = vpack.c.b16 %v1052, %v1048
    %v1385 = vpack.c.b16 %v1053, %v1049
    %v1386 = vpack.c.b16 %v1054, %v1050
    %v1387 = vpack.c.b16 %v1059, %v1055
    %v1388 = vpack.c.b16 %v1060, %v1056
    %v1389 = vpack.c.b16 %v1061, %v1057
    %v1390 = vpack.c.b16 %v1062, %v1058
    %v1391 = vpack.c.b16 %v1067, %v1063
    %v1392 = vpack.c.b16 %v1068, %v1064
    %v1393 = vpack.c.b16 %v1069, %v1065
    %v1394 = vpack.c.b16 %v1070, %v1066
    %v1395 = vpack.c.b16 %v1075, %v1071
    %v1396 = vpack.c.b16 %v1076, %v1072
    %v1397 = vpack.c.b16 %v1077, %v1073
    %v1398 = vpack.c.b16 %v1078, %v1074
    %v1399 = vpack.c.b16 %v1083, %v1079
    %v1400 = vpack.c.b16 %v1084, %v1080
    %v1401 = vpack.c.b16 %v1085, %v1081
    %v1402 = vpack.c.b16 %v1086, %v1082
    %v1403 = vpack.c.b16 %v1091, %v1087
    %v1404 = vpack.c.b16 %v1092, %v1088
    %v1405 = vpack.c.b16 %v1093, %v1089
    %v1406 = vpack.c.b16 %v1094, %v1090
    %v1407 = vpack.c.b16 %v1099, %v1095
    %v1408 = vpack.c.b16 %v1100, %v1096
    %v1409 = vpack.c.b16 %v1101, %v1097
    %v1410 = vpack.c.b16 %v1102, %v1098
    %v1411 = vpack.c.b16 %v1107, %v1103
    %v1412 = vpack.c.b16 %v1108, %v1104
    %v1413 = vpack.c.b16 %v1109, %v1105
    %v1414 = vpack.c.b16 %v1110, %v1106
    %v1415 = vpack.c.b16 %v1115, %v1111
    %v1416 = vpack.c.b16 %v1116, %v1112
    %v1417 = vpack.c.b16 %v1117, %v1113
    %v1418 = vpack.c.b16 %v1118, %v1114
    %v1419 = vpack.c.b16 %v1123, %v1119
    %v1420 = vpack.c.b16 %v1124, %v1120
    %v1421 = vpack.c.b16 %v1125, %v1121
    %v1422 = vpack.c.b16 %v1126, %v1122
    %v1423 = vpack.c.b16 %v1131, %v1127
    %v1424 = vpack.c.b16 %v1132, %v1128
    %v1425 = vpack.c.b16 %v1133, %v1129
    %v1426 = vpack.c.b16 %v1134, %v1130
    %v1427 = vpack.c.b16 %v1139, %v1135
    %v1428 = vpack.c.b16 %v1140, %v1136
    %v1429 = vpack.c.b16 %v1141, %v1137
    %v1430 = vpack.c.b16 %v1142, %v1138
    %v1431 = vpack.c.b16 %v1147, %v1143
    %v1432 = vpack.c.b16 %v1148, %v1144
    %v1433 = vpack.c.b16 %v1149, %v1145
    %v1434 = vpack.c.b16 %v1150, %v1146
    %v1435 = vpack.c.b16 %v1155, %v1151
    %v1436 = vpack.c.b16 %v1156, %v1152
    %v1437 = vpack.c.b16 %v1157, %v1153
    %v1438 = vpack.c.b16 %v1158, %v1154
    %v1439 = vpack.c.b16 %v1163, %v1159
    %v1440 = vpack.c.b16 %v1164, %v1160
    %v1441 = vpack.c.b16 %v1165, %v1161
    %v1442 = vpack.c.b16 %v1166, %v1162
    %v1443 = vpack.c.b16 %v1171, %v1167
    %v1444 = vpack.c.b16 %v1172, %v1168
    %v1445 = vpack.c.b16 %v1173, %v1169
    %v1446 = vpack.c.b16 %v1174, %v1170
    %v1447 = vpack.c.b16 %v1179, %v1175
    %v1448 = vpack.c.b16 %v1180, %v1176
    %v1449 = vpack.c.b16 %v1181, %v1177
    %v1450 = vpack.c.b16 %v1182, %v1178
    %v1451 = vpack.c.b16 %v1187, %v1183
    %v1452 = vpack.c.b16 %v1188, %v1184
    %v1453 = vpack.c.b16 %v1189, %v1185
    %v1454 = vpack.c.b16 %v1190, %v1186
    %v1455 = vpack.c.b16 %v1195, %v1191
    %v1456 = vpack.c.b16 %v1196, %v1192
    %v1457 = vpack.c.b16 %v1197, %v1193
    %v1458 = vpack.c.b16 %v1198, %v1194
    %v1459 = vpack.c.b16 %v1203, %v1199
    %v1460 = vpack.c.b16 %v1204, %v1200
    %v1461 = vpack.c.b16 %v1205, %v1201
    %v1462 = vpack.c.b16 %v1206, %v1202
    %1719 = vmatprep.subr.bf16.mxu0 %v1236
    %1720 = vmatpush1.bf16.msra.mxu0 %v1235
    %1721 = vmatprep.subr.bf16.mxu0 %v1232
    %1722 = vmatpush1.bf16.msra.mxu0 %v1231
    %1723 = vmatprep.subr.bf16.mxu0 %v1228
    %1724 = vmatpush1.bf16.msra.mxu0 %v1227
    %1725 = vmatprep.subr.bf16.mxu0 %v1224
    %1726 = vmatpush1.bf16.msra.mxu0 %v1223
    %1727 = vmatprep.subr.bf16.mxu0 %v1220
    %1728 = vmatpush1.bf16.msra.mxu0 %v1219
    %1729 = vmatprep.subr.bf16.mxu0 %v1216
    %1730 = vmatpush1.bf16.msra.mxu0 %v1215
    %1731 = vmatprep.subr.bf16.mxu0 %v1212
    %1732 = vmatpush1.bf16.msra.mxu0 %v1211
    %1733 = vmatprep.subr.bf16.mxu0 %v1208
    %1734 = vmatpush1.bf16.msra.mxu0 %v1207
    %1735 = vmatprep.subr.bf16.mxu0 %v1268
    %1736 = vmatpush2.bf16.msra.mxu0 %v1267
    %1737 = vmatprep.subr.bf16.mxu0 %v1264
    %1738 = vmatpush2.bf16.msra.mxu0 %v1263
    %1739 = vmatprep.subr.bf16.mxu0 %v1260
    %1740 = vmatpush2.bf16.msra.mxu0 %v1259
    %1741 = vmatprep.subr.bf16.mxu0 %v1256
    %1742 = vmatpush2.bf16.msra.mxu0 %v1255
    %1743 = vmatprep.subr.bf16.mxu0 %v1252
    %1744 = vmatpush2.bf16.msra.mxu0 %v1251
    %1745 = vmatprep.subr.bf16.mxu0 %v1248
    %1746 = vmatpush2.bf16.msra.mxu0 %v1247
    %1747 = vmatprep.subr.bf16.mxu0 %v1244
    %1748 = vmatpush2.bf16.msra.mxu0 %v1243
    %1749 = vmatprep.subr.bf16.mxu0 %v1240
    %1750 = vmatpush2.bf16.msra.mxu0 %v1239
    %1751 = vmatprep.mubr.bf16.mxu0 %v154
    %1752 = vmatmul.mubr.bf16.gmra.mxu0 %v153
    %v1753 = vpop.f32.mrf.mxu0
    %v1754 = vadd.f32 %v422, %v1753
    %v1755 = vpop.f32.mrf.mxu0
    %v1756 = vadd.f32 %v426, %v1755
    %v1757 = vpop.f32.mrf.mxu0
    %v1758 = vpop.f32.mrf.mxu0
    %1759 = vdwg.mxu0
    %1760 = vmatprep.subr.bf16.mxu0 %v1300
    %1761 = vmatpush1.bf16.msra.mxu0 %v1299
    %1762 = vmatprep.subr.bf16.mxu0 %v1296
    %1763 = vmatpush1.bf16.msra.mxu0 %v1295
    %1764 = vmatprep.subr.bf16.mxu0 %v1292
    %1765 = vmatpush1.bf16.msra.mxu0 %v1291
    %1766 = vmatprep.subr.bf16.mxu0 %v1288
    %1767 = vmatpush1.bf16.msra.mxu0 %v1287
    %1768 = vmatprep.subr.bf16.mxu0 %v1284
    %1769 = vmatpush1.bf16.msra.mxu0 %v1283
    %1770 = vmatprep.subr.bf16.mxu0 %v1280
    %1771 = vmatpush1.bf16.msra.mxu0 %v1279
    %1772 = vmatprep.subr.bf16.mxu0 %v1276
    %1773 = vmatpush1.bf16.msra.mxu0 %v1275
    %1774 = vmatprep.subr.bf16.mxu0 %v1272
    %1775 = vmatpush1.bf16.msra.mxu0 %v1271
    %1776 = vmatprep.subr.bf16.mxu0 %v1332
    %1777 = vmatpush2.bf16.msra.mxu0 %v1331
    %1778 = vmatprep.subr.bf16.mxu0 %v1328
    %1779 = vmatpush2.bf16.msra.mxu0 %v1327
    %1780 = vmatprep.subr.bf16.mxu0 %v1324
    %1781 = vmatpush2.bf16.msra.mxu0 %v1323
    %1782 = vmatprep.subr.bf16.mxu0 %v1320
    %1783 = vmatpush2.bf16.msra.mxu0 %v1319
    %1784 = vmatprep.subr.bf16.mxu0 %v1316
    %1785 = vmatpush2.bf16.msra.mxu0 %v1315
    %1786 = vmatprep.subr.bf16.mxu0 %v1312
    %1787 = vmatpush2.bf16.msra.mxu0 %v1311
    %1788 = vmatprep.subr.bf16.mxu0 %v1308
    %1789 = vmatpush2.bf16.msra.mxu0 %v1307
    %1790 = vmatprep.subr.bf16.mxu0 %v1304
    %1791 = vmatpush2.bf16.msra.mxu0 %v1303
    %1792 = vmatprep.mubr.bf16.mxu0 %v156
    %1793 = vmatmul.mubr.bf16.gmra.mxu0 %v155
    %v1794 = vpop.f32.mrf.mxu0
    %v1795 = vadd.f32 %v1754, %v1794
    %v1796 = vpop.f32.mrf.mxu0
    %v1797 = vadd.f32 %v1756, %v1796
    %v1798 = vpop.f32.mrf.mxu0
    %v1799 = vpop.f32.mrf.mxu0
    %1800 = vdwg.mxu0
    %1801 = vmatprep.subr.bf16.mxu0 %v1364
    %1802 = vmatpush1.bf16.msra.mxu0 %v1363
    %1803 = vmatprep.subr.bf16.mxu0 %v1360
    %1804 = vmatpush1.bf16.msra.mxu0 %v1359
    %1805 = vmatprep.subr.bf16.mxu0 %v1356
    %1806 = vmatpush1.bf16.msra.mxu0 %v1355
    %1807 = vmatprep.subr.bf16.mxu0 %v1352
    %1808 = vmatpush1.bf16.msra.mxu0 %v1351
    %1809 = vmatprep.subr.bf16.mxu0 %v1348
    %1810 = vmatpush1.bf16.msra.mxu0 %v1347
    %1811 = vmatprep.subr.bf16.mxu0 %v1344
    %1812 = vmatpush1.bf16.msra.mxu0 %v1343
    %1813 = vmatprep.subr.bf16.mxu0 %v1340
    %1814 = vmatpush1.bf16.msra.mxu0 %v1339
    %1815 = vmatprep.subr.bf16.mxu0 %v1336
    %1816 = vmatpush1.bf16.msra.mxu0 %v1335
    %1817 = vmatprep.subr.bf16.mxu0 %v1396
    %1818 = vmatpush2.bf16.msra.mxu0 %v1395
    %1819 = vmatprep.subr.bf16.mxu0 %v1392
    %1820 = vmatpush2.bf16.msra.mxu0 %v1391
    %1821 = vmatprep.subr.bf16.mxu0 %v1388
    %1822 = vmatpush2.bf16.msra.mxu0 %v1387
    %1823 = vmatprep.subr.bf16.mxu0 %v1384
    %1824 = vmatpush2.bf16.msra.mxu0 %v1383
    %1825 = vmatprep.subr.bf16.mxu0 %v1380
    %1826 = vmatpush2.bf16.msra.mxu0 %v1379
    %1827 = vmatprep.subr.bf16.mxu0 %v1376
    %1828 = vmatpush2.bf16.msra.mxu0 %v1375
    %1829 = vmatprep.subr.bf16.mxu0 %v1372
    %1830 = vmatpush2.bf16.msra.mxu0 %v1371
    %1831 = vmatprep.subr.bf16.mxu0 %v1368
    %1832 = vmatpush2.bf16.msra.mxu0 %v1367
    %1833 = vmatprep.mubr.bf16.mxu0 %v158
    %1834 = vmatmul.mubr.bf16.gmra.mxu0 %v157
    %v1835 = vpop.f32.mrf.mxu0
    %v1836 = vadd.f32 %v1795, %v1835
    %v1837 = vpop.f32.mrf.mxu0
    %v1838 = vadd.f32 %v1797, %v1837
    %v1839 = vpop.f32.mrf.mxu0
    %v1840 = vpop.f32.mrf.mxu0
    %1841 = vdwg.mxu0
    %1842 = vmatprep.subr.bf16.mxu0 %v1428
    %1843 = vmatpush1.bf16.msra.mxu0 %v1427
    %1844 = vmatprep.subr.bf16.mxu0 %v1424
    %1845 = vmatpush1.bf16.msra.mxu0 %v1423
    %1846 = vmatprep.subr.bf16.mxu0 %v1420
    %1847 = vmatpush1.bf16.msra.mxu0 %v1419
    %1848 = vmatprep.subr.bf16.mxu0 %v1416
    %1849 = vmatpush1.bf16.msra.mxu0 %v1415
    %1850 = vmatprep.subr.bf16.mxu0 %v1412
    %1851 = vmatpush1.bf16.msra.mxu0 %v1411
    %1852 = vmatprep.subr.bf16.mxu0 %v1408
    %1853 = vmatpush1.bf16.msra.mxu0 %v1407
    %1854 = vmatprep.subr.bf16.mxu0 %v1404
    %1855 = vmatpush1.bf16.msra.mxu0 %v1403
    %1856 = vmatprep.subr.bf16.mxu0 %v1400
    %1857 = vmatpush1.bf16.msra.mxu0 %v1399
    %1858 = vmatprep.subr.bf16.mxu0 %v1460
    %1859 = vmatpush2.bf16.msra.mxu0 %v1459
    %1860 = vmatprep.subr.bf16.mxu0 %v1456
    %1861 = vmatpush2.bf16.msra.mxu0 %v1455
    %1862 = vmatprep.subr.bf16.mxu0 %v1452
    %1863 = vmatpush2.bf16.msra.mxu0 %v1451
    %1864 = vmatprep.subr.bf16.mxu0 %v1448
    %1865 = vmatpush2.bf16.msra.mxu0 %v1447
    %1866 = vmatprep.subr.bf16.mxu0 %v1444
    %1867 = vmatpush2.bf16.msra.mxu0 %v1443
    %1868 = vmatprep.subr.bf16.mxu0 %v1440
    %1869 = vmatpush2.bf16.msra.mxu0 %v1439
    %1870 = vmatprep.subr.bf16.mxu0 %v1436
    %1871 = vmatpush2.bf16.msra.mxu0 %v1435
    %1872 = vmatprep.subr.bf16.mxu0 %v1432
    %1873 = vmatpush2.bf16.msra.mxu0 %v1431
    %1874 = vmatprep.mubr.bf16.mxu0 %v160
    %1875 = vmatmul.mubr.bf16.gmra.mxu0 %v159
    %v1876 = vpop.f32.mrf.mxu0
    %v1877 = vadd.f32 %v1836, %v1876
    %v1878 = vpop.f32.mrf.mxu0
    %v1879 = vadd.f32 %v1838, %v1878
    %v1880 = vpop.f32.mrf.mxu0
    %v1881 = vpop.f32.mrf.mxu0
    %1882 = vdwg.mxu0
    %1883 = vmatprep.subr.bf16.mxu0 %v1238
    %1884 = vmatpush1.bf16.msra.mxu0 %v1237
    %1885 = vmatprep.subr.bf16.mxu0 %v1234
    %1886 = vmatpush1.bf16.msra.mxu0 %v1233
    %1887 = vmatprep.subr.bf16.mxu0 %v1230
    %1888 = vmatpush1.bf16.msra.mxu0 %v1229
    %1889 = vmatprep.subr.bf16.mxu0 %v1226
    %1890 = vmatpush1.bf16.msra.mxu0 %v1225
    %1891 = vmatprep.subr.bf16.mxu0 %v1222
    %1892 = vmatpush1.bf16.msra.mxu0 %v1221
    %1893 = vmatprep.subr.bf16.mxu0 %v1218
    %1894 = vmatpush1.bf16.msra.mxu0 %v1217
    %1895 = vmatprep.subr.bf16.mxu0 %v1214
    %1896 = vmatpush1.bf16.msra.mxu0 %v1213
    %1897 = vmatprep.subr.bf16.mxu0 %v1210
    %1898 = vmatpush1.bf16.msra.mxu0 %v1209
    %1899 = vmatprep.subr.bf16.mxu0 %v1270
    %1900 = vmatpush2.bf16.msra.mxu0 %v1269
    %1901 = vmatprep.subr.bf16.mxu0 %v1266
    %1902 = vmatpush2.bf16.msra.mxu0 %v1265
    %1903 = vmatprep.subr.bf16.mxu0 %v1262
    %1904 = vmatpush2.bf16.msra.mxu0 %v1261
    %1905 = vmatprep.subr.bf16.mxu0 %v1258
    %1906 = vmatpush2.bf16.msra.mxu0 %v1257
    %1907 = vmatprep.subr.bf16.mxu0 %v1254
    %1908 = vmatpush2.bf16.msra.mxu0 %v1253
    %1909 = vmatprep.subr.bf16.mxu0 %v1250
    %1910 = vmatpush2.bf16.msra.mxu0 %v1249
    %1911 = vmatprep.subr.bf16.mxu0 %v1246
    %1912 = vmatpush2.bf16.msra.mxu0 %v1245
    %1913 = vmatprep.subr.bf16.mxu0 %v1242
    %1914 = vmatpush2.bf16.msra.mxu0 %v1241
    %1915 = vmatprep.mubr.bf16.mxu0 %v154
    %1916 = vmatmul.mubr.bf16.gmra.mxu0 %v153
    %v1917 = vpop.f32.mrf.mxu0
    %v1918 = vadd.f32 %v430, %v1917
    %v1919 = vpop.f32.mrf.mxu0
    %v1920 = vadd.f32 %v434, %v1919
    %v1921 = vpop.f32.mrf.mxu0
    %v1922 = vpop.f32.mrf.mxu0
    %1923 = vdwg.mxu0
    %1924 = vmatprep.subr.bf16.mxu0 %v1302
    %1925 = vmatpush1.bf16.msra.mxu0 %v1301
    %1926 = vmatprep.subr.bf16.mxu0 %v1298
    %1927 = vmatpush1.bf16.msra.mxu0 %v1297
    %1928 = vmatprep.subr.bf16.mxu0 %v1294
    %1929 = vmatpush1.bf16.msra.mxu0 %v1293
    %1930 = vmatprep.subr.bf16.mxu0 %v1290
    %1931 = vmatpush1.bf16.msra.mxu0 %v1289
    %1932 = vmatprep.subr.bf16.mxu0 %v1286
    %1933 = vmatpush1.bf16.msra.mxu0 %v1285
    %1934 = vmatprep.subr.bf16.mxu0 %v1282
    %1935 = vmatpush1.bf16.msra.mxu0 %v1281
    %1936 = vmatprep.subr.bf16.mxu0 %v1278
    %1937 = vmatpush1.bf16.msra.mxu0 %v1277
    %1938 = vmatprep.subr.bf16.mxu0 %v1274
    %1939 = vmatpush1.bf16.msra.mxu0 %v1273
    %1940 = vmatprep.subr.bf16.mxu0 %v1334
    %1941 = vmatpush2.bf16.msra.mxu0 %v1333
    %1942 = vmatprep.subr.bf16.mxu0 %v1330
    %1943 = vmatpush2.bf16.msra.mxu0 %v1329
    %1944 = vmatprep.subr.bf16.mxu0 %v1326
    %1945 = vmatpush2.bf16.msra.mxu0 %v1325
    %1946 = vmatprep.subr.bf16.mxu0 %v1322
    %1947 = vmatpush2.bf16.msra.mxu0 %v1321
    %1948 = vmatprep.subr.bf16.mxu0 %v1318
    %1949 = vmatpush2.bf16.msra.mxu0 %v1317
    %1950 = vmatprep.subr.bf16.mxu0 %v1314
    %1951 = vmatpush2.bf16.msra.mxu0 %v1313
    %1952 = vmatprep.subr.bf16.mxu0 %v1310
    %1953 = vmatpush2.bf16.msra.mxu0 %v1309
    %1954 = vmatprep.subr.bf16.mxu0 %v1306
    %1955 = vmatpush2.bf16.msra.mxu0 %v1305
    %1956 = vmatprep.mubr.bf16.mxu0 %v156
    %1957 = vmatmul.mubr.bf16.gmra.mxu0 %v155
    %v1958 = vpop.f32.mrf.mxu0
    %v1959 = vadd.f32 %v1918, %v1958
    %v1960 = vpop.f32.mrf.mxu0
    %v1961 = vadd.f32 %v1920, %v1960
    %v1962 = vpop.f32.mrf.mxu0
    %v1963 = vpop.f32.mrf.mxu0
    %1964 = vdwg.mxu0
    %1965 = vmatprep.subr.bf16.mxu0 %v1366
    %1966 = vmatpush1.bf16.msra.mxu0 %v1365
    %1967 = vmatprep.subr.bf16.mxu0 %v1362
    %1968 = vmatpush1.bf16.msra.mxu0 %v1361
    %1969 = vmatprep.subr.bf16.mxu0 %v1358
    %1970 = vmatpush1.bf16.msra.mxu0 %v1357
    %1971 = vmatprep.subr.bf16.mxu0 %v1354
    %1972 = vmatpush1.bf16.msra.mxu0 %v1353
    %1973 = vmatprep.subr.bf16.mxu0 %v1350
    %1974 = vmatpush1.bf16.msra.mxu0 %v1349
    %1975 = vmatprep.subr.bf16.mxu0 %v1346
    %1976 = vmatpush1.bf16.msra.mxu0 %v1345
    %1977 = vmatprep.subr.bf16.mxu0 %v1342
    %1978 = vmatpush1.bf16.msra.mxu0 %v1341
    %1979 = vmatprep.subr.bf16.mxu0 %v1338
    %1980 = vmatpush1.bf16.msra.mxu0 %v1337
    %1981 = vmatprep.subr.bf16.mxu0 %v1398
    %1982 = vmatpush2.bf16.msra.mxu0 %v1397
    %1983 = vmatprep.subr.bf16.mxu0 %v1394
    %1984 = vmatpush2.bf16.msra.mxu0 %v1393
    %1985 = vmatprep.subr.bf16.mxu0 %v1390
    %1986 = vmatpush2.bf16.msra.mxu0 %v1389
    %1987 = vmatprep.subr.bf16.mxu0 %v1386
    %1988 = vmatpush2.bf16.msra.mxu0 %v1385
    %1989 = vmatprep.subr.bf16.mxu0 %v1382
    %1990 = vmatpush2.bf16.msra.mxu0 %v1381
    %1991 = vmatprep.subr.bf16.mxu0 %v1378
    %1992 = vmatpush2.bf16.msra.mxu0 %v1377
    %1993 = vmatprep.subr.bf16.mxu0 %v1374
    %1994 = vmatpush2.bf16.msra.mxu0 %v1373
    %1995 = vmatprep.subr.bf16.mxu0 %v1370
    %1996 = vmatpush2.bf16.msra.mxu0 %v1369
    %1997 = vmatprep.mubr.bf16.mxu0 %v158
    %1998 = vmatmul.mubr.bf16.gmra.mxu0 %v157
    %v1999 = vpop.f32.mrf.mxu0
    %v2000 = vadd.f32 %v1959, %v1999
    %v2001 = vpop.f32.mrf.mxu0
    %v2002 = vadd.f32 %v1961, %v2001
    %v2003 = vpop.f32.mrf.mxu0
    %v2004 = vpop.f32.mrf.mxu0
    %2005 = vdwg.mxu0
    %2006 = vmatprep.subr.bf16.mxu0 %v1430
    %2007 = vmatpush1.bf16.msra.mxu0 %v1429
    %2008 = vmatprep.subr.bf16.mxu0 %v1426
    %2009 = vmatpush1.bf16.msra.mxu0 %v1425
    %2010 = vmatprep.subr.bf16.mxu0 %v1422
    %2011 = vmatpush1.bf16.msra.mxu0 %v1421
    %2012 = vmatprep.subr.bf16.mxu0 %v1418
    %2013 = vmatpush1.bf16.msra.mxu0 %v1417
    %2014 = vmatprep.subr.bf16.mxu0 %v1414
    %2015 = vmatpush1.bf16.msra.mxu0 %v1413
    %2016 = vmatprep.subr.bf16.mxu0 %v1410
    %2017 = vmatpush1.bf16.msra.mxu0 %v1409
    %2018 = vmatprep.subr.bf16.mxu0 %v1406
    %2019 = vmatpush1.bf16.msra.mxu0 %v1405
    %2020 = vmatprep.subr.bf16.mxu0 %v1402
    %2021 = vmatpush1.bf16.msra.mxu0 %v1401
    %2022 = vmatprep.subr.bf16.mxu0 %v1462
    %2023 = vmatpush2.bf16.msra.mxu0 %v1461
    %2024 = vmatprep.subr.bf16.mxu0 %v1458
    %2025 = vmatpush2.bf16.msra.mxu0 %v1457
    %2026 = vmatprep.subr.bf16.mxu0 %v1454
    %2027 = vmatpush2.bf16.msra.mxu0 %v1453
    %2028 = vmatprep.subr.bf16.mxu0 %v1450
    %2029 = vmatpush2.bf16.msra.mxu0 %v1449
    %2030 = vmatprep.subr.bf16.mxu0 %v1446
    %2031 = vmatpush2.bf16.msra.mxu0 %v1445
    %2032 = vmatprep.subr.bf16.mxu0 %v1442
    %2033 = vmatpush2.bf16.msra.mxu0 %v1441
    %2034 = vmatprep.subr.bf16.mxu0 %v1438
    %2035 = vmatpush2.bf16.msra.mxu0 %v1437
    %2036 = vmatprep.subr.bf16.mxu0 %v1434
    %2037 = vmatpush2.bf16.msra.mxu0 %v1433
    %2038 = vmatprep.mubr.bf16.mxu0 %v160
    %2039 = vmatmul.mubr.bf16.gmra.mxu0 %v159
    %v2040 = vpop.f32.mrf.mxu0
    %v2041 = vadd.f32 %v2000, %v2040
    %v2042 = vpop.f32.mrf.mxu0
    %v2043 = vadd.f32 %v2002, %v2042
    %v2044 = vpop.f32.mrf.mxu0
    %v2045 = vpop.f32.mrf.mxu0
    %2046 = vdwg.mxu0
    %vm2047 = vcmp.ge.f32.partialorder %v1877, 0.0
    %vm2048 = vcmp.ge.f32.partialorder %v1879, 0.0
    %vm2049 = vcmp.ge.f32.partialorder %v2041, 0.0
    %vm2050 = vcmp.ge.f32.partialorder %v2043, 0.0
    %s2051 = sld [smem:[#allocation12]]
    %v2052 = vstv %s2051
    %v2053 = vmul.f32 %v2052, %v1877
    %v2054 = vmul.f32 %v2052, %v1879
    %v2055 = vmul.f32 %v2052, %v2041
    %v2056 = vmul.f32 %v2052, %v2043
    %v2057 = vsel %vm2047, %v1877, %v2053
    %v2058 = vsel %vm2048, %v1879, %v2054
    %v2059 = vsel %vm2049, %v2041, %v2055
    %v2060 = vsel %vm2050, %v2043, %v2056
    %v2061 = vpack.c.bf16 %v2057, %v2057
    %v2062 = vpack.c.bf16 %v2058, %v2058
    %v2063 = vpack.c.bf16 %v2059, %v2059
    %v2064 = vpack.c.bf16 %v2060, %v2060
    %v2065 = vld [vmem:[#allocation9] sm:$0xff]
    %v2066 = vld [vmem:[#allocation9 + $0x8] sm:$0xff]
    %v2067 = vld [vmem:[#allocation9 + $0x10] sm:$0xff]
    %v2068 = vld [vmem:[#allocation9 + $0x18] sm:$0xff]
    %v2069 = vld [vmem:[#allocation9 + $0x20] sm:$0xff]
    %v2070 = vld [vmem:[#allocation9 + $0x28] sm:$0xff]
    %v2071 = vld [vmem:[#allocation9 + $0x30] sm:$0xff]
    %v2072 = vld [vmem:[#allocation9 + $0x38] sm:$0xff]
    %v2073 = vld [vmem:[#allocation9 + $0x40] sm:$0xff]
    %v2074 = vld [vmem:[#allocation9 + $0x48] sm:$0xff]
    %v2075 = vld [vmem:[#allocation9 + $0x50] sm:$0xff]
    %v2076 = vld [vmem:[#allocation9 + $0x58] sm:$0xff]
    %v2077 = vld [vmem:[#allocation9 + $0x60] sm:$0xff]
    %v2078 = vld [vmem:[#allocation9 + $0x68] sm:$0xff]
    %v2079 = vld [vmem:[#allocation9 + $0x70] sm:$0xff]
    %v2080 = vld [vmem:[#allocation9 + $0x78] sm:$0xff]
    %v2081 = vld [vmem:[#allocation9 + $0x80] sm:$0xff]
    %v2082 = vld [vmem:[#allocation9 + $0x88] sm:$0xff]
    %v2083 = vld [vmem:[#allocation9 + $0x90] sm:$0xff]
    %v2084 = vld [vmem:[#allocation9 + $0x98] sm:$0xff]
    %v2085 = vld [vmem:[#allocation9 + $0xa0] sm:$0xff]
    %v2086 = vld [vmem:[#allocation9 + $0xa8] sm:$0xff]
    %v2087 = vld [vmem:[#allocation9 + $0xb0] sm:$0xff]
    %v2088 = vld [vmem:[#allocation9 + $0xb8] sm:$0xff]
    %v2089 = vld [vmem:[#allocation9 + $0xc0] sm:$0xff]
    %v2090 = vld [vmem:[#allocation9 + $0xc8] sm:$0xff]
    %v2091 = vld [vmem:[#allocation9 + $0xd0] sm:$0xff]
    %v2092 = vld [vmem:[#allocation9 + $0xd8] sm:$0xff]
    %v2093 = vld [vmem:[#allocation9 + $0xe0] sm:$0xff]
    %v2094 = vld [vmem:[#allocation9 + $0xe8] sm:$0xff]
    %v2095 = vld [vmem:[#allocation9 + $0xf0] sm:$0xff]
    %v2096 = vld [vmem:[#allocation9 + $0xf8] sm:$0xff]
    %v2097 = vld [vmem:[#allocation9 + $0x100] sm:$0xff]
    %v2098 = vld [vmem:[#allocation9 + $0x108] sm:$0xff]
    %v2099 = vld [vmem:[#allocation9 + $0x110] sm:$0xff]
    %v2100 = vld [vmem:[#allocation9 + $0x118] sm:$0xff]
    %v2101 = vld [vmem:[#allocation9 + $0x120] sm:$0xff]
    %v2102 = vld [vmem:[#allocation9 + $0x128] sm:$0xff]
    %v2103 = vld [vmem:[#allocation9 + $0x130] sm:$0xff]
    %v2104 = vld [vmem:[#allocation9 + $0x138] sm:$0xff]
    %v2105 = vld [vmem:[#allocation9 + $0x140] sm:$0xff]
    %v2106 = vld [vmem:[#allocation9 + $0x148] sm:$0xff]
    %v2107 = vld [vmem:[#allocation9 + $0x150] sm:$0xff]
    %v2108 = vld [vmem:[#allocation9 + $0x158] sm:$0xff]
    %v2109 = vld [vmem:[#allocation9 + $0x160] sm:$0xff]
    %v2110 = vld [vmem:[#allocation9 + $0x168] sm:$0xff]
    %v2111 = vld [vmem:[#allocation9 + $0x170] sm:$0xff]
    %v2112 = vld [vmem:[#allocation9 + $0x178] sm:$0xff]
    %v2113 = vld [vmem:[#allocation9 + $0x180] sm:$0xff]
    %v2114 = vld [vmem:[#allocation9 + $0x188] sm:$0xff]
    %v2115 = vld [vmem:[#allocation9 + $0x190] sm:$0xff]
    %v2116 = vld [vmem:[#allocation9 + $0x198] sm:$0xff]
    %v2117 = vld [vmem:[#allocation9 + $0x1a0] sm:$0xff]
    %v2118 = vld [vmem:[#allocation9 + $0x1a8] sm:$0xff]
    %v2119 = vld [vmem:[#allocation9 + $0x1b0] sm:$0xff]
    %v2120 = vld [vmem:[#allocation9 + $0x1b8] sm:$0xff]
    %v2121 = vld [vmem:[#allocation9 + $0x1c0] sm:$0xff]
    %v2122 = vld [vmem:[#allocation9 + $0x1c8] sm:$0xff]
    %v2123 = vld [vmem:[#allocation9 + $0x1d0] sm:$0xff]
    %v2124 = vld [vmem:[#allocation9 + $0x1d8] sm:$0xff]
    %v2125 = vld [vmem:[#allocation9 + $0x1e0] sm:$0xff]
    %v2126 = vld [vmem:[#allocation9 + $0x1e8] sm:$0xff]
    %v2127 = vld [vmem:[#allocation9 + $0x1f0] sm:$0xff]
    %v2128 = vld [vmem:[#allocation9 + $0x1f8] sm:$0xff]
    %v2129 = vld [vmem:[#allocation9 + $0x200] sm:$0xff]
    %v2130 = vld [vmem:[#allocation9 + $0x208] sm:$0xff]
    %v2131 = vld [vmem:[#allocation9 + $0x210] sm:$0xff]
    %v2132 = vld [vmem:[#allocation9 + $0x218] sm:$0xff]
    %v2133 = vld [vmem:[#allocation9 + $0x220] sm:$0xff]
    %v2134 = vld [vmem:[#allocation9 + $0x228] sm:$0xff]
    %v2135 = vld [vmem:[#allocation9 + $0x230] sm:$0xff]
    %v2136 = vld [vmem:[#allocation9 + $0x238] sm:$0xff]
    %v2137 = vld [vmem:[#allocation9 + $0x240] sm:$0xff]
    %v2138 = vld [vmem:[#allocation9 + $0x248] sm:$0xff]
    %v2139 = vld [vmem:[#allocation9 + $0x250] sm:$0xff]
    %v2140 = vld [vmem:[#allocation9 + $0x258] sm:$0xff]
    %v2141 = vld [vmem:[#allocation9 + $0x260] sm:$0xff]
    %v2142 = vld [vmem:[#allocation9 + $0x268] sm:$0xff]
    %v2143 = vld [vmem:[#allocation9 + $0x270] sm:$0xff]
    %v2144 = vld [vmem:[#allocation9 + $0x278] sm:$0xff]
    %v2145 = vld [vmem:[#allocation9 + $0x280] sm:$0xff]
    %v2146 = vld [vmem:[#allocation9 + $0x288] sm:$0xff]
    %v2147 = vld [vmem:[#allocation9 + $0x290] sm:$0xff]
    %v2148 = vld [vmem:[#allocation9 + $0x298] sm:$0xff]
    %v2149 = vld [vmem:[#allocation9 + $0x2a0] sm:$0xff]
    %v2150 = vld [vmem:[#allocation9 + $0x2a8] sm:$0xff]
    %v2151 = vld [vmem:[#allocation9 + $0x2b0] sm:$0xff]
    %v2152 = vld [vmem:[#allocation9 + $0x2b8] sm:$0xff]
    %v2153 = vld [vmem:[#allocation9 + $0x2c0] sm:$0xff]
    %v2154 = vld [vmem:[#allocation9 + $0x2c8] sm:$0xff]
    %v2155 = vld [vmem:[#allocation9 + $0x2d0] sm:$0xff]
    %v2156 = vld [vmem:[#allocation9 + $0x2d8] sm:$0xff]
    %v2157 = vld [vmem:[#allocation9 + $0x2e0] sm:$0xff]
    %v2158 = vld [vmem:[#allocation9 + $0x2e8] sm:$0xff]
    %v2159 = vld [vmem:[#allocation9 + $0x2f0] sm:$0xff]
    %v2160 = vld [vmem:[#allocation9 + $0x2f8] sm:$0xff]
    %v2161 = vld [vmem:[#allocation9 + $0x300] sm:$0xff]
    %v2162 = vld [vmem:[#allocation9 + $0x308] sm:$0xff]
    %v2163 = vld [vmem:[#allocation9 + $0x310] sm:$0xff]
    %v2164 = vld [vmem:[#allocation9 + $0x318] sm:$0xff]
    %v2165 = vld [vmem:[#allocation9 + $0x320] sm:$0xff]
    %v2166 = vld [vmem:[#allocation9 + $0x328] sm:$0xff]
    %v2167 = vld [vmem:[#allocation9 + $0x330] sm:$0xff]
    %v2168 = vld [vmem:[#allocation9 + $0x338] sm:$0xff]
    %v2169 = vld [vmem:[#allocation9 + $0x340] sm:$0xff]
    %v2170 = vld [vmem:[#allocation9 + $0x348] sm:$0xff]
    %v2171 = vld [vmem:[#allocation9 + $0x350] sm:$0xff]
    %v2172 = vld [vmem:[#allocation9 + $0x358] sm:$0xff]
    %v2173 = vld [vmem:[#allocation9 + $0x360] sm:$0xff]
    %v2174 = vld [vmem:[#allocation9 + $0x368] sm:$0xff]
    %v2175 = vld [vmem:[#allocation9 + $0x370] sm:$0xff]
    %v2176 = vld [vmem:[#allocation9 + $0x378] sm:$0xff]
    %v2177 = vld [vmem:[#allocation9 + $0x380] sm:$0xff]
    %v2178 = vld [vmem:[#allocation9 + $0x388] sm:$0xff]
    %v2179 = vld [vmem:[#allocation9 + $0x390] sm:$0xff]
    %v2180 = vld [vmem:[#allocation9 + $0x398] sm:$0xff]
    %v2181 = vld [vmem:[#allocation9 + $0x3a0] sm:$0xff]
    %v2182 = vld [vmem:[#allocation9 + $0x3a8] sm:$0xff]
    %v2183 = vld [vmem:[#allocation9 + $0x3b0] sm:$0xff]
    %v2184 = vld [vmem:[#allocation9 + $0x3b8] sm:$0xff]
    %v2185 = vld [vmem:[#allocation9 + $0x3c0] sm:$0xff]
    %v2186 = vld [vmem:[#allocation9 + $0x3c8] sm:$0xff]
    %v2187 = vld [vmem:[#allocation9 + $0x3d0] sm:$0xff]
    %v2188 = vld [vmem:[#allocation9 + $0x3d8] sm:$0xff]
    %v2189 = vld [vmem:[#allocation9 + $0x3e0] sm:$0xff]
    %v2190 = vld [vmem:[#allocation9 + $0x3e8] sm:$0xff]
    %v2191 = vld [vmem:[#allocation9 + $0x3f0] sm:$0xff]
    %v2192 = vld [vmem:[#allocation9 + $0x3f8] sm:$0xff]
    %v2193 = vld [vmem:[%s4] sm:$0xf]
    %v2195 = vlaneseq
    %v2196 = vshrl.u32 %v2195, 7
    %v2197 = vsub.s32 0, %v2196
    %v2198 = vrot.slane %v2193, %v2197
    %v2199 = vlaneseq
    %v2200 = vshrl.u32 %v2199, 7
    %v2201 = vsub.s32 1, %v2200
    %v2202 = vrot.slane %v2193, %v2201
    %v2203 = vlaneseq
    %v2204 = vshrl.u32 %v2203, 7
    %v2205 = vsub.s32 2, %v2204
    %v2206 = vrot.slane %v2193, %v2205
    %v2207 = vlaneseq
    %v2208 = vshrl.u32 %v2207, 7
    %v2209 = vsub.s32 3, %v2208
    %v2210 = vrot.slane %v2193, %v2209
    %v2343 = vunpack.c.l.b16 %v2065
    %v2344 = vunpack.c.h.b16 %v2065
    %v2345 = vunpack.c.l.b16 %v2066
    %v2346 = vunpack.c.h.b16 %v2066
    %v2347 = vunpack.c.l.b16 %v2067
    %v2348 = vunpack.c.h.b16 %v2067
    %v2349 = vunpack.c.l.b16 %v2068
    %v2350 = vunpack.c.h.b16 %v2068
    %v2351 = vunpack.c.l.b16 %v2069
    %v2352 = vunpack.c.h.b16 %v2069
    %v2353 = vunpack.c.l.b16 %v2070
    %v2354 = vunpack.c.h.b16 %v2070
    %v2355 = vunpack.c.l.b16 %v2071
    %v2356 = vunpack.c.h.b16 %v2071
    %v2357 = vunpack.c.l.b16 %v2072
    %v2358 = vunpack.c.h.b16 %v2072
    %v2359 = vunpack.c.l.b16 %v2073
    %v2360 = vunpack.c.h.b16 %v2073
    %v2361 = vunpack.c.l.b16 %v2074
    %v2362 = vunpack.c.h.b16 %v2074
    %v2363 = vunpack.c.l.b16 %v2075
    %v2364 = vunpack.c.h.b16 %v2075
    %v2365 = vunpack.c.l.b16 %v2076
    %v2366 = vunpack.c.h.b16 %v2076
    %v2367 = vunpack.c.l.b16 %v2077
    %v2368 = vunpack.c.h.b16 %v2077
    %v2369 = vunpack.c.l.b16 %v2078
    %v2370 = vunpack.c.h.b16 %v2078
    %v2371 = vunpack.c.l.b16 %v2079
    %v2372 = vunpack.c.h.b16 %v2079
    %v2373 = vunpack.c.l.b16 %v2080
    %v2374 = vunpack.c.h.b16 %v2080
    %v2375 = vunpack.c.l.b16 %v2081
    %v2376 = vunpack.c.h.b16 %v2081
    %v2377 = vunpack.c.l.b16 %v2082
    %v2378 = vunpack.c.h.b16 %v2082
    %v2379 = vunpack.c.l.b16 %v2083
    %v2380 = vunpack.c.h.b16 %v2083
    %v2381 = vunpack.c.l.b16 %v2084
    %v2382 = vunpack.c.h.b16 %v2084
    %v2383 = vunpack.c.l.b16 %v2085
    %v2384 = vunpack.c.h.b16 %v2085
    %v2385 = vunpack.c.l.b16 %v2086
    %v2386 = vunpack.c.h.b16 %v2086
    %v2387 = vunpack.c.l.b16 %v2087
    %v2388 = vunpack.c.h.b16 %v2087
    %v2389 = vunpack.c.l.b16 %v2088
    %v2390 = vunpack.c.h.b16 %v2088
    %v2391 = vunpack.c.l.b16 %v2089
    %v2392 = vunpack.c.h.b16 %v2089
    %v2393 = vunpack.c.l.b16 %v2090
    %v2394 = vunpack.c.h.b16 %v2090
    %v2395 = vunpack.c.l.b16 %v2091
    %v2396 = vunpack.c.h.b16 %v2091
    %v2397 = vunpack.c.l.b16 %v2092
    %v2398 = vunpack.c.h.b16 %v2092
    %v2399 = vunpack.c.l.b16 %v2093
    %v2400 = vunpack.c.h.b16 %v2093
    %v2401 = vunpack.c.l.b16 %v2094
    %v2402 = vunpack.c.h.b16 %v2094
    %v2403 = vunpack.c.l.b16 %v2095
    %v2404 = vunpack.c.h.b16 %v2095
    %v2405 = vunpack.c.l.b16 %v2096
    %v2406 = vunpack.c.h.b16 %v2096
    %v2407 = vunpack.c.l.b16 %v2097
    %v2408 = vunpack.c.h.b16 %v2097
    %v2409 = vunpack.c.l.b16 %v2098
    %v2410 = vunpack.c.h.b16 %v2098
    %v2411 = vunpack.c.l.b16 %v2099
    %v2412 = vunpack.c.h.b16 %v2099
    %v2413 = vunpack.c.l.b16 %v2100
    %v2414 = vunpack.c.h.b16 %v2100
    %v2415 = vunpack.c.l.b16 %v2101
    %v2416 = vunpack.c.h.b16 %v2101
    %v2417 = vunpack.c.l.b16 %v2102
    %v2418 = vunpack.c.h.b16 %v2102
    %v2419 = vunpack.c.l.b16 %v2103
    %v2420 = vunpack.c.h.b16 %v2103
    %v2421 = vunpack.c.l.b16 %v2104
    %v2422 = vunpack.c.h.b16 %v2104
    %v2423 = vunpack.c.l.b16 %v2105
    %v2424 = vunpack.c.h.b16 %v2105
    %v2425 = vunpack.c.l.b16 %v2106
    %v2426 = vunpack.c.h.b16 %v2106
    %v2427 = vunpack.c.l.b16 %v2107
    %v2428 = vunpack.c.h.b16 %v2107
    %v2429 = vunpack.c.l.b16 %v2108
    %v2430 = vunpack.c.h.b16 %v2108
    %v2431 = vunpack.c.l.b16 %v2109
    %v2432 = vunpack.c.h.b16 %v2109
    %v2433 = vunpack.c.l.b16 %v2110
    %v2434 = vunpack.c.h.b16 %v2110
    %v2435 = vunpack.c.l.b16 %v2111
    %v2436 = vunpack.c.h.b16 %v2111
    %v2437 = vunpack.c.l.b16 %v2112
    %v2438 = vunpack.c.h.b16 %v2112
    %v2439 = vunpack.c.l.b16 %v2113
    %v2440 = vunpack.c.h.b16 %v2113
    %v2441 = vunpack.c.l.b16 %v2114
    %v2442 = vunpack.c.h.b16 %v2114
    %v2443 = vunpack.c.l.b16 %v2115
    %v2444 = vunpack.c.h.b16 %v2115
    %v2445 = vunpack.c.l.b16 %v2116
    %v2446 = vunpack.c.h.b16 %v2116
    %v2447 = vunpack.c.l.b16 %v2117
    %v2448 = vunpack.c.h.b16 %v2117
    %v2449 = vunpack.c.l.b16 %v2118
    %v2450 = vunpack.c.h.b16 %v2118
    %v2451 = vunpack.c.l.b16 %v2119
    %v2452 = vunpack.c.h.b16 %v2119
    %v2453 = vunpack.c.l.b16 %v2120
    %v2454 = vunpack.c.h.b16 %v2120
    %v2455 = vunpack.c.l.b16 %v2121
    %v2456 = vunpack.c.h.b16 %v2121
    %v2457 = vunpack.c.l.b16 %v2122
    %v2458 = vunpack.c.h.b16 %v2122
    %v2459 = vunpack.c.l.b16 %v2123
    %v2460 = vunpack.c.h.b16 %v2123
    %v2461 = vunpack.c.l.b16 %v2124
    %v2462 = vunpack.c.h.b16 %v2124
    %v2463 = vunpack.c.l.b16 %v2125
    %v2464 = vunpack.c.h.b16 %v2125
    %v2465 = vunpack.c.l.b16 %v2126
    %v2466 = vunpack.c.h.b16 %v2126
    %v2467 = vunpack.c.l.b16 %v2127
    %v2468 = vunpack.c.h.b16 %v2127
    %v2469 = vunpack.c.l.b16 %v2128
    %v2470 = vunpack.c.h.b16 %v2128
    %v2471 = vunpack.c.l.b16 %v2129
    %v2472 = vunpack.c.h.b16 %v2129
    %v2473 = vunpack.c.l.b16 %v2130
    %v2474 = vunpack.c.h.b16 %v2130
    %v2475 = vunpack.c.l.b16 %v2131
    %v2476 = vunpack.c.h.b16 %v2131
    %v2477 = vunpack.c.l.b16 %v2132
    %v2478 = vunpack.c.h.b16 %v2132
    %v2479 = vunpack.c.l.b16 %v2133
    %v2480 = vunpack.c.h.b16 %v2133
    %v2481 = vunpack.c.l.b16 %v2134
    %v2482 = vunpack.c.h.b16 %v2134
    %v2483 = vunpack.c.l.b16 %v2135
    %v2484 = vunpack.c.h.b16 %v2135
    %v2485 = vunpack.c.l.b16 %v2136
    %v2486 = vunpack.c.h.b16 %v2136
    %v2487 = vunpack.c.l.b16 %v2137
    %v2488 = vunpack.c.h.b16 %v2137
    %v2489 = vunpack.c.l.b16 %v2138
    %v2490 = vunpack.c.h.b16 %v2138
    %v2491 = vunpack.c.l.b16 %v2139
    %v2492 = vunpack.c.h.b16 %v2139
    %v2493 = vunpack.c.l.b16 %v2140
    %v2494 = vunpack.c.h.b16 %v2140
    %v2495 = vunpack.c.l.b16 %v2141
    %v2496 = vunpack.c.h.b16 %v2141
    %v2497 = vunpack.c.l.b16 %v2142
    %v2498 = vunpack.c.h.b16 %v2142
    %v2499 = vunpack.c.l.b16 %v2143
    %v2500 = vunpack.c.h.b16 %v2143
    %v2501 = vunpack.c.l.b16 %v2144
    %v2502 = vunpack.c.h.b16 %v2144
    %v2503 = vunpack.c.l.b16 %v2145
    %v2504 = vunpack.c.h.b16 %v2145
    %v2505 = vunpack.c.l.b16 %v2146
    %v2506 = vunpack.c.h.b16 %v2146
    %v2507 = vunpack.c.l.b16 %v2147
    %v2508 = vunpack.c.h.b16 %v2147
    %v2509 = vunpack.c.l.b16 %v2148
    %v2510 = vunpack.c.h.b16 %v2148
    %v2511 = vunpack.c.l.b16 %v2149
    %v2512 = vunpack.c.h.b16 %v2149
    %v2513 = vunpack.c.l.b16 %v2150
    %v2514 = vunpack.c.h.b16 %v2150
    %v2515 = vunpack.c.l.b16 %v2151
    %v2516 = vunpack.c.h.b16 %v2151
    %v2517 = vunpack.c.l.b16 %v2152
    %v2518 = vunpack.c.h.b16 %v2152
    %v2519 = vunpack.c.l.b16 %v2153
    %v2520 = vunpack.c.h.b16 %v2153
    %v2521 = vunpack.c.l.b16 %v2154
    %v2522 = vunpack.c.h.b16 %v2154
    %v2523 = vunpack.c.l.b16 %v2155
    %v2524 = vunpack.c.h.b16 %v2155
    %v2525 = vunpack.c.l.b16 %v2156
    %v2526 = vunpack.c.h.b16 %v2156
    %v2527 = vunpack.c.l.b16 %v2157
    %v2528 = vunpack.c.h.b16 %v2157
    %v2529 = vunpack.c.l.b16 %v2158
    %v2530 = vunpack.c.h.b16 %v2158
    %v2531 = vunpack.c.l.b16 %v2159
    %v2532 = vunpack.c.h.b16 %v2159
    %v2533 = vunpack.c.l.b16 %v2160
    %v2534 = vunpack.c.h.b16 %v2160
    %v2535 = vunpack.c.l.b16 %v2161
    %v2536 = vunpack.c.h.b16 %v2161
    %v2537 = vunpack.c.l.b16 %v2162
    %v2538 = vunpack.c.h.b16 %v2162
    %v2539 = vunpack.c.l.b16 %v2163
    %v2540 = vunpack.c.h.b16 %v2163
    %v2541 = vunpack.c.l.b16 %v2164
    %v2542 = vunpack.c.h.b16 %v2164
    %v2543 = vunpack.c.l.b16 %v2165
    %v2544 = vunpack.c.h.b16 %v2165
    %v2545 = vunpack.c.l.b16 %v2166
    %v2546 = vunpack.c.h.b16 %v2166
    %v2547 = vunpack.c.l.b16 %v2167
    %v2548 = vunpack.c.h.b16 %v2167
    %v2549 = vunpack.c.l.b16 %v2168
    %v2550 = vunpack.c.h.b16 %v2168
    %v2551 = vunpack.c.l.b16 %v2169
    %v2552 = vunpack.c.h.b16 %v2169
    %v2553 = vunpack.c.l.b16 %v2170
    %v2554 = vunpack.c.h.b16 %v2170
    %v2555 = vunpack.c.l.b16 %v2171
    %v2556 = vunpack.c.h.b16 %v2171
    %v2557 = vunpack.c.l.b16 %v2172
    %v2558 = vunpack.c.h.b16 %v2172
    %v2559 = vunpack.c.l.b16 %v2173
    %v2560 = vunpack.c.h.b16 %v2173
    %v2561 = vunpack.c.l.b16 %v2174
    %v2562 = vunpack.c.h.b16 %v2174
    %v2563 = vunpack.c.l.b16 %v2175
    %v2564 = vunpack.c.h.b16 %v2175
    %v2565 = vunpack.c.l.b16 %v2176
    %v2566 = vunpack.c.h.b16 %v2176
    %v2567 = vunpack.c.l.b16 %v2177
    %v2568 = vunpack.c.h.b16 %v2177
    %v2569 = vunpack.c.l.b16 %v2178
    %v2570 = vunpack.c.h.b16 %v2178
    %v2571 = vunpack.c.l.b16 %v2179
    %v2572 = vunpack.c.h.b16 %v2179
    %v2573 = vunpack.c.l.b16 %v2180
    %v2574 = vunpack.c.h.b16 %v2180
    %v2575 = vunpack.c.l.b16 %v2181
    %v2576 = vunpack.c.h.b16 %v2181
    %v2577 = vunpack.c.l.b16 %v2182
    %v2578 = vunpack.c.h.b16 %v2182
    %v2579 = vunpack.c.l.b16 %v2183
    %v2580 = vunpack.c.h.b16 %v2183
    %v2581 = vunpack.c.l.b16 %v2184
    %v2582 = vunpack.c.h.b16 %v2184
    %v2583 = vunpack.c.l.b16 %v2185
    %v2584 = vunpack.c.h.b16 %v2185
    %v2585 = vunpack.c.l.b16 %v2186
    %v2586 = vunpack.c.h.b16 %v2186
    %v2587 = vunpack.c.l.b16 %v2187
    %v2588 = vunpack.c.h.b16 %v2187
    %v2589 = vunpack.c.l.b16 %v2188
    %v2590 = vunpack.c.h.b16 %v2188
    %v2591 = vunpack.c.l.b16 %v2189
    %v2592 = vunpack.c.h.b16 %v2189
    %v2593 = vunpack.c.l.b16 %v2190
    %v2594 = vunpack.c.h.b16 %v2190
    %v2595 = vunpack.c.l.b16 %v2191
    %v2596 = vunpack.c.h.b16 %v2191
    %v2597 = vunpack.c.l.b16 %v2192
    %v2598 = vunpack.c.h.b16 %v2192
    %v2599 = vpack.c.b16 %v2347, %v2343
    %v2600 = vpack.c.b16 %v2348, %v2344
    %v2601 = vpack.c.b16 %v2349, %v2345
    %v2602 = vpack.c.b16 %v2350, %v2346
    %v2603 = vpack.c.b16 %v2355, %v2351
    %v2604 = vpack.c.b16 %v2356, %v2352
    %v2605 = vpack.c.b16 %v2357, %v2353
    %v2606 = vpack.c.b16 %v2358, %v2354
    %v2607 = vpack.c.b16 %v2363, %v2359
    %v2608 = vpack.c.b16 %v2364, %v2360
    %v2609 = vpack.c.b16 %v2365, %v2361
    %v2610 = vpack.c.b16 %v2366, %v2362
    %v2611 = vpack.c.b16 %v2371, %v2367
    %v2612 = vpack.c.b16 %v2372, %v2368
    %v2613 = vpack.c.b16 %v2373, %v2369
    %v2614 = vpack.c.b16 %v2374, %v2370
    %v2615 = vpack.c.b16 %v2379, %v2375
    %v2616 = vpack.c.b16 %v2380, %v2376
    %v2617 = vpack.c.b16 %v2381, %v2377
    %v2618 = vpack.c.b16 %v2382, %v2378
    %v2619 = vpack.c.b16 %v2387, %v2383
    %v2620 = vpack.c.b16 %v2388, %v2384
    %v2621 = vpack.c.b16 %v2389, %v2385
    %v2622 = vpack.c.b16 %v2390, %v2386
    %v2623 = vpack.c.b16 %v2395, %v2391
    %v2624 = vpack.c.b16 %v2396, %v2392
    %v2625 = vpack.c.b16 %v2397, %v2393
    %v2626 = vpack.c.b16 %v2398, %v2394
    %v2627 = vpack.c.b16 %v2403, %v2399
    %v2628 = vpack.c.b16 %v2404, %v2400
    %v2629 = vpack.c.b16 %v2405, %v2401
    %v2630 = vpack.c.b16 %v2406, %v2402
    %v2631 = vpack.c.b16 %v2411, %v2407
    %v2632 = vpack.c.b16 %v2412, %v2408
    %v2633 = vpack.c.b16 %v2413, %v2409
    %v2634 = vpack.c.b16 %v2414, %v2410
    %v2635 = vpack.c.b16 %v2419, %v2415
    %v2636 = vpack.c.b16 %v2420, %v2416
    %v2637 = vpack.c.b16 %v2421, %v2417
    %v2638 = vpack.c.b16 %v2422, %v2418
    %v2639 = vpack.c.b16 %v2427, %v2423
    %v2640 = vpack.c.b16 %v2428, %v2424
    %v2641 = vpack.c.b16 %v2429, %v2425
    %v2642 = vpack.c.b16 %v2430, %v2426
    %v2643 = vpack.c.b16 %v2435, %v2431
    %v2644 = vpack.c.b16 %v2436, %v2432
    %v2645 = vpack.c.b16 %v2437, %v2433
    %v2646 = vpack.c.b16 %v2438, %v2434
    %v2647 = vpack.c.b16 %v2443, %v2439
    %v2648 = vpack.c.b16 %v2444, %v2440
    %v2649 = vpack.c.b16 %v2445, %v2441
    %v2650 = vpack.c.b16 %v2446, %v2442
    %v2651 = vpack.c.b16 %v2451, %v2447
    %v2652 = vpack.c.b16 %v2452, %v2448
    %v2653 = vpack.c.b16 %v2453, %v2449
    %v2654 = vpack.c.b16 %v2454, %v2450
    %v2655 = vpack.c.b16 %v2459, %v2455
    %v2656 = vpack.c.b16 %v2460, %v2456
    %v2657 = vpack.c.b16 %v2461, %v2457
    %v2658 = vpack.c.b16 %v2462, %v2458
    %v2659 = vpack.c.b16 %v2467, %v2463
    %v2660 = vpack.c.b16 %v2468, %v2464
    %v2661 = vpack.c.b16 %v2469, %v2465
    %v2662 = vpack.c.b16 %v2470, %v2466
    %v2663 = vpack.c.b16 %v2475, %v2471
    %v2664 = vpack.c.b16 %v2476, %v2472
    %v2665 = vpack.c.b16 %v2477, %v2473
    %v2666 = vpack.c.b16 %v2478, %v2474
    %v2667 = vpack.c.b16 %v2483, %v2479
    %v2668 = vpack.c.b16 %v2484, %v2480
    %v2669 = vpack.c.b16 %v2485, %v2481
    %v2670 = vpack.c.b16 %v2486, %v2482
    %v2671 = vpack.c.b16 %v2491, %v2487
    %v2672 = vpack.c.b16 %v2492, %v2488
    %v2673 = vpack.c.b16 %v2493, %v2489
    %v2674 = vpack.c.b16 %v2494, %v2490
    %v2675 = vpack.c.b16 %v2499, %v2495
    %v2676 = vpack.c.b16 %v2500, %v2496
    %v2677 = vpack.c.b16 %v2501, %v2497
    %v2678 = vpack.c.b16 %v2502, %v2498
    %v2679 = vpack.c.b16 %v2507, %v2503
    %v2680 = vpack.c.b16 %v2508, %v2504
    %v2681 = vpack.c.b16 %v2509, %v2505
    %v2682 = vpack.c.b16 %v2510, %v2506
    %v2683 = vpack.c.b16 %v2515, %v2511
    %v2684 = vpack.c.b16 %v2516, %v2512
    %v2685 = vpack.c.b16 %v2517, %v2513
    %v2686 = vpack.c.b16 %v2518, %v2514
    %v2687 = vpack.c.b16 %v2523, %v2519
    %v2688 = vpack.c.b16 %v2524, %v2520
    %v2689 = vpack.c.b16 %v2525, %v2521
    %v2690 = vpack.c.b16 %v2526, %v2522
    %v2691 = vpack.c.b16 %v2531, %v2527
    %v2692 = vpack.c.b16 %v2532, %v2528
    %v2693 = vpack.c.b16 %v2533, %v2529
    %v2694 = vpack.c.b16 %v2534, %v2530
    %v2695 = vpack.c.b16 %v2539, %v2535
    %v2696 = vpack.c.b16 %v2540, %v2536
    %v2697 = vpack.c.b16 %v2541, %v2537
    %v2698 = vpack.c.b16 %v2542, %v2538
    %v2699 = vpack.c.b16 %v2547, %v2543
    %v2700 = vpack.c.b16 %v2548, %v2544
    %v2701 = vpack.c.b16 %v2549, %v2545
    %v2702 = vpack.c.b16 %v2550, %v2546
    %v2703 = vpack.c.b16 %v2555, %v2551
    %v2704 = vpack.c.b16 %v2556, %v2552
    %v2705 = vpack.c.b16 %v2557, %v2553
    %v2706 = vpack.c.b16 %v2558, %v2554
    %v2707 = vpack.c.b16 %v2563, %v2559
    %v2708 = vpack.c.b16 %v2564, %v2560
    %v2709 = vpack.c.b16 %v2565, %v2561
    %v2710 = vpack.c.b16 %v2566, %v2562
    %v2711 = vpack.c.b16 %v2571, %v2567
    %v2712 = vpack.c.b16 %v2572, %v2568
    %v2713 = vpack.c.b16 %v2573, %v2569
    %v2714 = vpack.c.b16 %v2574, %v2570
    %v2715 = vpack.c.b16 %v2579, %v2575
    %v2716 = vpack.c.b16 %v2580, %v2576
    %v2717 = vpack.c.b16 %v2581, %v2577
    %v2718 = vpack.c.b16 %v2582, %v2578
    %v2719 = vpack.c.b16 %v2587, %v2583
    %v2720 = vpack.c.b16 %v2588, %v2584
    %v2721 = vpack.c.b16 %v2589, %v2585
    %v2722 = vpack.c.b16 %v2590, %v2586
    %v2723 = vpack.c.b16 %v2595, %v2591
    %v2724 = vpack.c.b16 %v2596, %v2592
    %v2725 = vpack.c.b16 %v2597, %v2593
    %v2726 = vpack.c.b16 %v2598, %v2594
    %2855 = vmatprep.subr.bf16.mxu0 %v2628
    %2856 = vmatpush1.bf16.msra.mxu0 %v2627
    %2857 = vmatprep.subr.bf16.mxu0 %v2624
    %2858 = vmatpush1.bf16.msra.mxu0 %v2623
    %2859 = vmatprep.subr.bf16.mxu0 %v2620
    %2860 = vmatpush1.bf16.msra.mxu0 %v2619
    %2861 = vmatprep.subr.bf16.mxu0 %v2616
    %2862 = vmatpush1.bf16.msra.mxu0 %v2615
    %2863 = vmatprep.subr.bf16.mxu0 %v2612
    %2864 = vmatpush1.bf16.msra.mxu0 %v2611
    %2865 = vmatprep.subr.bf16.mxu0 %v2608
    %2866 = vmatpush1.bf16.msra.mxu0 %v2607
    %2867 = vmatprep.subr.bf16.mxu0 %v2604
    %2868 = vmatpush1.bf16.msra.mxu0 %v2603
    %2869 = vmatprep.subr.bf16.mxu0 %v2600
    %2870 = vmatpush1.bf16.msra.mxu0 %v2599
    %2871 = vmatprep.subr.bf16.mxu0 %v2660
    %2872 = vmatpush2.bf16.msra.mxu0 %v2659
    %2873 = vmatprep.subr.bf16.mxu0 %v2656
    %2874 = vmatpush2.bf16.msra.mxu0 %v2655
    %2875 = vmatprep.subr.bf16.mxu0 %v2652
    %2876 = vmatpush2.bf16.msra.mxu0 %v2651
    %2877 = vmatprep.subr.bf16.mxu0 %v2648
    %2878 = vmatpush2.bf16.msra.mxu0 %v2647
    %2879 = vmatprep.subr.bf16.mxu0 %v2644
    %2880 = vmatpush2.bf16.msra.mxu0 %v2643
    %2881 = vmatprep.subr.bf16.mxu0 %v2640
    %2882 = vmatpush2.bf16.msra.mxu0 %v2639
    %2883 = vmatprep.subr.bf16.mxu0 %v2636
    %2884 = vmatpush2.bf16.msra.mxu0 %v2635
    %2885 = vmatprep.subr.bf16.mxu0 %v2632
    %2886 = vmatpush2.bf16.msra.mxu0 %v2631
    %2887 = vmatprep.mubr.bf16.mxu0 %v2062
    %2888 = vmatmul.mubr.bf16.gmra.mxu0 %v2061
    %v2889 = vpop.f32.mrf.mxu0
    %v2890 = vadd.f32 %v2198, %v2889
    %v2891 = vpop.f32.mrf.mxu0
    %v2892 = vadd.f32 %v2202, %v2891
    %v2893 = vpop.f32.mrf.mxu0
    %v2894 = vpop.f32.mrf.mxu0
    %2895 = vdwg.mxu0
    %2896 = vmatprep.subr.bf16.mxu0 %v2692
    %2897 = vmatpush1.bf16.msra.mxu0 %v2691
    %2898 = vmatprep.subr.bf16.mxu0 %v2688
    %2899 = vmatpush1.bf16.msra.mxu0 %v2687
    %2900 = vmatprep.subr.bf16.mxu0 %v2684
    %2901 = vmatpush1.bf16.msra.mxu0 %v2683
    %2902 = vmatprep.subr.bf16.mxu0 %v2680
    %2903 = vmatpush1.bf16.msra.mxu0 %v2679
    %2904 = vmatprep.subr.bf16.mxu0 %v2676
    %2905 = vmatpush1.bf16.msra.mxu0 %v2675
    %2906 = vmatprep.subr.bf16.mxu0 %v2672
    %2907 = vmatpush1.bf16.msra.mxu0 %v2671
    %2908 = vmatprep.subr.bf16.mxu0 %v2668
    %2909 = vmatpush1.bf16.msra.mxu0 %v2667
    %2910 = vmatprep.subr.bf16.mxu0 %v2664
    %2911 = vmatpush1.bf16.msra.mxu0 %v2663
    %2912 = vmatprep.subr.bf16.mxu0 %v2724
    %2913 = vmatpush2.bf16.msra.mxu0 %v2723
    %2914 = vmatprep.subr.bf16.mxu0 %v2720
    %2915 = vmatpush2.bf16.msra.mxu0 %v2719
    %2916 = vmatprep.subr.bf16.mxu0 %v2716
    %2917 = vmatpush2.bf16.msra.mxu0 %v2715
    %2918 = vmatprep.subr.bf16.mxu0 %v2712
    %2919 = vmatpush2.bf16.msra.mxu0 %v2711
    %2920 = vmatprep.subr.bf16.mxu0 %v2708
    %2921 = vmatpush2.bf16.msra.mxu0 %v2707
    %2922 = vmatprep.subr.bf16.mxu0 %v2704
    %2923 = vmatpush2.bf16.msra.mxu0 %v2703
    %2924 = vmatprep.subr.bf16.mxu0 %v2700
    %2925 = vmatpush2.bf16.msra.mxu0 %v2699
    %2926 = vmatprep.subr.bf16.mxu0 %v2696
    %2927 = vmatpush2.bf16.msra.mxu0 %v2695
    %2928 = vmatprep.mubr.bf16.mxu0 %v2064
    %2929 = vmatmul.mubr.bf16.gmra.mxu0 %v2063
    %v2930 = vpop.f32.mrf.mxu0
    %v2931 = vadd.f32 %v2890, %v2930
    %v2932 = vpop.f32.mrf.mxu0
    %v2933 = vadd.f32 %v2892, %v2932
    %v2934 = vpop.f32.mrf.mxu0
    %v2935 = vpop.f32.mrf.mxu0
    %2936 = vdwg.mxu0
    %2937 = vmatprep.subr.bf16.mxu0 %v2630
    %2938 = vmatpush1.bf16.msra.mxu0 %v2629
    %2939 = vmatprep.subr.bf16.mxu0 %v2626
    %2940 = vmatpush1.bf16.msra.mxu0 %v2625
    %2941 = vmatprep.subr.bf16.mxu0 %v2622
    %2942 = vmatpush1.bf16.msra.mxu0 %v2621
    %2943 = vmatprep.subr.bf16.mxu0 %v2618
    %2944 = vmatpush1.bf16.msra.mxu0 %v2617
    %2945 = vmatprep.subr.bf16.mxu0 %v2614
    %2946 = vmatpush1.bf16.msra.mxu0 %v2613
    %2947 = vmatprep.subr.bf16.mxu0 %v2610
    %2948 = vmatpush1.bf16.msra.mxu0 %v2609
    %2949 = vmatprep.subr.bf16.mxu0 %v2606
    %2950 = vmatpush1.bf16.msra.mxu0 %v2605
    %2951 = vmatprep.subr.bf16.mxu0 %v2602
    %2952 = vmatpush1.bf16.msra.mxu0 %v2601
    %2953 = vmatprep.subr.bf16.mxu0 %v2662
    %2954 = vmatpush2.bf16.msra.mxu0 %v2661
    %2955 = vmatprep.subr.bf16.mxu0 %v2658
    %2956 = vmatpush2.bf16.msra.mxu0 %v2657
    %2957 = vmatprep.subr.bf16.mxu0 %v2654
    %2958 = vmatpush2.bf16.msra.mxu0 %v2653
    %2959 = vmatprep.subr.bf16.mxu0 %v2650
    %2960 = vmatpush2.bf16.msra.mxu0 %v2649
    %2961 = vmatprep.subr.bf16.mxu0 %v2646
    %2962 = vmatpush2.bf16.msra.mxu0 %v2645
    %2963 = vmatprep.subr.bf16.mxu0 %v2642
    %2964 = vmatpush2.bf16.msra.mxu0 %v2641
    %2965 = vmatprep.subr.bf16.mxu0 %v2638
    %2966 = vmatpush2.bf16.msra.mxu0 %v2637
    %2967 = vmatprep.subr.bf16.mxu0 %v2634
    %2968 = vmatpush2.bf16.msra.mxu0 %v2633
    %2969 = vmatprep.mubr.bf16.mxu0 %v2062
    %2970 = vmatmul.mubr.bf16.gmra.mxu0 %v2061
    %v2971 = vpop.f32.mrf.mxu0
    %v2972 = vadd.f32 %v2206, %v2971
    %v2973 = vpop.f32.mrf.mxu0
    %v2974 = vadd.f32 %v2210, %v2973
    %v2975 = vpop.f32.mrf.mxu0
    %v2976 = vpop.f32.mrf.mxu0
    %2977 = vdwg.mxu0
    %2978 = vmatprep.subr.bf16.mxu0 %v2694
    %2979 = vmatpush1.bf16.msra.mxu0 %v2693
    %2980 = vmatprep.subr.bf16.mxu0 %v2690
    %2981 = vmatpush1.bf16.msra.mxu0 %v2689
    %2982 = vmatprep.subr.bf16.mxu0 %v2686
    %2983 = vmatpush1.bf16.msra.mxu0 %v2685
    %2984 = vmatprep.subr.bf16.mxu0 %v2682
    %2985 = vmatpush1.bf16.msra.mxu0 %v2681
    %2986 = vmatprep.subr.bf16.mxu0 %v2678
    %2987 = vmatpush1.bf16.msra.mxu0 %v2677
    %2988 = vmatprep.subr.bf16.mxu0 %v2674
    %2989 = vmatpush1.bf16.msra.mxu0 %v2673
    %2990 = vmatprep.subr.bf16.mxu0 %v2670
    %2991 = vmatpush1.bf16.msra.mxu0 %v2669
    %2992 = vmatprep.subr.bf16.mxu0 %v2666
    %2993 = vmatpush1.bf16.msra.mxu0 %v2665
    %2994 = vmatprep.subr.bf16.mxu0 %v2726
    %2995 = vmatpush2.bf16.msra.mxu0 %v2725
    %2996 = vmatprep.subr.bf16.mxu0 %v2722
    %2997 = vmatpush2.bf16.msra.mxu0 %v2721
    %2998 = vmatprep.subr.bf16.mxu0 %v2718
    %2999 = vmatpush2.bf16.msra.mxu0 %v2717
    %3000 = vmatprep.subr.bf16.mxu0 %v2714
    %3001 = vmatpush2.bf16.msra.mxu0 %v2713
    %3002 = vmatprep.subr.bf16.mxu0 %v2710
    %3003 = vmatpush2.bf16.msra.mxu0 %v2709
    %3004 = vmatprep.subr.bf16.mxu0 %v2706
    %3005 = vmatpush2.bf16.msra.mxu0 %v2705
    %3006 = vmatprep.subr.bf16.mxu0 %v2702
    %3007 = vmatpush2.bf16.msra.mxu0 %v2701
    %3008 = vmatprep.subr.bf16.mxu0 %v2698
    %3009 = vmatpush2.bf16.msra.mxu0 %v2697
    %3010 = vmatprep.mubr.bf16.mxu0 %v2064
    %3011 = vmatmul.mubr.bf16.gmra.mxu0 %v2063
    %v3012 = vpop.f32.mrf.mxu0
    %v3013 = vadd.f32 %v2972, %v3012
    %v3014 = vpop.f32.mrf.mxu0
    %v3015 = vadd.f32 %v2974, %v3014
    %v3016 = vpop.f32.mrf.mxu0
    %v3017 = vpop.f32.mrf.mxu0
    %3018 = vdwg.mxu0
    %vm3019 = vcmp.ge.f32.partialorder %v2931, 0.0
    %vm3020 = vcmp.ge.f32.partialorder %v2933, 0.0
    %vm3021 = vcmp.ge.f32.partialorder %v3013, 0.0
    %vm3022 = vcmp.ge.f32.partialorder %v3015, 0.0
    %s3023 = sld [smem:[#allocation12 + $0x1]]
    %v3024 = vstv %s3023
    %v3025 = vmul.f32 %v3024, %v2931
    %v3026 = vmul.f32 %v3024, %v2933
    %v3027 = vmul.f32 %v3024, %v3013
    %v3028 = vmul.f32 %v3024, %v3015
    %v3029 = vsel %vm3019, %v2931, %v3025
    %v3030 = vsel %vm3020, %v2933, %v3026
    %v3031 = vsel %vm3021, %v3013, %v3027
    %v3032 = vsel %vm3022, %v3015, %v3028
    %v3033 = vpack.c.bf16 %v3029, %v3029
    %v3034 = vpack.c.bf16 %v3030, %v3030
    %v3035 = vpack.c.bf16 %v3031, %v3031
    %v3036 = vpack.c.bf16 %v3032, %v3032
    %v3037 = vld [vmem:[#allocation11] sm:$0xff]
    %v3038 = vld [vmem:[#allocation11 + $0x8] sm:$0xff]
    %v3039 = vld [vmem:[#allocation11 + $0x10] sm:$0xff]
    %v3040 = vld [vmem:[#allocation11 + $0x18] sm:$0xff]
    %v3041 = vld [vmem:[#allocation11 + $0x20] sm:$0xff]
    %v3042 = vld [vmem:[#allocation11 + $0x28] sm:$0xff]
    %v3043 = vld [vmem:[#allocation11 + $0x30] sm:$0xff]
    %v3044 = vld [vmem:[#allocation11 + $0x38] sm:$0xff]
    %v3045 = vld [vmem:[#allocation11 + $0x40] sm:$0xff]
    %v3046 = vld [vmem:[#allocation11 + $0x48] sm:$0xff]
    %v3047 = vld [vmem:[#allocation11 + $0x50] sm:$0xff]
    %v3048 = vld [vmem:[#allocation11 + $0x58] sm:$0xff]
    %v3049 = vld [vmem:[#allocation11 + $0x60] sm:$0xff]
    %v3050 = vld [vmem:[#allocation11 + $0x68] sm:$0xff]
    %v3051 = vld [vmem:[#allocation11 + $0x70] sm:$0xff]
    %v3052 = vld [vmem:[#allocation11 + $0x78] sm:$0xff]
    %v3053 = vld [vmem:[#allocation11 + $0x80] sm:$0xff]
    %v3054 = vld [vmem:[#allocation11 + $0x88] sm:$0xff]
    %v3055 = vld [vmem:[#allocation11 + $0x90] sm:$0xff]
    %v3056 = vld [vmem:[#allocation11 + $0x98] sm:$0xff]
    %v3057 = vld [vmem:[#allocation11 + $0xa0] sm:$0xff]
    %v3058 = vld [vmem:[#allocation11 + $0xa8] sm:$0xff]
    %v3059 = vld [vmem:[#allocation11 + $0xb0] sm:$0xff]
    %v3060 = vld [vmem:[#allocation11 + $0xb8] sm:$0xff]
    %v3061 = vld [vmem:[#allocation11 + $0xc0] sm:$0xff]
    %v3062 = vld [vmem:[#allocation11 + $0xc8] sm:$0xff]
    %v3063 = vld [vmem:[#allocation11 + $0xd0] sm:$0xff]
    %v3064 = vld [vmem:[#allocation11 + $0xd8] sm:$0xff]
    %v3065 = vld [vmem:[#allocation11 + $0xe0] sm:$0xff]
    %v3066 = vld [vmem:[#allocation11 + $0xe8] sm:$0xff]
    %v3067 = vld [vmem:[#allocation11 + $0xf0] sm:$0xff]
    %v3068 = vld [vmem:[#allocation11 + $0xf8] sm:$0xff]
    %v3069 = vld [vmem:[#allocation11 + $0x100] sm:$0xff]
    %v3070 = vld [vmem:[#allocation11 + $0x108] sm:$0xff]
    %v3071 = vld [vmem:[#allocation11 + $0x110] sm:$0xff]
    %v3072 = vld [vmem:[#allocation11 + $0x118] sm:$0xff]
    %v3073 = vld [vmem:[#allocation11 + $0x120] sm:$0xff]
    %v3074 = vld [vmem:[#allocation11 + $0x128] sm:$0xff]
    %v3075 = vld [vmem:[#allocation11 + $0x130] sm:$0xff]
    %v3076 = vld [vmem:[#allocation11 + $0x138] sm:$0xff]
    %v3077 = vld [vmem:[#allocation11 + $0x140] sm:$0xff]
    %v3078 = vld [vmem:[#allocation11 + $0x148] sm:$0xff]
    %v3079 = vld [vmem:[#allocation11 + $0x150] sm:$0xff]
    %v3080 = vld [vmem:[#allocation11 + $0x158] sm:$0xff]
    %v3081 = vld [vmem:[#allocation11 + $0x160] sm:$0xff]
    %v3082 = vld [vmem:[#allocation11 + $0x168] sm:$0xff]
    %v3083 = vld [vmem:[#allocation11 + $0x170] sm:$0xff]
    %v3084 = vld [vmem:[#allocation11 + $0x178] sm:$0xff]
    %v3085 = vld [vmem:[#allocation11 + $0x180] sm:$0xff]
    %v3086 = vld [vmem:[#allocation11 + $0x188] sm:$0xff]
    %v3087 = vld [vmem:[#allocation11 + $0x190] sm:$0xff]
    %v3088 = vld [vmem:[#allocation11 + $0x198] sm:$0xff]
    %v3089 = vld [vmem:[#allocation11 + $0x1a0] sm:$0xff]
    %v3090 = vld [vmem:[#allocation11 + $0x1a8] sm:$0xff]
    %v3091 = vld [vmem:[#allocation11 + $0x1b0] sm:$0xff]
    %v3092 = vld [vmem:[#allocation11 + $0x1b8] sm:$0xff]
    %v3093 = vld [vmem:[#allocation11 + $0x1c0] sm:$0xff]
    %v3094 = vld [vmem:[#allocation11 + $0x1c8] sm:$0xff]
    %v3095 = vld [vmem:[#allocation11 + $0x1d0] sm:$0xff]
    %v3096 = vld [vmem:[#allocation11 + $0x1d8] sm:$0xff]
    %v3097 = vld [vmem:[#allocation11 + $0x1e0] sm:$0xff]
    %v3098 = vld [vmem:[#allocation11 + $0x1e8] sm:$0xff]
    %v3099 = vld [vmem:[#allocation11 + $0x1f0] sm:$0xff]
    %v3100 = vld [vmem:[#allocation11 + $0x1f8] sm:$0xff]
    %v3101 = vld [vmem:[#allocation11 + $0x200] sm:$0xff]
    %v3102 = vld [vmem:[#allocation11 + $0x208] sm:$0xff]
    %v3103 = vld [vmem:[#allocation11 + $0x210] sm:$0xff]
    %v3104 = vld [vmem:[#allocation11 + $0x218] sm:$0xff]
    %v3105 = vld [vmem:[#allocation11 + $0x220] sm:$0xff]
    %v3106 = vld [vmem:[#allocation11 + $0x228] sm:$0xff]
    %v3107 = vld [vmem:[#allocation11 + $0x230] sm:$0xff]
    %v3108 = vld [vmem:[#allocation11 + $0x238] sm:$0xff]
    %v3109 = vld [vmem:[#allocation11 + $0x240] sm:$0xff]
    %v3110 = vld [vmem:[#allocation11 + $0x248] sm:$0xff]
    %v3111 = vld [vmem:[#allocation11 + $0x250] sm:$0xff]
    %v3112 = vld [vmem:[#allocation11 + $0x258] sm:$0xff]
    %v3113 = vld [vmem:[#allocation11 + $0x260] sm:$0xff]
    %v3114 = vld [vmem:[#allocation11 + $0x268] sm:$0xff]
    %v3115 = vld [vmem:[#allocation11 + $0x270] sm:$0xff]
    %v3116 = vld [vmem:[#allocation11 + $0x278] sm:$0xff]
    %v3117 = vld [vmem:[#allocation11 + $0x280] sm:$0xff]
    %v3118 = vld [vmem:[#allocation11 + $0x288] sm:$0xff]
    %v3119 = vld [vmem:[#allocation11 + $0x290] sm:$0xff]
    %v3120 = vld [vmem:[#allocation11 + $0x298] sm:$0xff]
    %v3121 = vld [vmem:[#allocation11 + $0x2a0] sm:$0xff]
    %v3122 = vld [vmem:[#allocation11 + $0x2a8] sm:$0xff]
    %v3123 = vld [vmem:[#allocation11 + $0x2b0] sm:$0xff]
    %v3124 = vld [vmem:[#allocation11 + $0x2b8] sm:$0xff]
    %v3125 = vld [vmem:[#allocation11 + $0x2c0] sm:$0xff]
    %v3126 = vld [vmem:[#allocation11 + $0x2c8] sm:$0xff]
    %v3127 = vld [vmem:[#allocation11 + $0x2d0] sm:$0xff]
    %v3128 = vld [vmem:[#allocation11 + $0x2d8] sm:$0xff]
    %v3129 = vld [vmem:[#allocation11 + $0x2e0] sm:$0xff]
    %v3130 = vld [vmem:[#allocation11 + $0x2e8] sm:$0xff]
    %v3131 = vld [vmem:[#allocation11 + $0x2f0] sm:$0xff]
    %v3132 = vld [vmem:[#allocation11 + $0x2f8] sm:$0xff]
    %v3133 = vld [vmem:[#allocation11 + $0x300] sm:$0xff]
    %v3134 = vld [vmem:[#allocation11 + $0x308] sm:$0xff]
    %v3135 = vld [vmem:[#allocation11 + $0x310] sm:$0xff]
    %v3136 = vld [vmem:[#allocation11 + $0x318] sm:$0xff]
    %v3137 = vld [vmem:[#allocation11 + $0x320] sm:$0xff]
    %v3138 = vld [vmem:[#allocation11 + $0x328] sm:$0xff]
    %v3139 = vld [vmem:[#allocation11 + $0x330] sm:$0xff]
    %v3140 = vld [vmem:[#allocation11 + $0x338] sm:$0xff]
    %v3141 = vld [vmem:[#allocation11 + $0x340] sm:$0xff]
    %v3142 = vld [vmem:[#allocation11 + $0x348] sm:$0xff]
    %v3143 = vld [vmem:[#allocation11 + $0x350] sm:$0xff]
    %v3144 = vld [vmem:[#allocation11 + $0x358] sm:$0xff]
    %v3145 = vld [vmem:[#allocation11 + $0x360] sm:$0xff]
    %v3146 = vld [vmem:[#allocation11 + $0x368] sm:$0xff]
    %v3147 = vld [vmem:[#allocation11 + $0x370] sm:$0xff]
    %v3148 = vld [vmem:[#allocation11 + $0x378] sm:$0xff]
    %v3149 = vld [vmem:[#allocation11 + $0x380] sm:$0xff]
    %v3150 = vld [vmem:[#allocation11 + $0x388] sm:$0xff]
    %v3151 = vld [vmem:[#allocation11 + $0x390] sm:$0xff]
    %v3152 = vld [vmem:[#allocation11 + $0x398] sm:$0xff]
    %v3153 = vld [vmem:[#allocation11 + $0x3a0] sm:$0xff]
    %v3154 = vld [vmem:[#allocation11 + $0x3a8] sm:$0xff]
    %v3155 = vld [vmem:[#allocation11 + $0x3b0] sm:$0xff]
    %v3156 = vld [vmem:[#allocation11 + $0x3b8] sm:$0xff]
    %v3157 = vld [vmem:[#allocation11 + $0x3c0] sm:$0xff]
    %v3158 = vld [vmem:[#allocation11 + $0x3c8] sm:$0xff]
    %v3159 = vld [vmem:[#allocation11 + $0x3d0] sm:$0xff]
    %v3160 = vld [vmem:[#allocation11 + $0x3d8] sm:$0xff]
    %v3161 = vld [vmem:[#allocation11 + $0x3e0] sm:$0xff]
    %v3162 = vld [vmem:[#allocation11 + $0x3e8] sm:$0xff]
    %v3163 = vld [vmem:[#allocation11 + $0x3f0] sm:$0xff]
    %v3164 = vld [vmem:[#allocation11 + $0x3f8] sm:$0xff]
    %v3165 = vld [vmem:[%s6] sm:$0xf]
    %v3167 = vlaneseq
    %v3168 = vshrl.u32 %v3167, 7
    %v3169 = vsub.s32 0, %v3168
    %v3170 = vrot.slane %v3165, %v3169
    %v3171 = vlaneseq
    %v3172 = vshrl.u32 %v3171, 7
    %v3173 = vsub.s32 1, %v3172
    %v3174 = vrot.slane %v3165, %v3173
    %v3175 = vlaneseq
    %v3176 = vshrl.u32 %v3175, 7
    %v3177 = vsub.s32 2, %v3176
    %v3178 = vrot.slane %v3165, %v3177
    %v3179 = vlaneseq
    %v3180 = vshrl.u32 %v3179, 7
    %v3181 = vsub.s32 3, %v3180
    %v3182 = vrot.slane %v3165, %v3181
    %v3315 = vunpack.c.l.b16 %v3037
    %v3316 = vunpack.c.h.b16 %v3037
    %v3317 = vunpack.c.l.b16 %v3038
    %v3318 = vunpack.c.h.b16 %v3038
    %v3319 = vunpack.c.l.b16 %v3039
    %v3320 = vunpack.c.h.b16 %v3039
    %v3321 = vunpack.c.l.b16 %v3040
    %v3322 = vunpack.c.h.b16 %v3040
    %v3323 = vunpack.c.l.b16 %v3041
    %v3324 = vunpack.c.h.b16 %v3041
    %v3325 = vunpack.c.l.b16 %v3042
    %v3326 = vunpack.c.h.b16 %v3042
    %v3327 = vunpack.c.l.b16 %v3043
    %v3328 = vunpack.c.h.b16 %v3043
    %v3329 = vunpack.c.l.b16 %v3044
    %v3330 = vunpack.c.h.b16 %v3044
    %v3331 = vunpack.c.l.b16 %v3045
    %v3332 = vunpack.c.h.b16 %v3045
    %v3333 = vunpack.c.l.b16 %v3046
    %v3334 = vunpack.c.h.b16 %v3046
    %v3335 = vunpack.c.l.b16 %v3047
    %v3336 = vunpack.c.h.b16 %v3047
    %v3337 = vunpack.c.l.b16 %v3048
    %v3338 = vunpack.c.h.b16 %v3048
    %v3339 = vunpack.c.l.b16 %v3049
    %v3340 = vunpack.c.h.b16 %v3049
    %v3341 = vunpack.c.l.b16 %v3050
    %v3342 = vunpack.c.h.b16 %v3050
    %v3343 = vunpack.c.l.b16 %v3051
    %v3344 = vunpack.c.h.b16 %v3051
    %v3345 = vunpack.c.l.b16 %v3052
    %v3346 = vunpack.c.h.b16 %v3052
    %v3347 = vunpack.c.l.b16 %v3053
    %v3348 = vunpack.c.h.b16 %v3053
    %v3349 = vunpack.c.l.b16 %v3054
    %v3350 = vunpack.c.h.b16 %v3054
    %v3351 = vunpack.c.l.b16 %v3055
    %v3352 = vunpack.c.h.b16 %v3055
    %v3353 = vunpack.c.l.b16 %v3056
    %v3354 = vunpack.c.h.b16 %v3056
    %v3355 = vunpack.c.l.b16 %v3057
    %v3356 = vunpack.c.h.b16 %v3057
    %v3357 = vunpack.c.l.b16 %v3058
    %v3358 = vunpack.c.h.b16 %v3058
    %v3359 = vunpack.c.l.b16 %v3059
    %v3360 = vunpack.c.h.b16 %v3059
    %v3361 = vunpack.c.l.b16 %v3060
    %v3362 = vunpack.c.h.b16 %v3060
    %v3363 = vunpack.c.l.b16 %v3061
    %v3364 = vunpack.c.h.b16 %v3061
    %v3365 = vunpack.c.l.b16 %v3062
    %v3366 = vunpack.c.h.b16 %v3062
    %v3367 = vunpack.c.l.b16 %v3063
    %v3368 = vunpack.c.h.b16 %v3063
    %v3369 = vunpack.c.l.b16 %v3064
    %v3370 = vunpack.c.h.b16 %v3064
    %v3371 = vunpack.c.l.b16 %v3065
    %v3372 = vunpack.c.h.b16 %v3065
    %v3373 = vunpack.c.l.b16 %v3066
    %v3374 = vunpack.c.h.b16 %v3066
    %v3375 = vunpack.c.l.b16 %v3067
    %v3376 = vunpack.c.h.b16 %v3067
    %v3377 = vunpack.c.l.b16 %v3068
    %v3378 = vunpack.c.h.b16 %v3068
    %v3379 = vunpack.c.l.b16 %v3069
    %v3380 = vunpack.c.h.b16 %v3069
    %v3381 = vunpack.c.l.b16 %v3070
    %v3382 = vunpack.c.h.b16 %v3070
    %v3383 = vunpack.c.l.b16 %v3071
    %v3384 = vunpack.c.h.b16 %v3071
    %v3385 = vunpack.c.l.b16 %v3072
    %v3386 = vunpack.c.h.b16 %v3072
    %v3387 = vunpack.c.l.b16 %v3073
    %v3388 = vunpack.c.h.b16 %v3073
    %v3389 = vunpack.c.l.b16 %v3074
    %v3390 = vunpack.c.h.b16 %v3074
    %v3391 = vunpack.c.l.b16 %v3075
    %v3392 = vunpack.c.h.b16 %v3075
    %v3393 = vunpack.c.l.b16 %v3076
    %v3394 = vunpack.c.h.b16 %v3076
    %v3395 = vunpack.c.l.b16 %v3077
    %v3396 = vunpack.c.h.b16 %v3077
    %v3397 = vunpack.c.l.b16 %v3078
    %v3398 = vunpack.c.h.b16 %v3078
    %v3399 = vunpack.c.l.b16 %v3079
    %v3400 = vunpack.c.h.b16 %v3079
    %v3401 = vunpack.c.l.b16 %v3080
    %v3402 = vunpack.c.h.b16 %v3080
    %v3403 = vunpack.c.l.b16 %v3081
    %v3404 = vunpack.c.h.b16 %v3081
    %v3405 = vunpack.c.l.b16 %v3082
    %v3406 = vunpack.c.h.b16 %v3082
    %v3407 = vunpack.c.l.b16 %v3083
    %v3408 = vunpack.c.h.b16 %v3083
    %v3409 = vunpack.c.l.b16 %v3084
    %v3410 = vunpack.c.h.b16 %v3084
    %v3411 = vunpack.c.l.b16 %v3085
    %v3412 = vunpack.c.h.b16 %v3085
    %v3413 = vunpack.c.l.b16 %v3086
    %v3414 = vunpack.c.h.b16 %v3086
    %v3415 = vunpack.c.l.b16 %v3087
    %v3416 = vunpack.c.h.b16 %v3087
    %v3417 = vunpack.c.l.b16 %v3088
    %v3418 = vunpack.c.h.b16 %v3088
    %v3419 = vunpack.c.l.b16 %v3089
    %v3420 = vunpack.c.h.b16 %v3089
    %v3421 = vunpack.c.l.b16 %v3090
    %v3422 = vunpack.c.h.b16 %v3090
    %v3423 = vunpack.c.l.b16 %v3091
    %v3424 = vunpack.c.h.b16 %v3091
    %v3425 = vunpack.c.l.b16 %v3092
    %v3426 = vunpack.c.h.b16 %v3092
    %v3427 = vunpack.c.l.b16 %v3093
    %v3428 = vunpack.c.h.b16 %v3093
    %v3429 = vunpack.c.l.b16 %v3094
    %v3430 = vunpack.c.h.b16 %v3094
    %v3431 = vunpack.c.l.b16 %v3095
    %v3432 = vunpack.c.h.b16 %v3095
    %v3433 = vunpack.c.l.b16 %v3096
    %v3434 = vunpack.c.h.b16 %v3096
    %v3435 = vunpack.c.l.b16 %v3097
    %v3436 = vunpack.c.h.b16 %v3097
    %v3437 = vunpack.c.l.b16 %v3098
    %v3438 = vunpack.c.h.b16 %v3098
    %v3439 = vunpack.c.l.b16 %v3099
    %v3440 = vunpack.c.h.b16 %v3099
    %v3441 = vunpack.c.l.b16 %v3100
    %v3442 = vunpack.c.h.b16 %v3100
    %v3443 = vunpack.c.l.b16 %v3101
    %v3444 = vunpack.c.h.b16 %v3101
    %v3445 = vunpack.c.l.b16 %v3102
    %v3446 = vunpack.c.h.b16 %v3102
    %v3447 = vunpack.c.l.b16 %v3103
    %v3448 = vunpack.c.h.b16 %v3103
    %v3449 = vunpack.c.l.b16 %v3104
    %v3450 = vunpack.c.h.b16 %v3104
    %v3451 = vunpack.c.l.b16 %v3105
    %v3452 = vunpack.c.h.b16 %v3105
    %v3453 = vunpack.c.l.b16 %v3106
    %v3454 = vunpack.c.h.b16 %v3106
    %v3455 = vunpack.c.l.b16 %v3107
    %v3456 = vunpack.c.h.b16 %v3107
    %v3457 = vunpack.c.l.b16 %v3108
    %v3458 = vunpack.c.h.b16 %v3108
    %v3459 = vunpack.c.l.b16 %v3109
    %v3460 = vunpack.c.h.b16 %v3109
    %v3461 = vunpack.c.l.b16 %v3110
    %v3462 = vunpack.c.h.b16 %v3110
    %v3463 = vunpack.c.l.b16 %v3111
    %v3464 = vunpack.c.h.b16 %v3111
    %v3465 = vunpack.c.l.b16 %v3112
    %v3466 = vunpack.c.h.b16 %v3112
    %v3467 = vunpack.c.l.b16 %v3113
    %v3468 = vunpack.c.h.b16 %v3113
    %v3469 = vunpack.c.l.b16 %v3114
    %v3470 = vunpack.c.h.b16 %v3114
    %v3471 = vunpack.c.l.b16 %v3115
    %v3472 = vunpack.c.h.b16 %v3115
    %v3473 = vunpack.c.l.b16 %v3116
    %v3474 = vunpack.c.h.b16 %v3116
    %v3475 = vunpack.c.l.b16 %v3117
    %v3476 = vunpack.c.h.b16 %v3117
    %v3477 = vunpack.c.l.b16 %v3118
    %v3478 = vunpack.c.h.b16 %v3118
    %v3479 = vunpack.c.l.b16 %v3119
    %v3480 = vunpack.c.h.b16 %v3119
    %v3481 = vunpack.c.l.b16 %v3120
    %v3482 = vunpack.c.h.b16 %v3120
    %v3483 = vunpack.c.l.b16 %v3121
    %v3484 = vunpack.c.h.b16 %v3121
    %v3485 = vunpack.c.l.b16 %v3122
    %v3486 = vunpack.c.h.b16 %v3122
    %v3487 = vunpack.c.l.b16 %v3123
    %v3488 = vunpack.c.h.b16 %v3123
    %v3489 = vunpack.c.l.b16 %v3124
    %v3490 = vunpack.c.h.b16 %v3124
    %v3491 = vunpack.c.l.b16 %v3125
    %v3492 = vunpack.c.h.b16 %v3125
    %v3493 = vunpack.c.l.b16 %v3126
    %v3494 = vunpack.c.h.b16 %v3126
    %v3495 = vunpack.c.l.b16 %v3127
    %v3496 = vunpack.c.h.b16 %v3127
    %v3497 = vunpack.c.l.b16 %v3128
    %v3498 = vunpack.c.h.b16 %v3128
    %v3499 = vunpack.c.l.b16 %v3129
    %v3500 = vunpack.c.h.b16 %v3129
    %v3501 = vunpack.c.l.b16 %v3130
    %v3502 = vunpack.c.h.b16 %v3130
    %v3503 = vunpack.c.l.b16 %v3131
    %v3504 = vunpack.c.h.b16 %v3131
    %v3505 = vunpack.c.l.b16 %v3132
    %v3506 = vunpack.c.h.b16 %v3132
    %v3507 = vunpack.c.l.b16 %v3133
    %v3508 = vunpack.c.h.b16 %v3133
    %v3509 = vunpack.c.l.b16 %v3134
    %v3510 = vunpack.c.h.b16 %v3134
    %v3511 = vunpack.c.l.b16 %v3135
    %v3512 = vunpack.c.h.b16 %v3135
    %v3513 = vunpack.c.l.b16 %v3136
    %v3514 = vunpack.c.h.b16 %v3136
    %v3515 = vunpack.c.l.b16 %v3137
    %v3516 = vunpack.c.h.b16 %v3137
    %v3517 = vunpack.c.l.b16 %v3138
    %v3518 = vunpack.c.h.b16 %v3138
    %v3519 = vunpack.c.l.b16 %v3139
    %v3520 = vunpack.c.h.b16 %v3139
    %v3521 = vunpack.c.l.b16 %v3140
    %v3522 = vunpack.c.h.b16 %v3140
    %v3523 = vunpack.c.l.b16 %v3141
    %v3524 = vunpack.c.h.b16 %v3141
    %v3525 = vunpack.c.l.b16 %v3142
    %v3526 = vunpack.c.h.b16 %v3142
    %v3527 = vunpack.c.l.b16 %v3143
    %v3528 = vunpack.c.h.b16 %v3143
    %v3529 = vunpack.c.l.b16 %v3144
    %v3530 = vunpack.c.h.b16 %v3144
    %v3531 = vunpack.c.l.b16 %v3145
    %v3532 = vunpack.c.h.b16 %v3145
    %v3533 = vunpack.c.l.b16 %v3146
    %v3534 = vunpack.c.h.b16 %v3146
    %v3535 = vunpack.c.l.b16 %v3147
    %v3536 = vunpack.c.h.b16 %v3147
    %v3537 = vunpack.c.l.b16 %v3148
    %v3538 = vunpack.c.h.b16 %v3148
    %v3539 = vunpack.c.l.b16 %v3149
    %v3540 = vunpack.c.h.b16 %v3149
    %v3541 = vunpack.c.l.b16 %v3150
    %v3542 = vunpack.c.h.b16 %v3150
    %v3543 = vunpack.c.l.b16 %v3151
    %v3544 = vunpack.c.h.b16 %v3151
    %v3545 = vunpack.c.l.b16 %v3152
    %v3546 = vunpack.c.h.b16 %v3152
    %v3547 = vunpack.c.l.b16 %v3153
    %v3548 = vunpack.c.h.b16 %v3153
    %v3549 = vunpack.c.l.b16 %v3154
    %v3550 = vunpack.c.h.b16 %v3154
    %v3551 = vunpack.c.l.b16 %v3155
    %v3552 = vunpack.c.h.b16 %v3155
    %v3553 = vunpack.c.l.b16 %v3156
    %v3554 = vunpack.c.h.b16 %v3156
    %v3555 = vunpack.c.l.b16 %v3157
    %v3556 = vunpack.c.h.b16 %v3157
    %v3557 = vunpack.c.l.b16 %v3158
    %v3558 = vunpack.c.h.b16 %v3158
    %v3559 = vunpack.c.l.b16 %v3159
    %v3560 = vunpack.c.h.b16 %v3159
    %v3561 = vunpack.c.l.b16 %v3160
    %v3562 = vunpack.c.h.b16 %v3160
    %v3563 = vunpack.c.l.b16 %v3161
    %v3564 = vunpack.c.h.b16 %v3161
    %v3565 = vunpack.c.l.b16 %v3162
    %v3566 = vunpack.c.h.b16 %v3162
    %v3567 = vunpack.c.l.b16 %v3163
    %v3568 = vunpack.c.h.b16 %v3163
    %v3569 = vunpack.c.l.b16 %v3164
    %v3570 = vunpack.c.h.b16 %v3164
    %v3571 = vpack.c.b16 %v3319, %v3315
    %v3572 = vpack.c.b16 %v3320, %v3316
    %v3573 = vpack.c.b16 %v3321, %v3317
    %v3574 = vpack.c.b16 %v3322, %v3318
    %v3575 = vpack.c.b16 %v3327, %v3323
    %v3576 = vpack.c.b16 %v3328, %v3324
    %v3577 = vpack.c.b16 %v3329, %v3325
    %v3578 = vpack.c.b16 %v3330, %v3326
    %v3579 = vpack.c.b16 %v3335, %v3331
    %v3580 = vpack.c.b16 %v3336, %v3332
    %v3581 = vpack.c.b16 %v3337, %v3333
    %v3582 = vpack.c.b16 %v3338, %v3334
    %v3583 = vpack.c.b16 %v3343, %v3339
    %v3584 = vpack.c.b16 %v3344, %v3340
    %v3585 = vpack.c.b16 %v3345, %v3341
    %v3586 = vpack.c.b16 %v3346, %v3342
    %v3587 = vpack.c.b16 %v3351, %v3347
    %v3588 = vpack.c.b16 %v3352, %v3348
    %v3589 = vpack.c.b16 %v3353, %v3349
    %v3590 = vpack.c.b16 %v3354, %v3350
    %v3591 = vpack.c.b16 %v3359, %v3355
    %v3592 = vpack.c.b16 %v3360, %v3356
    %v3593 = vpack.c.b16 %v3361, %v3357
    %v3594 = vpack.c.b16 %v3362, %v3358
    %v3595 = vpack.c.b16 %v3367, %v3363
    %v3596 = vpack.c.b16 %v3368, %v3364
    %v3597 = vpack.c.b16 %v3369, %v3365
    %v3598 = vpack.c.b16 %v3370, %v3366
    %v3599 = vpack.c.b16 %v3375, %v3371
    %v3600 = vpack.c.b16 %v3376, %v3372
    %v3601 = vpack.c.b16 %v3377, %v3373
    %v3602 = vpack.c.b16 %v3378, %v3374
    %v3603 = vpack.c.b16 %v3383, %v3379
    %v3604 = vpack.c.b16 %v3384, %v3380
    %v3605 = vpack.c.b16 %v3385, %v3381
    %v3606 = vpack.c.b16 %v3386, %v3382
    %v3607 = vpack.c.b16 %v3391, %v3387
    %v3608 = vpack.c.b16 %v3392, %v3388
    %v3609 = vpack.c.b16 %v3393, %v3389
    %v3610 = vpack.c.b16 %v3394, %v3390
    %v3611 = vpack.c.b16 %v3399, %v3395
    %v3612 = vpack.c.b16 %v3400, %v3396
    %v3613 = vpack.c.b16 %v3401, %v3397
    %v3614 = vpack.c.b16 %v3402, %v3398
    %v3615 = vpack.c.b16 %v3407, %v3403
    %v3616 = vpack.c.b16 %v3408, %v3404
    %v3617 = vpack.c.b16 %v3409, %v3405
    %v3618 = vpack.c.b16 %v3410, %v3406
    %v3619 = vpack.c.b16 %v3415, %v3411
    %v3620 = vpack.c.b16 %v3416, %v3412
    %v3621 = vpack.c.b16 %v3417, %v3413
    %v3622 = vpack.c.b16 %v3418, %v3414
    %v3623 = vpack.c.b16 %v3423, %v3419
    %v3624 = vpack.c.b16 %v3424, %v3420
    %v3625 = vpack.c.b16 %v3425, %v3421
    %v3626 = vpack.c.b16 %v3426, %v3422
    %v3627 = vpack.c.b16 %v3431, %v3427
    %v3628 = vpack.c.b16 %v3432, %v3428
    %v3629 = vpack.c.b16 %v3433, %v3429
    %v3630 = vpack.c.b16 %v3434, %v3430
    %v3631 = vpack.c.b16 %v3439, %v3435
    %v3632 = vpack.c.b16 %v3440, %v3436
    %v3633 = vpack.c.b16 %v3441, %v3437
    %v3634 = vpack.c.b16 %v3442, %v3438
    %v3635 = vpack.c.b16 %v3447, %v3443
    %v3636 = vpack.c.b16 %v3448, %v3444
    %v3637 = vpack.c.b16 %v3449, %v3445
    %v3638 = vpack.c.b16 %v3450, %v3446
    %v3639 = vpack.c.b16 %v3455, %v3451
    %v3640 = vpack.c.b16 %v3456, %v3452
    %v3641 = vpack.c.b16 %v3457, %v3453
    %v3642 = vpack.c.b16 %v3458, %v3454
    %v3643 = vpack.c.b16 %v3463, %v3459
    %v3644 = vpack.c.b16 %v3464, %v3460
    %v3645 = vpack.c.b16 %v3465, %v3461
    %v3646 = vpack.c.b16 %v3466, %v3462
    %v3647 = vpack.c.b16 %v3471, %v3467
    %v3648 = vpack.c.b16 %v3472, %v3468
    %v3649 = vpack.c.b16 %v3473, %v3469
    %v3650 = vpack.c.b16 %v3474, %v3470
    %v3651 = vpack.c.b16 %v3479, %v3475
    %v3652 = vpack.c.b16 %v3480, %v3476
    %v3653 = vpack.c.b16 %v3481, %v3477
    %v3654 = vpack.c.b16 %v3482, %v3478
    %v3655 = vpack.c.b16 %v3487, %v3483
    %v3656 = vpack.c.b16 %v3488, %v3484
    %v3657 = vpack.c.b16 %v3489, %v3485
    %v3658 = vpack.c.b16 %v3490, %v3486
    %v3659 = vpack.c.b16 %v3495, %v3491
    %v3660 = vpack.c.b16 %v3496, %v3492
    %v3661 = vpack.c.b16 %v3497, %v3493
    %v3662 = vpack.c.b16 %v3498, %v3494
    %v3663 = vpack.c.b16 %v3503, %v3499
    %v3664 = vpack.c.b16 %v3504, %v3500
    %v3665 = vpack.c.b16 %v3505, %v3501
    %v3666 = vpack.c.b16 %v3506, %v3502
    %v3667 = vpack.c.b16 %v3511, %v3507
    %v3668 = vpack.c.b16 %v3512, %v3508
    %v3669 = vpack.c.b16 %v3513, %v3509
    %v3670 = vpack.c.b16 %v3514, %v3510
    %v3671 = vpack.c.b16 %v3519, %v3515
    %v3672 = vpack.c.b16 %v3520, %v3516
    %v3673 = vpack.c.b16 %v3521, %v3517
    %v3674 = vpack.c.b16 %v3522, %v3518
    %v3675 = vpack.c.b16 %v3527, %v3523
    %v3676 = vpack.c.b16 %v3528, %v3524
    %v3677 = vpack.c.b16 %v3529, %v3525
    %v3678 = vpack.c.b16 %v3530, %v3526
    %v3679 = vpack.c.b16 %v3535, %v3531
    %v3680 = vpack.c.b16 %v3536, %v3532
    %v3681 = vpack.c.b16 %v3537, %v3533
    %v3682 = vpack.c.b16 %v3538, %v3534
    %v3683 = vpack.c.b16 %v3543, %v3539
    %v3684 = vpack.c.b16 %v3544, %v3540
    %v3685 = vpack.c.b16 %v3545, %v3541
    %v3686 = vpack.c.b16 %v3546, %v3542
    %v3687 = vpack.c.b16 %v3551, %v3547
    %v3688 = vpack.c.b16 %v3552, %v3548
    %v3689 = vpack.c.b16 %v3553, %v3549
    %v3690 = vpack.c.b16 %v3554, %v3550
    %v3691 = vpack.c.b16 %v3559, %v3555
    %v3692 = vpack.c.b16 %v3560, %v3556
    %v3693 = vpack.c.b16 %v3561, %v3557
    %v3694 = vpack.c.b16 %v3562, %v3558
    %v3695 = vpack.c.b16 %v3567, %v3563
    %v3696 = vpack.c.b16 %v3568, %v3564
    %v3697 = vpack.c.b16 %v3569, %v3565
    %v3698 = vpack.c.b16 %v3570, %v3566
    %3827 = vmatprep.subr.bf16.mxu0 %v3600
    %3828 = vmatpush1.bf16.msra.mxu0 %v3599
    %3829 = vmatprep.subr.bf16.mxu0 %v3596
    %3830 = vmatpush1.bf16.msra.mxu0 %v3595
    %3831 = vmatprep.subr.bf16.mxu0 %v3592
    %3832 = vmatpush1.bf16.msra.mxu0 %v3591
    %3833 = vmatprep.subr.bf16.mxu0 %v3588
    %3834 = vmatpush1.bf16.msra.mxu0 %v3587
    %3835 = vmatprep.subr.bf16.mxu0 %v3584
    %3836 = vmatpush1.bf16.msra.mxu0 %v3583
    %3837 = vmatprep.subr.bf16.mxu0 %v3580
    %3838 = vmatpush1.bf16.msra.mxu0 %v3579
    %3839 = vmatprep.subr.bf16.mxu0 %v3576
    %3840 = vmatpush1.bf16.msra.mxu0 %v3575
    %3841 = vmatprep.subr.bf16.mxu0 %v3572
    %3842 = vmatpush1.bf16.msra.mxu0 %v3571
    %3843 = vmatprep.subr.bf16.mxu0 %v3632
    %3844 = vmatpush2.bf16.msra.mxu0 %v3631
    %3845 = vmatprep.subr.bf16.mxu0 %v3628
    %3846 = vmatpush2.bf16.msra.mxu0 %v3627
    %3847 = vmatprep.subr.bf16.mxu0 %v3624
    %3848 = vmatpush2.bf16.msra.mxu0 %v3623
    %3849 = vmatprep.subr.bf16.mxu0 %v3620
    %3850 = vmatpush2.bf16.msra.mxu0 %v3619
    %3851 = vmatprep.subr.bf16.mxu0 %v3616
    %3852 = vmatpush2.bf16.msra.mxu0 %v3615
    %3853 = vmatprep.subr.bf16.mxu0 %v3612
    %3854 = vmatpush2.bf16.msra.mxu0 %v3611
    %3855 = vmatprep.subr.bf16.mxu0 %v3608
    %3856 = vmatpush2.bf16.msra.mxu0 %v3607
    %3857 = vmatprep.subr.bf16.mxu0 %v3604
    %3858 = vmatpush2.bf16.msra.mxu0 %v3603
    %3859 = vmatprep.mubr.bf16.mxu0 %v3034
    %3860 = vmatmul.mubr.bf16.gmra.mxu0 %v3033
    %v3861 = vpop.f32.mrf.mxu0
    %v3862 = vadd.f32 %v3170, %v3861
    %v3863 = vpop.f32.mrf.mxu0
    %v3864 = vadd.f32 %v3174, %v3863
    %v3865 = vpop.f32.mrf.mxu0
    %v3866 = vpop.f32.mrf.mxu0
    %3867 = vdwg.mxu0
    %3868 = vmatprep.subr.bf16.mxu0 %v3664
    %3869 = vmatpush1.bf16.msra.mxu0 %v3663
    %3870 = vmatprep.subr.bf16.mxu0 %v3660
    %3871 = vmatpush1.bf16.msra.mxu0 %v3659
    %3872 = vmatprep.subr.bf16.mxu0 %v3656
    %3873 = vmatpush1.bf16.msra.mxu0 %v3655
    %3874 = vmatprep.subr.bf16.mxu0 %v3652
    %3875 = vmatpush1.bf16.msra.mxu0 %v3651
    %3876 = vmatprep.subr.bf16.mxu0 %v3648
    %3877 = vmatpush1.bf16.msra.mxu0 %v3647
    %3878 = vmatprep.subr.bf16.mxu0 %v3644
    %3879 = vmatpush1.bf16.msra.mxu0 %v3643
    %3880 = vmatprep.subr.bf16.mxu0 %v3640
    %3881 = vmatpush1.bf16.msra.mxu0 %v3639
    %3882 = vmatprep.subr.bf16.mxu0 %v3636
    %3883 = vmatpush1.bf16.msra.mxu0 %v3635
    %3884 = vmatprep.subr.bf16.mxu0 %v3696
    %3885 = vmatpush2.bf16.msra.mxu0 %v3695
    %3886 = vmatprep.subr.bf16.mxu0 %v3692
    %3887 = vmatpush2.bf16.msra.mxu0 %v3691
    %3888 = vmatprep.subr.bf16.mxu0 %v3688
    %3889 = vmatpush2.bf16.msra.mxu0 %v3687
    %3890 = vmatprep.subr.bf16.mxu0 %v3684
    %3891 = vmatpush2.bf16.msra.mxu0 %v3683
    %3892 = vmatprep.subr.bf16.mxu0 %v3680
    %3893 = vmatpush2.bf16.msra.mxu0 %v3679
    %3894 = vmatprep.subr.bf16.mxu0 %v3676
    %3895 = vmatpush2.bf16.msra.mxu0 %v3675
    %3896 = vmatprep.subr.bf16.mxu0 %v3672
    %3897 = vmatpush2.bf16.msra.mxu0 %v3671
    %3898 = vmatprep.subr.bf16.mxu0 %v3668
    %3899 = vmatpush2.bf16.msra.mxu0 %v3667
    %3900 = vmatprep.mubr.bf16.mxu0 %v3036
    %3901 = vmatmul.mubr.bf16.gmra.mxu0 %v3035
    %v3902 = vpop.f32.mrf.mxu0
    %v3903 = vadd.f32 %v3862, %v3902
    %v3904 = vpop.f32.mrf.mxu0
    %v3905 = vadd.f32 %v3864, %v3904
    %v3906 = vpop.f32.mrf.mxu0
    %v3907 = vpop.f32.mrf.mxu0
    %3908 = vdwg.mxu0
    %3909 = vmatprep.subr.bf16.mxu0 %v3602
    %3910 = vmatpush1.bf16.msra.mxu0 %v3601
    %3911 = vmatprep.subr.bf16.mxu0 %v3598
    %3912 = vmatpush1.bf16.msra.mxu0 %v3597
    %3913 = vmatprep.subr.bf16.mxu0 %v3594
    %3914 = vmatpush1.bf16.msra.mxu0 %v3593
    %3915 = vmatprep.subr.bf16.mxu0 %v3590
    %3916 = vmatpush1.bf16.msra.mxu0 %v3589
    %3917 = vmatprep.subr.bf16.mxu0 %v3586
    %3918 = vmatpush1.bf16.msra.mxu0 %v3585
    %3919 = vmatprep.subr.bf16.mxu0 %v3582
    %3920 = vmatpush1.bf16.msra.mxu0 %v3581
    %3921 = vmatprep.subr.bf16.mxu0 %v3578
    %3922 = vmatpush1.bf16.msra.mxu0 %v3577
    %3923 = vmatprep.subr.bf16.mxu0 %v3574
    %3924 = vmatpush1.bf16.msra.mxu0 %v3573
    %3925 = vmatprep.subr.bf16.mxu0 %v3634
    %3926 = vmatpush2.bf16.msra.mxu0 %v3633
    %3927 = vmatprep.subr.bf16.mxu0 %v3630
    %3928 = vmatpush2.bf16.msra.mxu0 %v3629
    %3929 = vmatprep.subr.bf16.mxu0 %v3626
    %3930 = vmatpush2.bf16.msra.mxu0 %v3625
    %3931 = vmatprep.subr.bf16.mxu0 %v3622
    %3932 = vmatpush2.bf16.msra.mxu0 %v3621
    %3933 = vmatprep.subr.bf16.mxu0 %v3618
    %3934 = vmatpush2.bf16.msra.mxu0 %v3617
    %3935 = vmatprep.subr.bf16.mxu0 %v3614
    %3936 = vmatpush2.bf16.msra.mxu0 %v3613
    %3937 = vmatprep.subr.bf16.mxu0 %v3610
    %3938 = vmatpush2.bf16.msra.mxu0 %v3609
    %3939 = vmatprep.subr.bf16.mxu0 %v3606
    %3940 = vmatpush2.bf16.msra.mxu0 %v3605
    %3941 = vmatprep.mubr.bf16.mxu0 %v3034
    %3942 = vmatmul.mubr.bf16.gmra.mxu0 %v3033
    %v3943 = vpop.f32.mrf.mxu0
    %v3944 = vadd.f32 %v3178, %v3943
    %v3945 = vpop.f32.mrf.mxu0
    %v3946 = vadd.f32 %v3182, %v3945
    %v3947 = vpop.f32.mrf.mxu0
    %v3948 = vpop.f32.mrf.mxu0
    %3949 = vdwg.mxu0
    %3950 = vmatprep.subr.bf16.mxu0 %v3666
    %3951 = vmatpush1.bf16.msra.mxu0 %v3665
    %3952 = vmatprep.subr.bf16.mxu0 %v3662
    %3953 = vmatpush1.bf16.msra.mxu0 %v3661
    %3954 = vmatprep.subr.bf16.mxu0 %v3658
    %3955 = vmatpush1.bf16.msra.mxu0 %v3657
    %3956 = vmatprep.subr.bf16.mxu0 %v3654
    %3957 = vmatpush1.bf16.msra.mxu0 %v3653
    %3958 = vmatprep.subr.bf16.mxu0 %v3650
    %3959 = vmatpush1.bf16.msra.mxu0 %v3649
    %3960 = vmatprep.subr.bf16.mxu0 %v3646
    %3961 = vmatpush1.bf16.msra.mxu0 %v3645
    %3962 = vmatprep.subr.bf16.mxu0 %v3642
    %3963 = vmatpush1.bf16.msra.mxu0 %v3641
    %3964 = vmatprep.subr.bf16.mxu0 %v3638
    %3965 = vmatpush1.bf16.msra.mxu0 %v3637
    %3966 = vmatprep.subr.bf16.mxu0 %v3698
    %3967 = vmatpush2.bf16.msra.mxu0 %v3697
    %3968 = vmatprep.subr.bf16.mxu0 %v3694
    %3969 = vmatpush2.bf16.msra.mxu0 %v3693
    %3970 = vmatprep.subr.bf16.mxu0 %v3690
    %3971 = vmatpush2.bf16.msra.mxu0 %v3689
    %3972 = vmatprep.subr.bf16.mxu0 %v3686
    %3973 = vmatpush2.bf16.msra.mxu0 %v3685
    %3974 = vmatprep.subr.bf16.mxu0 %v3682
    %3975 = vmatpush2.bf16.msra.mxu0 %v3681
    %3976 = vmatprep.subr.bf16.mxu0 %v3678
    %3977 = vmatpush2.bf16.msra.mxu0 %v3677
    %3978 = vmatprep.subr.bf16.mxu0 %v3674
    %3979 = vmatpush2.bf16.msra.mxu0 %v3673
    %3980 = vmatprep.subr.bf16.mxu0 %v3670
    %3981 = vmatpush2.bf16.msra.mxu0 %v3669
    %3982 = vmatprep.mubr.bf16.mxu0 %v3036
    %3983 = vmatmul.mubr.bf16.gmra.mxu0 %v3035
    %v3984 = vpop.f32.mrf.mxu0
    %v3985 = vadd.f32 %v3944, %v3984
    %v3986 = vpop.f32.mrf.mxu0
    %v3987 = vadd.f32 %v3946, %v3986
    %v3988 = vpop.f32.mrf.mxu0
    %v3989 = vpop.f32.mrf.mxu0
    %3990 = vdwg.mxu0
    %v3995 = vcombine.low %v3903, %v3905
    %v3996 = vcombine.low %v3985, %v3987
    %v3998 = vunpack.c.l.s4 1983009808
    %v3999 = vunpack.c.0.s8 %v3998
    %v4000 = vlaneseq
    %v4001 = vshrl.u32 %v4000, 7
    %v4002 = vsub.s32 %v3999, %v4001
    %v4003 = vrot.slane %v3995, %v4002
    %v4005 = vunpack.c.l.s4 1983009808
    %v4006 = vunpack.c.0.s8 %v4005
    %v4007 = vlaneseq
    %v4008 = vshrl.u32 %v4007, 7
    %v4009 = vsub.s32 %v4006, %v4008
    %v4010 = vrot.slane %v3996, %v4009
    %v4011 = vcombine.low %v4003, %v4010
    %4013 = vst [vmem:[#allocation13] sm:$0xff] %v4011
    // Predicated region
    $region58: #{tpu_custom_call.1} parent=1 // pred_check
      _
    $region59: #{tpu_custom_call.1} parent=1 // pred_check_branch
      %4015 = sbr.rel (0) target = $region61
    $region60: #{tpu_custom_call.1} parent=1 // pred_region
      %s4017 = ssub.s32 128, 128
      %4018 = vsyncadd [#allocation4], %s4017
      %s4020 = sshll.u32 [#allocation13], 4
      %s4021 = int_to_ptr.vmem [resolvable:$true] %s4020
      %4023 = dma.vmem_to_hbm [thread:$0]  %s4021, 128, %s8, [#allocation4]
    $region61: #{tpu_custom_call.1} parent=1 // pred_fallthru
      _
    // Predicated region
    $region62: #{tpu_custom_call.1} parent=1 // pred_check
      _
    $region63: #{tpu_custom_call.1} parent=1 // pred_check_branch
      %4025 = sbr.rel (0) target = $region65
    $region64: #{tpu_custom_call.1} parent=1 // pred_region
      %4026 = dma.done [#allocation4], 128
    $region65: #{tpu_custom_call.1} parent=1 // pred_fallthru
      _
    %4027 = vsyncpa [#allocation3], 1
    %4028 = vsyncpa [#allocation7], 1
    %4029 = vsyncpa [#allocation10], 1
    %4030 = vsyncpa [#allocation4], 1
    %4031 = vsyncpa [#allocation5], 1

</llo_original>
